<compile_context>
chip_gen: v7x
topology: tpu7x:2x2x1
jax: 0.10.0
libtpu: 0.0.40
codegen_flags: <defaults>
</compile_context>

<pallas_src>
import functools

import jax
import jax.numpy as jnp
from jax import lax
from jax.experimental import pallas as pl
from jax.experimental.pallas import tpu as pltpu

LANE = 128  # TPU lane width; channel axes are padded up to a multiple of this.


def _round_up(x, m):
    return (x + m - 1) // m * m


def vgg_block_kernel(x_ref, w1_ref, b1_ref, w2_ref, b2_ref, o_ref, *, H, W):
    """One batch element per grid step.

    x_ref:  (1, H*W, Cin_p)     lane-dense, spatially flattened NHWC input
    w1_ref: (9*Cin_p, Cmid_p)   im2col-flattened conv1 weights, BN1 scale folded in
    b1_ref: (1, Cmid_p)         folded BN1 shift
    w2_ref: (9*Cmid_p, Cout_p)  im2col-flattened conv2 weights, BN2 scale folded in
    b2_ref: (1, Cout_p)         folded BN2 shift
    o_ref:  (1, H*W, Cout_p)    lane-dense output
    """
    HW = H * W
    x = x_ref[0]  # (HW, Cin_p)

    taps = [(dy, dx) for dy in (-1, 0, 1) for dx in (-1, 0, 1)]

    # Boundary-validity masks for "SAME" padding, built once per padded channel
    # width and shared between the two convs (both convs hit the cache when
    # Cin_p == Cmid_p, which is the common case).
    mask_cache = {}

    def masks_for(cp):
        if cp not in mask_cache:
            # per-row spatial coordinates (y, x), broadcast across the lane axis
            y = lax.broadcasted_iota(jnp.int32, (H, W, cp), 0).reshape(HW, cp)
            c = lax.broadcasted_iota(jnp.int32, (H, W, cp), 1).reshape(HW, cp)
            masks = []
            for dy, dx in taps:
                # valid <=> 0 <= y+dy < H  and  0 <= x+dx < W
                masks.append((y >= -dy) & (y < H - dy) &
                             (c >= -dx) & (c < W - dx))
            mask_cache[cp] = masks
        return mask_cache[cp]

    def conv3x3(inp, w_flat):
        # im2col along lanes: 9 shifted + edge-masked copies of `inp`
        # concatenated on the lane axis, then a single MXU matmul against the
        # (9*C, Cout) flattened weights (taps accumulate inside the MXU).
        hw, cp = inp.shape
        masks = masks_for(cp)
        slabs = []
        for k, (dy, dx) in enumerate(taps):
            d = dy * W + dx
            shifted = inp if d == 0 else pltpu.roll(inp, (-d) % hw, axis=0)
            slabs.append(jnp.where(masks[k], shifted, 0.0))
        patch = jnp.concatenate(slabs, axis=1)  # (HW, 9*cp)
        return jnp.dot(patch, w_flat, preferred_element_type=jnp.float32)

    # conv1 (BN1 scale folded into weights) -> shift -> ReLU
    h = jnp.maximum(conv3x3(x, w1_ref[...]) + b1_ref[...], 0.0)
    # conv2 (BN2 scale folded into weights) -> shift -> ReLU
    out = jnp.maximum(conv3x3(h, w2_ref[...]) + b2_ref[...], 0.0)

    o_ref[0] = out.astype(o_ref.dtype)


def _fold_bn_into_weights(w, gamma, beta, mean, var, eps, cin_pad, cout_pad):
    """Fold inference BN (scale) into HWIO conv weights; return flat weights + shift."""
    inv = gamma / jnp.sqrt(var + eps)        # (Cout,)
    shift = beta - mean * inv                # (Cout,)
    kh, kw, cin, cout = w.shape
    w = w * inv                              # scale per output channel (last axis)
    w = jnp.pad(w, ((0, 0), (0, 0), (0, cin_pad - cin), (0, cout_pad - cout)))
    w_flat = w.reshape(kh * kw * cin_pad, cout_pad)
    shift = jnp.pad(shift, (0, cout_pad - cout)).reshape(1, cout_pad)
    return w_flat, shift


def vgg_block(x_nchw, w1, g1, be1, m1, v1, w2, g2, be2, m2, v2, eps=1e-5):
    """Wrapper: NCHW in / NCHW out, conv weights given in HWIO layout."""
    N, Cin, H, W = x_nchw.shape
    Cmid = w1.shape[3]
    Cout = w2.shape[3]
    HW = H * W

    Cin_p = _round_up(Cin, LANE)
    Cmid_p = _round_up(Cmid, LANE)
    Cout_p = _round_up(Cout, LANE)

    # plain-JAX glue: NCHW -> lane-dense (N, H*W, C_p) layout, BN folding,
    # im2col weight flattening.  No spatial padding is materialised in HBM.
    x = jnp.transpose(x_nchw, (0, 2, 3, 1)).reshape(N, HW, Cin)
    x = jnp.pad(x, ((0, 0), (0, 0), (0, Cin_p - Cin)))

    w1f, b1 = _fold_bn_into_weights(w1, g1, be1, m1, v1, eps, Cin_p, Cmid_p)
    w2f, b2 = _fold_bn_into_weights(w2, g2, be2, m2, v2, eps, Cmid_p, Cout_p)

    kernel = functools.partial(vgg_block_kernel, H=H, W=W)

    out = pl.pallas_call(
        kernel,
        out_shape=jax.ShapeDtypeStruct((N, HW, Cout_p), jnp.float32),
        grid_spec=pltpu.PrefetchScalarGridSpec(
            num_scalar_prefetch=0,
            grid=(N,),
            in_specs=[
                pl.BlockSpec((1, HW, Cin_p), lambda n: (n, 0, 0)),
                pl.BlockSpec((9 * Cin_p, Cmid_p), lambda n: (0, 0)),
                pl.BlockSpec((1, Cmid_p), lambda n: (0, 0)),
                pl.BlockSpec((9 * Cmid_p, Cout_p), lambda n: (0, 0)),
                pl.BlockSpec((1, Cout_p), lambda n: (0, 0)),
            ],
            out_specs=pl.BlockSpec((1, HW, Cout_p), lambda n: (n, 0, 0)),
        ),
        compiler_params=pltpu.CompilerParams(
            dimension_semantics=("parallel",)),
    )(x, w1f, b1, w2f, b2)

    out = out[:, :, :Cout].reshape(N, H, W, Cout)
    return jnp.transpose(out, (0, 3, 1, 2))  # back to NCHW


def vgg_block_reference(x_nchw, w1, g1, be1, m1, v1, w2, g2, be2, m2, v2,
                        eps=1e-5):
    """Pure-JAX reference (lax conv) for correctness checking."""
    x = jnp.transpose(x_nchw, (0, 2, 3, 1))
    dn = ('NHWC', 'HWIO', 'NHWC')
    y = lax.conv_general_dilated(x, w1, (1, 1), 'SAME', dimension_numbers=dn)
    y = (y - m1) / jnp.sqrt(v1 + eps) * g1 + be1
    y = jnp.maximum(y, 0.0)
    y = lax.conv_general_dilated(y, w2, (1, 1), 'SAME', dimension_numbers=dn)
    y = (y - m2) / jnp.sqrt(v2 + eps) * g2 + be2
    y = jnp.maximum(y, 0.0)
    return jnp.transpose(y, (0, 3, 1, 2))


if __name__ == "__main__":
    # Small shapes consistent with VGGBlock(in=4, middle=8, out=4)
    N, Cin, Cmid, Cout, H, W = 2, 4, 8, 4, 16, 16

    key = jax.random.PRNGKey(0)
    keys = jax.random.split(key, 11)

    x = jax.random.normal(keys[0], (N, Cin, H, W), jnp.float32)

    # Conv weights in HWIO layout (equivalent to transposing PyTorch's OIHW)
    w1 = jax.random.normal(keys[1], (3, 3, Cin, Cmid), jnp.float32) * 0.1
    w2 = jax.random.normal(keys[2], (3, 3, Cmid, Cout), jnp.float32) * 0.1

    # BatchNorm parameters + running statistics (inference mode)
    g1 = jax.random.uniform(keys[3], (Cmid,), jnp.float32, 0.5, 1.5)
    be1 = jax.random.normal(keys[4], (Cmid,), jnp.float32) * 0.1
    m1 = jax.random.normal(keys[5], (Cmid,), jnp.float32) * 0.1
    v1 = jax.random.uniform(keys[6], (Cmid,), jnp.float32, 0.5, 1.5)

    g2 = jax.random.uniform(keys[7], (Cout,), jnp.float32, 0.5, 1.5)
    be2 = jax.random.normal(keys[8], (Cout,), jnp.float32) * 0.1
    m2 = jax.random.normal(keys[9], (Cout,), jnp.float32) * 0.1
    v2 = jax.random.uniform(keys[10], (Cout,), jnp.float32, 0.5, 1.5)

    out = vgg_block(x, w1, g1, be1, m1, v1, w2, g2, be2, m2, v2)
    out = jax.block_until_ready(out)

    ref = vgg_block_reference(x, w1, g1, be1, m1, v1, w2, g2, be2, m2, v2)
    ref = jax.block_until_ready(ref)

    assert out.shape == (N, Cout, H, W)
    err = jnp.max(jnp.abs(out - ref))
    assert jnp.allclose(out, ref, atol=5e-4, rtol=5e-4), f"max abs err = {err}"

    print("KERNEL_OK")
</pallas_src>

<mosaic_0001>
module attributes {stable_mosaic.version = 11 : i64} {
  func.func @vgg_block_kernel(%arg0: i32, %arg1: memref<1x256x128xf32, #tpu.memory_space<vmem>>, %arg2: memref<1152x128xf32, #tpu.memory_space<vmem>>, %arg3: memref<1x128xf32, #tpu.memory_space<vmem>>, %arg4: memref<1152x128xf32, #tpu.memory_space<vmem>>, %arg5: memref<1x128xf32, #tpu.memory_space<vmem>>, %arg6: memref<1x256x128xf32, #tpu.memory_space<vmem>>) attributes {dimension_semantics = [#tpu.dimension_semantics<parallel>], iteration_bounds = array<i64: 2>, scalar_prefetch = 0 : i64, scratch_operands = 0 : i64, tpu.core_type = #tpu.core_type<tc>, window_params = [{transform_indices = @transform_0, window_bounds = array<i64: 1, 256, 128>}, {pipeline_mode = #tpu.pipeline_mode<synchronous>, transform_indices = @transform_1, window_bounds = array<i64: 1152, 128>}, {pipeline_mode = #tpu.pipeline_mode<synchronous>, transform_indices = @transform_2, window_bounds = array<i64: 1, 128>}, {pipeline_mode = #tpu.pipeline_mode<synchronous>, transform_indices = @transform_3, window_bounds = array<i64: 1152, 128>}, {pipeline_mode = #tpu.pipeline_mode<synchronous>, transform_indices = @transform_4, window_bounds = array<i64: 1, 128>}, {transform_indices = @transform_5, window_bounds = array<i64: 1, 256, 128>}]} {
    %c0 = arith.constant 0 : index
    %c0_0 = arith.constant 0 : index
    %c0_1 = arith.constant 0 : index
    %0 = vector.load %arg1[%c0, %c0_0, %c0_1] : memref<1x256x128xf32, #tpu.memory_space<vmem>>, vector<1x256x128xf32>
    %1 = vector.shape_cast %0 : vector<1x256x128xf32> to vector<256x128xf32>
    %c0_2 = arith.constant 0 : index
    %c0_3 = arith.constant 0 : index
    %2 = vector.load %arg2[%c0_2, %c0_3] : memref<1152x128xf32, #tpu.memory_space<vmem>>, vector<1152x128xf32>
    %3 = tpu.iota {dimensions = array<i32: 0>} : vector<16x16x128xi32>
    %4 = vector.shape_cast %3 : vector<16x16x128xi32> to vector<256x128xi32>
    %5 = tpu.iota {dimensions = array<i32: 1>} : vector<16x16x128xi32>
    %6 = vector.shape_cast %5 : vector<16x16x128xi32> to vector<256x128xi32>
    %c1_i32 = arith.constant 1 : i32
    %7 = vector.broadcast %c1_i32 : i32 to vector<256x128xi32>
    %8 = arith.cmpi sge, %4, %7 : vector<256x128xi32>
    %c17_i32 = arith.constant 17 : i32
    %9 = vector.broadcast %c17_i32 : i32 to vector<256x128xi32>
    %10 = arith.cmpi slt, %4, %9 : vector<256x128xi32>
    %11 = arith.andi %8, %10 : vector<256x128xi1>
    %c1_i32_4 = arith.constant 1 : i32
    %12 = vector.broadcast %c1_i32_4 : i32 to vector<256x128xi32>
    %13 = arith.cmpi sge, %6, %12 : vector<256x128xi32>
    %14 = arith.andi %11, %13 : vector<256x128xi1>
    %c17_i32_5 = arith.constant 17 : i32
    %15 = vector.broadcast %c17_i32_5 : i32 to vector<256x128xi32>
    %16 = arith.cmpi slt, %6, %15 : vector<256x128xi32>
    %17 = arith.andi %14, %16 : vector<256x128xi1>
    %c1_i32_6 = arith.constant 1 : i32
    %18 = vector.broadcast %c1_i32_6 : i32 to vector<256x128xi32>
    %19 = arith.cmpi sge, %4, %18 : vector<256x128xi32>
    %c17_i32_7 = arith.constant 17 : i32
    %20 = vector.broadcast %c17_i32_7 : i32 to vector<256x128xi32>
    %21 = arith.cmpi slt, %4, %20 : vector<256x128xi32>
    %22 = arith.andi %19, %21 : vector<256x128xi1>
    %c0_i32 = arith.constant 0 : i32
    %23 = vector.broadcast %c0_i32 : i32 to vector<256x128xi32>
    %24 = arith.cmpi sge, %6, %23 : vector<256x128xi32>
    %25 = arith.andi %22, %24 : vector<256x128xi1>
    %c16_i32 = arith.constant 16 : i32
    %26 = vector.broadcast %c16_i32 : i32 to vector<256x128xi32>
    %27 = arith.cmpi slt, %6, %26 : vector<256x128xi32>
    %28 = arith.andi %25, %27 : vector<256x128xi1>
    %c1_i32_8 = arith.constant 1 : i32
    %29 = vector.broadcast %c1_i32_8 : i32 to vector<256x128xi32>
    %30 = arith.cmpi sge, %4, %29 : vector<256x128xi32>
    %c17_i32_9 = arith.constant 17 : i32
    %31 = vector.broadcast %c17_i32_9 : i32 to vector<256x128xi32>
    %32 = arith.cmpi slt, %4, %31 : vector<256x128xi32>
    %33 = arith.andi %30, %32 : vector<256x128xi1>
    %c-1_i32 = arith.constant -1 : i32
    %34 = vector.broadcast %c-1_i32 : i32 to vector<256x128xi32>
    %35 = arith.cmpi sge, %6, %34 : vector<256x128xi32>
    %36 = arith.andi %33, %35 : vector<256x128xi1>
    %c15_i32 = arith.constant 15 : i32
    %37 = vector.broadcast %c15_i32 : i32 to vector<256x128xi32>
    %38 = arith.cmpi slt, %6, %37 : vector<256x128xi32>
    %39 = arith.andi %36, %38 : vector<256x128xi1>
    %c0_i32_10 = arith.constant 0 : i32
    %40 = vector.broadcast %c0_i32_10 : i32 to vector<256x128xi32>
    %41 = arith.cmpi sge, %4, %40 : vector<256x128xi32>
    %c16_i32_11 = arith.constant 16 : i32
    %42 = vector.broadcast %c16_i32_11 : i32 to vector<256x128xi32>
    %43 = arith.cmpi slt, %4, %42 : vector<256x128xi32>
    %44 = arith.andi %41, %43 : vector<256x128xi1>
    %c1_i32_12 = arith.constant 1 : i32
    %45 = vector.broadcast %c1_i32_12 : i32 to vector<256x128xi32>
    %46 = arith.cmpi sge, %6, %45 : vector<256x128xi32>
    %47 = arith.andi %44, %46 : vector<256x128xi1>
    %c17_i32_13 = arith.constant 17 : i32
    %48 = vector.broadcast %c17_i32_13 : i32 to vector<256x128xi32>
    %49 = arith.cmpi slt, %6, %48 : vector<256x128xi32>
    %50 = arith.andi %47, %49 : vector<256x128xi1>
    %c0_i32_14 = arith.constant 0 : i32
    %51 = vector.broadcast %c0_i32_14 : i32 to vector<256x128xi32>
    %52 = arith.cmpi sge, %4, %51 : vector<256x128xi32>
    %c16_i32_15 = arith.constant 16 : i32
    %53 = vector.broadcast %c16_i32_15 : i32 to vector<256x128xi32>
    %54 = arith.cmpi slt, %4, %53 : vector<256x128xi32>
    %55 = arith.andi %52, %54 : vector<256x128xi1>
    %c0_i32_16 = arith.constant 0 : i32
    %56 = vector.broadcast %c0_i32_16 : i32 to vector<256x128xi32>
    %57 = arith.cmpi sge, %6, %56 : vector<256x128xi32>
    %58 = arith.andi %55, %57 : vector<256x128xi1>
    %c16_i32_17 = arith.constant 16 : i32
    %59 = vector.broadcast %c16_i32_17 : i32 to vector<256x128xi32>
    %60 = arith.cmpi slt, %6, %59 : vector<256x128xi32>
    %61 = arith.andi %58, %60 : vector<256x128xi1>
    %c0_i32_18 = arith.constant 0 : i32
    %62 = vector.broadcast %c0_i32_18 : i32 to vector<256x128xi32>
    %63 = arith.cmpi sge, %4, %62 : vector<256x128xi32>
    %c16_i32_19 = arith.constant 16 : i32
    %64 = vector.broadcast %c16_i32_19 : i32 to vector<256x128xi32>
    %65 = arith.cmpi slt, %4, %64 : vector<256x128xi32>
    %66 = arith.andi %63, %65 : vector<256x128xi1>
    %c-1_i32_20 = arith.constant -1 : i32
    %67 = vector.broadcast %c-1_i32_20 : i32 to vector<256x128xi32>
    %68 = arith.cmpi sge, %6, %67 : vector<256x128xi32>
    %69 = arith.andi %66, %68 : vector<256x128xi1>
    %c15_i32_21 = arith.constant 15 : i32
    %70 = vector.broadcast %c15_i32_21 : i32 to vector<256x128xi32>
    %71 = arith.cmpi slt, %6, %70 : vector<256x128xi32>
    %72 = arith.andi %69, %71 : vector<256x128xi1>
    %c-1_i32_22 = arith.constant -1 : i32
    %73 = vector.broadcast %c-1_i32_22 : i32 to vector<256x128xi32>
    %74 = arith.cmpi sge, %4, %73 : vector<256x128xi32>
    %c15_i32_23 = arith.constant 15 : i32
    %75 = vector.broadcast %c15_i32_23 : i32 to vector<256x128xi32>
    %76 = arith.cmpi slt, %4, %75 : vector<256x128xi32>
    %77 = arith.andi %74, %76 : vector<256x128xi1>
    %c1_i32_24 = arith.constant 1 : i32
    %78 = vector.broadcast %c1_i32_24 : i32 to vector<256x128xi32>
    %79 = arith.cmpi sge, %6, %78 : vector<256x128xi32>
    %80 = arith.andi %77, %79 : vector<256x128xi1>
    %c17_i32_25 = arith.constant 17 : i32
    %81 = vector.broadcast %c17_i32_25 : i32 to vector<256x128xi32>
    %82 = arith.cmpi slt, %6, %81 : vector<256x128xi32>
    %83 = arith.andi %80, %82 : vector<256x128xi1>
    %c-1_i32_26 = arith.constant -1 : i32
    %84 = vector.broadcast %c-1_i32_26 : i32 to vector<256x128xi32>
    %85 = arith.cmpi sge, %4, %84 : vector<256x128xi32>
    %c15_i32_27 = arith.constant 15 : i32
    %86 = vector.broadcast %c15_i32_27 : i32 to vector<256x128xi32>
    %87 = arith.cmpi slt, %4, %86 : vector<256x128xi32>
    %88 = arith.andi %85, %87 : vector<256x128xi1>
    %c0_i32_28 = arith.constant 0 : i32
    %89 = vector.broadcast %c0_i32_28 : i32 to vector<256x128xi32>
    %90 = arith.cmpi sge, %6, %89 : vector<256x128xi32>
    %91 = arith.andi %88, %90 : vector<256x128xi1>
    %c16_i32_29 = arith.constant 16 : i32
    %92 = vector.broadcast %c16_i32_29 : i32 to vector<256x128xi32>
    %93 = arith.cmpi slt, %6, %92 : vector<256x128xi32>
    %94 = arith.andi %91, %93 : vector<256x128xi1>
    %c-1_i32_30 = arith.constant -1 : i32
    %95 = vector.broadcast %c-1_i32_30 : i32 to vector<256x128xi32>
    %96 = arith.cmpi sge, %4, %95 : vector<256x128xi32>
    %c15_i32_31 = arith.constant 15 : i32
    %97 = vector.broadcast %c15_i32_31 : i32 to vector<256x128xi32>
    %98 = arith.cmpi slt, %4, %97 : vector<256x128xi32>
    %99 = arith.andi %96, %98 : vector<256x128xi1>
    %c-1_i32_32 = arith.constant -1 : i32
    %100 = vector.broadcast %c-1_i32_32 : i32 to vector<256x128xi32>
    %101 = arith.cmpi sge, %6, %100 : vector<256x128xi32>
    %102 = arith.andi %99, %101 : vector<256x128xi1>
    %c15_i32_33 = arith.constant 15 : i32
    %103 = vector.broadcast %c15_i32_33 : i32 to vector<256x128xi32>
    %104 = arith.cmpi slt, %6, %103 : vector<256x128xi32>
    %105 = arith.andi %102, %104 : vector<256x128xi1>
    %c17_i32_34 = arith.constant 17 : i32
    %106 = tpu.dynamic_rotate %1 by %c17_i32_34 dim 0 : vector<256x128xf32>, i32 -> vector<256x128xf32>
    %cst = arith.constant 0.000000e+00 : f32
    %107 = vector.broadcast %cst : f32 to vector<256x128xf32>
    %108 = arith.select %17, %106, %107 : vector<256x128xi1>, vector<256x128xf32>
    %c16_i32_35 = arith.constant 16 : i32
    %109 = tpu.dynamic_rotate %1 by %c16_i32_35 dim 0 : vector<256x128xf32>, i32 -> vector<256x128xf32>
    %cst_36 = arith.constant 0.000000e+00 : f32
    %110 = vector.broadcast %cst_36 : f32 to vector<256x128xf32>
    %111 = arith.select %28, %109, %110 : vector<256x128xi1>, vector<256x128xf32>
    %c15_i32_37 = arith.constant 15 : i32
    %112 = tpu.dynamic_rotate %1 by %c15_i32_37 dim 0 : vector<256x128xf32>, i32 -> vector<256x128xf32>
    %cst_38 = arith.constant 0.000000e+00 : f32
    %113 = vector.broadcast %cst_38 : f32 to vector<256x128xf32>
    %114 = arith.select %39, %112, %113 : vector<256x128xi1>, vector<256x128xf32>
    %c1_i32_39 = arith.constant 1 : i32
    %115 = tpu.dynamic_rotate %1 by %c1_i32_39 dim 0 : vector<256x128xf32>, i32 -> vector<256x128xf32>
    %cst_40 = arith.constant 0.000000e+00 : f32
    %116 = vector.broadcast %cst_40 : f32 to vector<256x128xf32>
    %117 = arith.select %50, %115, %116 : vector<256x128xi1>, vector<256x128xf32>
    %cst_41 = arith.constant 0.000000e+00 : f32
    %118 = vector.broadcast %cst_41 : f32 to vector<256x128xf32>
    %119 = arith.select %61, %1, %118 : vector<256x128xi1>, vector<256x128xf32>
    %c255_i32 = arith.constant 255 : i32
    %120 = tpu.dynamic_rotate %1 by %c255_i32 dim 0 : vector<256x128xf32>, i32 -> vector<256x128xf32>
    %cst_42 = arith.constant 0.000000e+00 : f32
    %121 = vector.broadcast %cst_42 : f32 to vector<256x128xf32>
    %122 = arith.select %72, %120, %121 : vector<256x128xi1>, vector<256x128xf32>
    %c241_i32 = arith.constant 241 : i32
    %123 = tpu.dynamic_rotate %1 by %c241_i32 dim 0 : vector<256x128xf32>, i32 -> vector<256x128xf32>
    %cst_43 = arith.constant 0.000000e+00 : f32
    %124 = vector.broadcast %cst_43 : f32 to vector<256x128xf32>
    %125 = arith.select %83, %123, %124 : vector<256x128xi1>, vector<256x128xf32>
    %c240_i32 = arith.constant 240 : i32
    %126 = tpu.dynamic_rotate %1 by %c240_i32 dim 0 : vector<256x128xf32>, i32 -> vector<256x128xf32>
    %cst_44 = arith.constant 0.000000e+00 : f32
    %127 = vector.broadcast %cst_44 : f32 to vector<256x128xf32>
    %128 = arith.select %94, %126, %127 : vector<256x128xi1>, vector<256x128xf32>
    %c239_i32 = arith.constant 239 : i32
    %129 = tpu.dynamic_rotate %1 by %c239_i32 dim 0 : vector<256x128xf32>, i32 -> vector<256x128xf32>
    %cst_45 = arith.constant 0.000000e+00 : f32
    %130 = vector.broadcast %cst_45 : f32 to vector<256x128xf32>
    %131 = arith.select %105, %129, %130 : vector<256x128xi1>, vector<256x128xf32>
    %132 = tpu.concatenate %108, %111, %114, %117, %119, %122, %125, %128, %131 in 1 : vector<256x128xf32>, vector<256x128xf32>, vector<256x128xf32>, vector<256x128xf32>, vector<256x128xf32>, vector<256x128xf32>, vector<256x128xf32>, vector<256x128xf32>, vector<256x128xf32> -> vector<256x1152xf32>
    %cst_46 = arith.constant dense<0.000000e+00> : vector<256x128xf32>
    %133 = tpu.matmul %132, %2, %cst_46 {dimension_numbers = #tpu.dot_dimension_numbers<[1], [0], [0], [1], [0, 0, 1, 1], [], []>} : vector<256x1152xf32>, vector<1152x128xf32>, vector<256x128xf32> -> vector<256x128xf32>
    %c0_47 = arith.constant 0 : index
    %c0_48 = arith.constant 0 : index
    %134 = vector.load %arg3[%c0_47, %c0_48] : memref<1x128xf32, #tpu.memory_space<vmem>>, vector<1x128xf32>
    %135 = vector.broadcast %134 : vector<1x128xf32> to vector<256x128xf32>
    %136 = arith.addf %133, %135 : vector<256x128xf32>
    %cst_49 = arith.constant 0.000000e+00 : f32
    %137 = vector.broadcast %cst_49 : f32 to vector<256x128xf32>
    %138 = arith.maximumf %136, %137 : vector<256x128xf32>
    %c0_50 = arith.constant 0 : index
    %c0_51 = arith.constant 0 : index
    %139 = vector.load %arg4[%c0_50, %c0_51] : memref<1152x128xf32, #tpu.memory_space<vmem>>, vector<1152x128xf32>
    %c17_i32_52 = arith.constant 17 : i32
    %140 = tpu.dynamic_rotate %138 by %c17_i32_52 dim 0 : vector<256x128xf32>, i32 -> vector<256x128xf32>
    %cst_53 = arith.constant 0.000000e+00 : f32
    %141 = vector.broadcast %cst_53 : f32 to vector<256x128xf32>
    %142 = arith.select %17, %140, %141 : vector<256x128xi1>, vector<256x128xf32>
    %c16_i32_54 = arith.constant 16 : i32
    %143 = tpu.dynamic_rotate %138 by %c16_i32_54 dim 0 : vector<256x128xf32>, i32 -> vector<256x128xf32>
    %cst_55 = arith.constant 0.000000e+00 : f32
    %144 = vector.broadcast %cst_55 : f32 to vector<256x128xf32>
    %145 = arith.select %28, %143, %144 : vector<256x128xi1>, vector<256x128xf32>
    %c15_i32_56 = arith.constant 15 : i32
    %146 = tpu.dynamic_rotate %138 by %c15_i32_56 dim 0 : vector<256x128xf32>, i32 -> vector<256x128xf32>
    %cst_57 = arith.constant 0.000000e+00 : f32
    %147 = vector.broadcast %cst_57 : f32 to vector<256x128xf32>
    %148 = arith.select %39, %146, %147 : vector<256x128xi1>, vector<256x128xf32>
    %c1_i32_58 = arith.constant 1 : i32
    %149 = tpu.dynamic_rotate %138 by %c1_i32_58 dim 0 : vector<256x128xf32>, i32 -> vector<256x128xf32>
    %cst_59 = arith.constant 0.000000e+00 : f32
    %150 = vector.broadcast %cst_59 : f32 to vector<256x128xf32>
    %151 = arith.select %50, %149, %150 : vector<256x128xi1>, vector<256x128xf32>
    %cst_60 = arith.constant 0.000000e+00 : f32
    %152 = vector.broadcast %cst_60 : f32 to vector<256x128xf32>
    %153 = arith.select %61, %138, %152 : vector<256x128xi1>, vector<256x128xf32>
    %c255_i32_61 = arith.constant 255 : i32
    %154 = tpu.dynamic_rotate %138 by %c255_i32_61 dim 0 : vector<256x128xf32>, i32 -> vector<256x128xf32>
    %cst_62 = arith.constant 0.000000e+00 : f32
    %155 = vector.broadcast %cst_62 : f32 to vector<256x128xf32>
    %156 = arith.select %72, %154, %155 : vector<256x128xi1>, vector<256x128xf32>
    %c241_i32_63 = arith.constant 241 : i32
    %157 = tpu.dynamic_rotate %138 by %c241_i32_63 dim 0 : vector<256x128xf32>, i32 -> vector<256x128xf32>
    %cst_64 = arith.constant 0.000000e+00 : f32
    %158 = vector.broadcast %cst_64 : f32 to vector<256x128xf32>
    %159 = arith.select %83, %157, %158 : vector<256x128xi1>, vector<256x128xf32>
    %c240_i32_65 = arith.constant 240 : i32
    %160 = tpu.dynamic_rotate %138 by %c240_i32_65 dim 0 : vector<256x128xf32>, i32 -> vector<256x128xf32>
    %cst_66 = arith.constant 0.000000e+00 : f32
    %161 = vector.broadcast %cst_66 : f32 to vector<256x128xf32>
    %162 = arith.select %94, %160, %161 : vector<256x128xi1>, vector<256x128xf32>
    %c239_i32_67 = arith.constant 239 : i32
    %163 = tpu.dynamic_rotate %138 by %c239_i32_67 dim 0 : vector<256x128xf32>, i32 -> vector<256x128xf32>
    %cst_68 = arith.constant 0.000000e+00 : f32
    %164 = vector.broadcast %cst_68 : f32 to vector<256x128xf32>
    %165 = arith.select %105, %163, %164 : vector<256x128xi1>, vector<256x128xf32>
    %166 = tpu.concatenate %142, %145, %148, %151, %153, %156, %159, %162, %165 in 1 : vector<256x128xf32>, vector<256x128xf32>, vector<256x128xf32>, vector<256x128xf32>, vector<256x128xf32>, vector<256x128xf32>, vector<256x128xf32>, vector<256x128xf32>, vector<256x128xf32> -> vector<256x1152xf32>
    %cst_69 = arith.constant dense<0.000000e+00> : vector<256x128xf32>
    %167 = tpu.matmul %166, %139, %cst_69 {dimension_numbers = #tpu.dot_dimension_numbers<[1], [0], [0], [1], [0, 0, 1, 1], [], []>} : vector<256x1152xf32>, vector<1152x128xf32>, vector<256x128xf32> -> vector<256x128xf32>
    %c0_70 = arith.constant 0 : index
    %c0_71 = arith.constant 0 : index
    %168 = vector.load %arg5[%c0_70, %c0_71] : memref<1x128xf32, #tpu.memory_space<vmem>>, vector<1x128xf32>
    %169 = vector.broadcast %168 : vector<1x128xf32> to vector<256x128xf32>
    %170 = arith.addf %167, %169 : vector<256x128xf32>
    %cst_72 = arith.constant 0.000000e+00 : f32
    %171 = vector.broadcast %cst_72 : f32 to vector<256x128xf32>
    %172 = arith.maximumf %170, %171 : vector<256x128xf32>
    %c0_73 = arith.constant 0 : index
    %c0_74 = arith.constant 0 : index
    %c0_75 = arith.constant 0 : index
    %173 = vector.load %arg6[%c0_73, %c0_74, %c0_75] : memref<1x256x128xf32, #tpu.memory_space<vmem>>, vector<1x256x128xf32>
    %174 = vector.shape_cast %173 : vector<1x256x128xf32> to vector<256x128xf32>
    %175 = vector.shape_cast %172 : vector<256x128xf32> to vector<1x256x128xf32>
    tpu.vector_store %arg6[%c0_73, %c0_74, %c0_75], %175 {strides = array<i32>} : memref<1x256x128xf32, #tpu.memory_space<vmem>>, vector<1x256x128xf32>,
    return
  }
  func.func @transform_0(%arg0: i32) -> (i32, i32, i32) {
    %c0_i32 = arith.constant 0 : i32
    %c0_i32_0 = arith.constant 0 : i32
    %c0_i32_1 = arith.constant 0 : i32
    return %arg0, %c0_i32, %c0_i32_0 : i32, i32, i32
  }
  func.func @transform_1(%arg0: i32) -> (i32, i32) {
    %c0_i32 = arith.constant 0 : i32
    %c0_i32_0 = arith.constant 0 : i32
    %c0_i32_1 = arith.constant 0 : i32
    return %c0_i32, %c0_i32_0 : i32, i32
  }
  func.func @transform_2(%arg0: i32) -> (i32, i32) {
    %c0_i32 = arith.constant 0 : i32
    %c0_i32_0 = arith.constant 0 : i32
    %c0_i32_1 = arith.constant 0 : i32
    return %c0_i32, %c0_i32_0 : i32, i32
  }
  func.func @transform_3(%arg0: i32) -> (i32, i32) {
    %c0_i32 = arith.constant 0 : i32
    %c0_i32_0 = arith.constant 0 : i32
    %c0_i32_1 = arith.constant 0 : i32
    return %c0_i32, %c0_i32_0 : i32, i32
  }
  func.func @transform_4(%arg0: i32) -> (i32, i32) {
    %c0_i32 = arith.constant 0 : i32
    %c0_i32_0 = arith.constant 0 : i32
    %c0_i32_1 = arith.constant 0 : i32
    return %c0_i32, %c0_i32_0 : i32, i32
  }
  func.func @transform_5(%arg0: i32) -> (i32, i32, i32) {
    %c0_i32 = arith.constant 0 : i32
    %c0_i32_0 = arith.constant 0 : i32
    %c0_i32_1 = arith.constant 0 : i32
    return %arg0, %c0_i32, %c0_i32_0 : i32, i32, i32
  }
}

</mosaic_0001>

<llo_original>
// kernel: tpu_custom_call.1
$region0: #{tpu_custom_call.1}
  #allocation0 [shape = 'u32[]', space=smem, size = 0x4, offset = 0x4, fixed_abs, tag = 'smem constant byte address 0x4 - core index']
  #allocation1 [shape = 'u32[144,128]{1,0:T(1,128)}', space=vmem, size = 0x12000, scoped, tag = 'internal scratch']
  %s0 = inlined_call_operand.hbm [shape: f32[2,256,128], index: 0, kind: input, shape index: {}]
  %s1 = inlined_call_operand.hbm [shape: f32[1152,128], index: 1, kind: input, shape index: {}]
  %s2 = inlined_call_operand.vmem [shape: f32[1,128], index: 2, kind: input, shape index: {}]
  %s3 = inlined_call_operand.hbm [shape: f32[1152,128], index: 3, kind: input, shape index: {}]
  %s4 = inlined_call_operand.vmem [shape: f32[1,128], index: 4, kind: input, shape index: {}]
  %s5 = inlined_call_operand.hbm [shape: f32[2,256,128], index: 5, kind: output, shape index: {}]
  %s6 = sld [smem:[#allocation0]]
  $region65: #{tpu_custom_call.1} parent=0
    _
  %s8 = ssub.s32 1, %s6
  %s9 = scalar_select 0, %s8, %s6
  $region1: #{tpu_custom_call.1} parent=0
    #allocation2 [shape = 'u8[262144]{0}', space=vmem, size = 0x40000, scoped, tag = 'input window, operand 0']
    #allocation3 [shape = 's32[2]{0}', space=sflag, size = 0x8, scoped, tag = 'scoped memory for tpu_custom_call.1']
    #allocation4 [shape = 's32[2]{0}', space=sflag, size = 0x8, scoped, tag = 'scoped memory for tpu_custom_call.1']
    #allocation5 [shape = 'u8[589824]{0}', space=vmem, size = 0x90000, scoped, tag = 'input window, operand 1, single buffered']
    #allocation6 [shape = 's32[1]{0}', space=sflag, size = 0x4, scoped, tag = 'scoped memory for tpu_custom_call.1']
    #allocation7 [shape = 'u8[589824]{0}', space=vmem, size = 0x90000, scoped, tag = 'input window, operand 3, single buffered']
    #allocation8 [shape = 'u8[262144]{0}', space=vmem, size = 0x40000, scoped, tag = 'output window, operand 0']
    %10 = vsyncpa [#allocation3], 0
    %s11 = scalar_lea.sflag [#allocation3], 1
    %12 = vsyncpa %s11, 0
    %13 = vsyncpa [#allocation6], 0
    %14 = vsyncpa [#allocation4], 0
    %s15 = scalar_lea.sflag [#allocation4], 1
    %16 = vsyncpa %s15, 0
    loop: start=0, step=1, limit=4
    $region2: #{tpu_custom_call.1} parent=1 // loop_pre_header
      _
    $region3: #{tpu_custom_call.1} parent=1 // loop_header
      %s18 = sphi 0, %s22
      %p19 = scmp.ge.s32.totalorder %s18, 4
      %s28 = sphi 0, %s30
      %s31 = sphi 0, %s28
      %s32 = sphi 0, %s31
      %s48 = sphi 0, %s32
      %s52 = sphi 0, %s52
      %s54 = sphi 0, %s52
      %s55 = sphi 0, %s54
      %s69 = sphi 0, %s55
      %s73 = sphi 0, %s73
      %s75 = sphi 0, %s73
      %s76 = sphi 0, %s75
      %s90 = sphi 0, %s76
      %s94 = sphi 0, %s94
      %s96 = sphi 0, %s94
      %s97 = sphi 0, %s96
      %s111 = sphi 0, %s97
      %s115 = sphi 0, %s115
      %s117 = sphi 0, %s115
      %s118 = sphi 0, %s117
      %s132 = sphi 0, %s118
      %s138 = sphi 0, %s140
      %s141 = sphi 0, %s138
      %s142 = sphi 0, %s141
      %s158 = sphi 0, %s142
    $region4: #{tpu_custom_call.1} parent=1 // loop_header_branch
      %21 = sbr.rel (%p19) target = $region8
    $region5: #{tpu_custom_call.1} parent=1 // loop_body
      %s23 = ssub.s32 %s18, 1
      %s24 = ssub.s32 %s18, 2
      %s25 = sadd.s32 %s18, 1
      %s26 = ssub.s32 %s18, %s25
      %p27 = scmp.eq.s32.totalorder %s26, 0
      %s29 = sadd.s32 %s28, 1
      %s30 = scalar_select %p27, %s28, %s29
      %p33 = pneg %p27
      %p34 = scmp.eq.s32.totalorder %s18, 1
      %p35 = por %p33, %p34
      %p36 = scmp.ne.s32.totalorder %s28, %s31
      %p37 = scmp.eq.s32.totalorder %s18, 0
      %p38 = por %p36, %p37
      %p39 = scmp.ne.s32.totalorder %s28, %s31
      %p40 = scmp.eq.s32.totalorder %s23, 1
      %p41 = por %p39, %p40
      %p42 = scmp.ne.s32.totalorder %s31, %s32
      %p43 = scmp.eq.s32.totalorder %s23, 0
      %p44 = por %p42, %p43
      %p45 = scmp.ne.s32.totalorder %s31, %s32
      %p46 = scmp.eq.s32.totalorder %s24, 1
      %p47 = por %p45, %p46
      %p49 = scmp.ne.s32.totalorder %s32, %s48
      %p50 = scmp.eq.s32.totalorder %s24, 0
      %p51 = por %p49, %p50
      %s53 = sadd.s32 %s52, 1
      %p56 = scmp.eq.s32.totalorder %s18, 1
      %p57 = scmp.ne.s32.totalorder %s52, %s54
      %p58 = scmp.eq.s32.totalorder %s18, 0
      %p59 = por %p57, %p58
      %p60 = scmp.ne.s32.totalorder %s52, %s54
      %p61 = scmp.eq.s32.totalorder %s23, 1
      %p62 = por %p60, %p61
      %p63 = scmp.ne.s32.totalorder %s54, %s55
      %p64 = scmp.eq.s32.totalorder %s23, 0
      %p65 = por %p63, %p64
      %p66 = scmp.ne.s32.totalorder %s54, %s55
      %p67 = scmp.eq.s32.totalorder %s24, 1
      %p68 = por %p66, %p67
      %p70 = scmp.ne.s32.totalorder %s55, %s69
      %p71 = scmp.eq.s32.totalorder %s24, 0
      %p72 = por %p70, %p71
      %s74 = sadd.s32 %s73, 1
      %p77 = scmp.eq.s32.totalorder %s18, 1
      %p78 = scmp.ne.s32.totalorder %s73, %s75
      %p79 = scmp.eq.s32.totalorder %s18, 0
      %p80 = por %p78, %p79
      %p81 = scmp.ne.s32.totalorder %s73, %s75
      %p82 = scmp.eq.s32.totalorder %s23, 1
      %p83 = por %p81, %p82
      %p84 = scmp.ne.s32.totalorder %s75, %s76
      %p85 = scmp.eq.s32.totalorder %s23, 0
      %p86 = por %p84, %p85
      %p87 = scmp.ne.s32.totalorder %s75, %s76
      %p88 = scmp.eq.s32.totalorder %s24, 1
      %p89 = por %p87, %p88
      %p91 = scmp.ne.s32.totalorder %s76, %s90
      %p92 = scmp.eq.s32.totalorder %s24, 0
      %p93 = por %p91, %p92
      %s95 = sadd.s32 %s94, 1
      %p98 = scmp.eq.s32.totalorder %s18, 1
      %p99 = scmp.ne.s32.totalorder %s94, %s96
      %p100 = scmp.eq.s32.totalorder %s18, 0
      %p101 = por %p99, %p100
      %p102 = scmp.ne.s32.totalorder %s94, %s96
      %p103 = scmp.eq.s32.totalorder %s23, 1
      %p104 = por %p102, %p103
      %p105 = scmp.ne.s32.totalorder %s96, %s97
      %p106 = scmp.eq.s32.totalorder %s23, 0
      %p107 = por %p105, %p106
      %p108 = scmp.ne.s32.totalorder %s96, %s97
      %p109 = scmp.eq.s32.totalorder %s24, 1
      %p110 = por %p108, %p109
      %p112 = scmp.ne.s32.totalorder %s97, %s111
      %p113 = scmp.eq.s32.totalorder %s24, 0
      %p114 = por %p112, %p113
      %s116 = sadd.s32 %s115, 1
      %p119 = scmp.eq.s32.totalorder %s18, 1
      %p120 = scmp.ne.s32.totalorder %s115, %s117
      %p121 = scmp.eq.s32.totalorder %s18, 0
      %p122 = por %p120, %p121
      %p123 = scmp.ne.s32.totalorder %s115, %s117
      %p124 = scmp.eq.s32.totalorder %s23, 1
      %p125 = por %p123, %p124
      %p126 = scmp.ne.s32.totalorder %s117, %s118
      %p127 = scmp.eq.s32.totalorder %s23, 0
      %p128 = por %p126, %p127
      %p129 = scmp.ne.s32.totalorder %s117, %s118
      %p130 = scmp.eq.s32.totalorder %s24, 1
      %p131 = por %p129, %p130
      %p133 = scmp.ne.s32.totalorder %s118, %s132
      %p134 = scmp.eq.s32.totalorder %s24, 0
      %p135 = por %p133, %p134
      %s136 = ssub.s32 %s18, %s25
      %p137 = scmp.eq.s32.totalorder %s136, 0
      %s139 = sadd.s32 %s138, 1
      %s140 = scalar_select %p137, %s138, %s139
      %p143 = pneg %p137
      %p144 = scmp.eq.s32.totalorder %s18, 1
      %p145 = por %p143, %p144
      %p146 = scmp.ne.s32.totalorder %s138, %s141
      %p147 = scmp.eq.s32.totalorder %s18, 0
      %p148 = por %p146, %p147
      %p149 = scmp.ne.s32.totalorder %s138, %s141
      %p150 = scmp.eq.s32.totalorder %s23, 1
      %p151 = por %p149, %p150
      %p152 = scmp.ne.s32.totalorder %s141, %s142
      %p153 = scmp.eq.s32.totalorder %s23, 0
      %p154 = por %p152, %p153
      %p155 = scmp.ne.s32.totalorder %s141, %s142
      %p156 = scmp.eq.s32.totalorder %s24, 1
      %p157 = por %p155, %p156
      %p159 = scmp.ne.s32.totalorder %s142, %s158
      %p160 = scmp.eq.s32.totalorder %s24, 0
      %p161 = por %p159, %p160
      %p162 = scmp.le.s32.totalorder 1, %s18
      %p163 = scmp.lt.s32.totalorder %s18, 3
      %p164 = pnand %p162, %p163
      %p165 = pneg %p164
      // Predicated region
      $region9: #{tpu_custom_call.1} parent=5 // pred_check
        _
      $region10: #{tpu_custom_call.1} parent=5 // pred_check_branch
        %167 = sbr.rel (%p164) target = $region12
      $region11: #{tpu_custom_call.1} parent=5 // pred_region
        %s168 = ssub.s32 %s18, 1
        // Predicated region
        $region13: #{tpu_custom_call.1} parent=11 // pred_check
          %p169 = pneg %p65
        $region14: #{tpu_custom_call.1} parent=11 // pred_check_branch
          %171 = sbr.rel (%p169) target = $region16
        $region15: #{tpu_custom_call.1} parent=11 // pred_region
          %s173 = ssub.s32 18432, 18432
          %174 = vsyncadd [#allocation6], %s173
          %s175 = sshll.u32 [#allocation5], 4
          %s176 = int_to_ptr.vmem [resolvable:$true] %s175
          %181 = dma.hbm_to_vmem [thread:$0]  %s1, 18432, %s176, [#allocation6], 128, 128, 8
        $region16: #{tpu_custom_call.1} parent=11 // pred_fallthru
          _
        // Predicated region
        $region17: #{tpu_custom_call.1} parent=11 // pred_check
          %p182 = pneg %p86
        $region18: #{tpu_custom_call.1} parent=11 // pred_check_branch
          %184 = sbr.rel (%p182) target = $region20
        $region19: #{tpu_custom_call.1} parent=11 // pred_region
          _
        $region20: #{tpu_custom_call.1} parent=11 // pred_fallthru
          _
        // Predicated region
        $region21: #{tpu_custom_call.1} parent=11 // pred_check
          %p185 = pneg %p107
        $region22: #{tpu_custom_call.1} parent=11 // pred_check_branch
          %187 = sbr.rel (%p185) target = $region24
        $region23: #{tpu_custom_call.1} parent=11 // pred_region
          %s189 = ssub.s32 18432, 18432
          %190 = vsyncadd [#allocation6], %s189
          %s191 = sshll.u32 [#allocation7], 4
          %s192 = int_to_ptr.vmem [resolvable:$true] %s191
          %197 = dma.hbm_to_vmem [thread:$0]  %s3, 18432, %s192, [#allocation6], 128, 128, 8
        $region24: #{tpu_custom_call.1} parent=11 // pred_fallthru
          _
        // Predicated region
        $region25: #{tpu_custom_call.1} parent=11 // pred_check
          %p198 = pneg %p128
        $region26: #{tpu_custom_call.1} parent=11 // pred_check_branch
          %200 = sbr.rel (%p198) target = $region28
        $region27: #{tpu_custom_call.1} parent=11 // pred_region
          _
        $region28: #{tpu_custom_call.1} parent=11 // pred_fallthru
          _
      $region12: #{tpu_custom_call.1} parent=5 // pred_fallthru
        _
      %p201 = scmp.lt.s32.totalorder %s18, 2
      // Predicated region
      $region29: #{tpu_custom_call.1} parent=5 // pred_check
        %p202 = pneg %p201
      $region30: #{tpu_custom_call.1} parent=5 // pred_check_branch
        %204 = sbr.rel (%p202) target = $region32
      $region31: #{tpu_custom_call.1} parent=5 // pred_region
        // Predicated region
        $region33: #{tpu_custom_call.1} parent=31 // pred_check
          %p205 = pneg %p38
        $region34: #{tpu_custom_call.1} parent=31 // pred_check_branch
          %207 = sbr.rel (%p205) target = $region36
        $region35: #{tpu_custom_call.1} parent=31 // pred_region
          %s208 = sand.u32 %s28, 1
          %s209 = scalar_lea.sflag [#allocation3], %s208
          %s210 = sand.u32 %s28, 1
          %s211 = smul.addr %s210, 256
          %s212 = scalar_lea.vmem [#allocation2], %s211
          %s214 = ssub.s32 4096, 4096
          %215 = vsyncadd %s209, %s214
          %s216 = smul.addr %s18, 32
          %s217 = smul.addr %s216, 128
          %s218 = scalar_lea.hbm %s0, %s217
          %s219 = sshll.u32 %s212, 4
          %s220 = int_to_ptr.vmem [resolvable:$true] %s219
          %225 = dma.hbm_to_vmem [thread:$0]  %s218, 4096, %s220, %s209, 128, 128, 8
        $region36: #{tpu_custom_call.1} parent=31 // pred_fallthru
          _
      $region32: #{tpu_custom_call.1} parent=5 // pred_fallthru
        _
      %p226 = scmp.le.s32.totalorder 1, %s18
      %p227 = scmp.lt.s32.totalorder %s18, 3
      %p228 = pnand %p226, %p227
      %p229 = pneg %p228
      // Predicated region
      $region37: #{tpu_custom_call.1} parent=5 // pred_check
        _
      $region38: #{tpu_custom_call.1} parent=5 // pred_check_branch
        %231 = sbr.rel (%p228) target = $region40
      $region39: #{tpu_custom_call.1} parent=5 // pred_region
        %s232 = ssub.s32 %s18, 1
        %s233 = sand.u32 %s31, 1
        %s234 = scalar_lea.sflag [#allocation3], %s233
        %s235 = sand.u32 %s31, 1
        %s236 = smul.addr %s235, 256
        %s237 = scalar_lea.vmem [#allocation2], %s236
        // Predicated region
        $region41: #{tpu_custom_call.1} parent=39 // pred_check
          %p238 = pneg %p44
        $region42: #{tpu_custom_call.1} parent=39 // pred_check_branch
          %240 = sbr.rel (%p238) target = $region44
        $region43: #{tpu_custom_call.1} parent=39 // pred_region
          %241 = dma.done %s234, 4096
        $region44: #{tpu_custom_call.1} parent=39 // pred_fallthru
          _
        // Predicated region
        $region45: #{tpu_custom_call.1} parent=39 // pred_check
          %p242 = pneg %p65
        $region46: #{tpu_custom_call.1} parent=39 // pred_check_branch
          %244 = sbr.rel (%p242) target = $region48
        $region47: #{tpu_custom_call.1} parent=39 // pred_region
          %245 = dma.done [#allocation6], 18432
        $region48: #{tpu_custom_call.1} parent=39 // pred_fallthru
          _
        // Predicated region
        $region49: #{tpu_custom_call.1} parent=39 // pred_check
          %p246 = pneg %p107
        $region50: #{tpu_custom_call.1} parent=39 // pred_check_branch
          %248 = sbr.rel (%p246) target = $region52
        $region51: #{tpu_custom_call.1} parent=39 // pred_region
          %249 = dma.done [#allocation6], 18432
        $region52: #{tpu_custom_call.1} parent=39 // pred_fallthru
          _
        %s250 = sand.u32 %s31, 1
        %s251 = scalar_lea.sflag [#allocation3], %s250
        %s252 = sand.u32 %s31, 1
        %s253 = smul.addr %s252, 256
        %s254 = scalar_lea.vmem [#allocation2], %s253
        %p255 = pneg %p44
        %p256 = pneg %p41
        %p257 = pneg %p65
        %p258 = pneg %p62
        %p259 = pneg %p86
        %p260 = pneg %p83
        %p261 = pneg %p107
        %p262 = pneg %p104
        %p263 = pneg %p128
        %p264 = pneg %p125
        %p265 = pneg %p154
        %p266 = pneg %p151
        %s267 = sand.u32 %s141, 1
        %s268 = scalar_lea.sflag [#allocation4], %s267
        %s269 = sand.u32 %s141, 1
        %s270 = smul.addr %s269, 256
        %s271 = scalar_lea.vmem [#allocation8], %s270
        %v272 = vld [vmem:[%s237] sm:$0xff]
        %v273 = vld [vmem:[%s237 + $0x8] sm:$0xff]
        %v274 = vld [vmem:[%s237 + $0x10] sm:$0xff]
        %v275 = vld [vmem:[%s237 + $0x18] sm:$0xff]
        %v276 = vld [vmem:[%s237 + $0x20] sm:$0xff]
        %v277 = vld [vmem:[%s237 + $0x28] sm:$0xff]
        %v278 = vld [vmem:[%s237 + $0x30] sm:$0xff]
        %v279 = vld [vmem:[%s237 + $0x38] sm:$0xff]
        %v280 = vld [vmem:[%s237 + $0x40] sm:$0xff]
        %v281 = vld [vmem:[%s237 + $0x48] sm:$0xff]
        %v282 = vld [vmem:[%s237 + $0x50] sm:$0xff]
        %v283 = vld [vmem:[%s237 + $0x58] sm:$0xff]
        %v284 = vld [vmem:[%s237 + $0x60] sm:$0xff]
        %v285 = vld [vmem:[%s237 + $0x68] sm:$0xff]
        %v286 = vld [vmem:[%s237 + $0x70] sm:$0xff]
        %v287 = vld [vmem:[%s237 + $0x78] sm:$0xff]
        %v288 = vld [vmem:[%s237 + $0x80] sm:$0xff]
        %v289 = vld [vmem:[%s237 + $0x88] sm:$0xff]
        %v290 = vld [vmem:[%s237 + $0x90] sm:$0xff]
        %v291 = vld [vmem:[%s237 + $0x98] sm:$0xff]
        %v292 = vld [vmem:[%s237 + $0xa0] sm:$0xff]
        %v293 = vld [vmem:[%s237 + $0xa8] sm:$0xff]
        %v294 = vld [vmem:[%s237 + $0xb0] sm:$0xff]
        %v295 = vld [vmem:[%s237 + $0xb8] sm:$0xff]
        %v296 = vld [vmem:[%s237 + $0xc0] sm:$0xff]
        %v297 = vld [vmem:[%s237 + $0xc8] sm:$0xff]
        %v298 = vld [vmem:[%s237 + $0xd0] sm:$0xff]
        %v299 = vld [vmem:[%s237 + $0xd8] sm:$0xff]
        %v300 = vld [vmem:[%s237 + $0xe0] sm:$0xff]
        %v301 = vld [vmem:[%s237 + $0xe8] sm:$0xff]
        %v302 = vld [vmem:[%s237 + $0xf0] sm:$0xff]
        %v303 = vld [vmem:[%s237 + $0xf8] sm:$0xff]
        %v304 = vld [vmem:[#allocation5] sm:$0xff]
        %v305 = vld [vmem:[#allocation5 + $0x8] sm:$0xff]
        %v306 = vld [vmem:[#allocation5 + $0x10] sm:$0xff]
        %v307 = vld [vmem:[#allocation5 + $0x18] sm:$0xff]
        %v308 = vld [vmem:[#allocation5 + $0x20] sm:$0xff]
        %v309 = vld [vmem:[#allocation5 + $0x28] sm:$0xff]
        %v310 = vld [vmem:[#allocation5 + $0x30] sm:$0xff]
        %v311 = vld [vmem:[#allocation5 + $0x38] sm:$0xff]
        %v312 = vld [vmem:[#allocation5 + $0x40] sm:$0xff]
        %v313 = vld [vmem:[#allocation5 + $0x48] sm:$0xff]
        %v314 = vld [vmem:[#allocation5 + $0x50] sm:$0xff]
        %v315 = vld [vmem:[#allocation5 + $0x58] sm:$0xff]
        %v316 = vld [vmem:[#allocation5 + $0x60] sm:$0xff]
        %v317 = vld [vmem:[#allocation5 + $0x68] sm:$0xff]
        %v318 = vld [vmem:[#allocation5 + $0x70] sm:$0xff]
        %v319 = vld [vmem:[#allocation5 + $0x78] sm:$0xff]
        %v320 = vld [vmem:[#allocation5 + $0x80] sm:$0xff]
        %v321 = vld [vmem:[#allocation5 + $0x88] sm:$0xff]
        %v322 = vld [vmem:[#allocation5 + $0x90] sm:$0xff]
        %v323 = vld [vmem:[#allocation5 + $0x98] sm:$0xff]
        %v324 = vld [vmem:[#allocation5 + $0xa0] sm:$0xff]
        %v325 = vld [vmem:[#allocation5 + $0xa8] sm:$0xff]
        %v326 = vld [vmem:[#allocation5 + $0xb0] sm:$0xff]
        %v327 = vld [vmem:[#allocation5 + $0xb8] sm:$0xff]
        %v328 = vld [vmem:[#allocation5 + $0xc0] sm:$0xff]
        %v329 = vld [vmem:[#allocation5 + $0xc8] sm:$0xff]
        %v330 = vld [vmem:[#allocation5 + $0xd0] sm:$0xff]
        %v331 = vld [vmem:[#allocation5 + $0xd8] sm:$0xff]
        %v332 = vld [vmem:[#allocation5 + $0xe0] sm:$0xff]
        %v333 = vld [vmem:[#allocation5 + $0xe8] sm:$0xff]
        %v334 = vld [vmem:[#allocation5 + $0xf0] sm:$0xff]
        %v335 = vld [vmem:[#allocation5 + $0xf8] sm:$0xff]
        %v336 = vld [vmem:[#allocation5 + $0x100] sm:$0xff]
        %v337 = vld [vmem:[#allocation5 + $0x108] sm:$0xff]
        %v338 = vld [vmem:[#allocation5 + $0x110] sm:$0xff]
        %v339 = vld [vmem:[#allocation5 + $0x118] sm:$0xff]
        %v340 = vld [vmem:[#allocation5 + $0x120] sm:$0xff]
        %v341 = vld [vmem:[#allocation5 + $0x128] sm:$0xff]
        %v342 = vld [vmem:[#allocation5 + $0x130] sm:$0xff]
        %v343 = vld [vmem:[#allocation5 + $0x138] sm:$0xff]
        %v344 = vld [vmem:[#allocation5 + $0x140] sm:$0xff]
        %v345 = vld [vmem:[#allocation5 + $0x148] sm:$0xff]
        %v346 = vld [vmem:[#allocation5 + $0x150] sm:$0xff]
        %v347 = vld [vmem:[#allocation5 + $0x158] sm:$0xff]
        %v348 = vld [vmem:[#allocation5 + $0x160] sm:$0xff]
        %v349 = vld [vmem:[#allocation5 + $0x168] sm:$0xff]
        %v350 = vld [vmem:[#allocation5 + $0x170] sm:$0xff]
        %v351 = vld [vmem:[#allocation5 + $0x178] sm:$0xff]
        %v352 = vld [vmem:[#allocation5 + $0x180] sm:$0xff]
        %v353 = vld [vmem:[#allocation5 + $0x188] sm:$0xff]
        %v354 = vld [vmem:[#allocation5 + $0x190] sm:$0xff]
        %v355 = vld [vmem:[#allocation5 + $0x198] sm:$0xff]
        %v356 = vld [vmem:[#allocation5 + $0x1a0] sm:$0xff]
        %v357 = vld [vmem:[#allocation5 + $0x1a8] sm:$0xff]
        %v358 = vld [vmem:[#allocation5 + $0x1b0] sm:$0xff]
        %v359 = vld [vmem:[#allocation5 + $0x1b8] sm:$0xff]
        %v360 = vld [vmem:[#allocation5 + $0x1c0] sm:$0xff]
        %v361 = vld [vmem:[#allocation5 + $0x1c8] sm:$0xff]
        %v362 = vld [vmem:[#allocation5 + $0x1d0] sm:$0xff]
        %v363 = vld [vmem:[#allocation5 + $0x1d8] sm:$0xff]
        %v364 = vld [vmem:[#allocation5 + $0x1e0] sm:$0xff]
        %v365 = vld [vmem:[#allocation5 + $0x1e8] sm:$0xff]
        %v366 = vld [vmem:[#allocation5 + $0x1f0] sm:$0xff]
        %v367 = vld [vmem:[#allocation5 + $0x1f8] sm:$0xff]
        %v368 = vld [vmem:[#allocation5 + $0x200] sm:$0xff]
        %v369 = vld [vmem:[#allocation5 + $0x208] sm:$0xff]
        %v370 = vld [vmem:[#allocation5 + $0x210] sm:$0xff]
        %v371 = vld [vmem:[#allocation5 + $0x218] sm:$0xff]
        %v372 = vld [vmem:[#allocation5 + $0x220] sm:$0xff]
        %v373 = vld [vmem:[#allocation5 + $0x228] sm:$0xff]
        %v374 = vld [vmem:[#allocation5 + $0x230] sm:$0xff]
        %v375 = vld [vmem:[#allocation5 + $0x238] sm:$0xff]
        %v376 = vld [vmem:[#allocation5 + $0x240] sm:$0xff]
        %v377 = vld [vmem:[#allocation5 + $0x248] sm:$0xff]
        %v378 = vld [vmem:[#allocation5 + $0x250] sm:$0xff]
        %v379 = vld [vmem:[#allocation5 + $0x258] sm:$0xff]
        %v380 = vld [vmem:[#allocation5 + $0x260] sm:$0xff]
        %v381 = vld [vmem:[#allocation5 + $0x268] sm:$0xff]
        %v382 = vld [vmem:[#allocation5 + $0x270] sm:$0xff]
        %v383 = vld [vmem:[#allocation5 + $0x278] sm:$0xff]
        %v384 = vld [vmem:[#allocation5 + $0x280] sm:$0xff]
        %v385 = vld [vmem:[#allocation5 + $0x288] sm:$0xff]
        %v386 = vld [vmem:[#allocation5 + $0x290] sm:$0xff]
        %v387 = vld [vmem:[#allocation5 + $0x298] sm:$0xff]
        %v388 = vld [vmem:[#allocation5 + $0x2a0] sm:$0xff]
        %v389 = vld [vmem:[#allocation5 + $0x2a8] sm:$0xff]
        %v390 = vld [vmem:[#allocation5 + $0x2b0] sm:$0xff]
        %v391 = vld [vmem:[#allocation5 + $0x2b8] sm:$0xff]
        %v392 = vld [vmem:[#allocation5 + $0x2c0] sm:$0xff]
        %v393 = vld [vmem:[#allocation5 + $0x2c8] sm:$0xff]
        %v394 = vld [vmem:[#allocation5 + $0x2d0] sm:$0xff]
        %v395 = vld [vmem:[#allocation5 + $0x2d8] sm:$0xff]
        %v396 = vld [vmem:[#allocation5 + $0x2e0] sm:$0xff]
        %v397 = vld [vmem:[#allocation5 + $0x2e8] sm:$0xff]
        %v398 = vld [vmem:[#allocation5 + $0x2f0] sm:$0xff]
        %v399 = vld [vmem:[#allocation5 + $0x2f8] sm:$0xff]
        %v400 = vld [vmem:[#allocation5 + $0x300] sm:$0xff]
        %v401 = vld [vmem:[#allocation5 + $0x308] sm:$0xff]
        %v402 = vld [vmem:[#allocation5 + $0x310] sm:$0xff]
        %v403 = vld [vmem:[#allocation5 + $0x318] sm:$0xff]
        %v404 = vld [vmem:[#allocation5 + $0x320] sm:$0xff]
        %v405 = vld [vmem:[#allocation5 + $0x328] sm:$0xff]
        %v406 = vld [vmem:[#allocation5 + $0x330] sm:$0xff]
        %v407 = vld [vmem:[#allocation5 + $0x338] sm:$0xff]
        %v408 = vld [vmem:[#allocation5 + $0x340] sm:$0xff]
        %v409 = vld [vmem:[#allocation5 + $0x348] sm:$0xff]
        %v410 = vld [vmem:[#allocation5 + $0x350] sm:$0xff]
        %v411 = vld [vmem:[#allocation5 + $0x358] sm:$0xff]
        %v412 = vld [vmem:[#allocation5 + $0x360] sm:$0xff]
        %v413 = vld [vmem:[#allocation5 + $0x368] sm:$0xff]
        %v414 = vld [vmem:[#allocation5 + $0x370] sm:$0xff]
        %v415 = vld [vmem:[#allocation5 + $0x378] sm:$0xff]
        %v416 = vld [vmem:[#allocation5 + $0x380] sm:$0xff]
        %v417 = vld [vmem:[#allocation5 + $0x388] sm:$0xff]
        %v418 = vld [vmem:[#allocation5 + $0x390] sm:$0xff]
        %v419 = vld [vmem:[#allocation5 + $0x398] sm:$0xff]
        %v420 = vld [vmem:[#allocation5 + $0x3a0] sm:$0xff]
        %v421 = vld [vmem:[#allocation5 + $0x3a8] sm:$0xff]
        %v422 = vld [vmem:[#allocation5 + $0x3b0] sm:$0xff]
        %v423 = vld [vmem:[#allocation5 + $0x3b8] sm:$0xff]
        %v424 = vld [vmem:[#allocation5 + $0x3c0] sm:$0xff]
        %v425 = vld [vmem:[#allocation5 + $0x3c8] sm:$0xff]
        %v426 = vld [vmem:[#allocation5 + $0x3d0] sm:$0xff]
        %v427 = vld [vmem:[#allocation5 + $0x3d8] sm:$0xff]
        %v428 = vld [vmem:[#allocation5 + $0x3e0] sm:$0xff]
        %v429 = vld [vmem:[#allocation5 + $0x3e8] sm:$0xff]
        %v430 = vld [vmem:[#allocation5 + $0x3f0] sm:$0xff]
        %v431 = vld [vmem:[#allocation5 + $0x3f8] sm:$0xff]
        %v432 = vld [vmem:[#allocation5 + $0x400] sm:$0xff]
        %v433 = vld [vmem:[#allocation5 + $0x408] sm:$0xff]
        %v434 = vld [vmem:[#allocation5 + $0x410] sm:$0xff]
        %v435 = vld [vmem:[#allocation5 + $0x418] sm:$0xff]
        %v436 = vld [vmem:[#allocation5 + $0x420] sm:$0xff]
        %v437 = vld [vmem:[#allocation5 + $0x428] sm:$0xff]
        %v438 = vld [vmem:[#allocation5 + $0x430] sm:$0xff]
        %v439 = vld [vmem:[#allocation5 + $0x438] sm:$0xff]
        %v440 = vld [vmem:[#allocation5 + $0x440] sm:$0xff]
        %v441 = vld [vmem:[#allocation5 + $0x448] sm:$0xff]
        %v442 = vld [vmem:[#allocation5 + $0x450] sm:$0xff]
        %v443 = vld [vmem:[#allocation5 + $0x458] sm:$0xff]
        %v444 = vld [vmem:[#allocation5 + $0x460] sm:$0xff]
        %v445 = vld [vmem:[#allocation5 + $0x468] sm:$0xff]
        %v446 = vld [vmem:[#allocation5 + $0x470] sm:$0xff]
        %v447 = vld [vmem:[#allocation5 + $0x478] sm:$0xff]
        %v448 = vlaneseq
        %v449 = vshrl.u32 %v448, 7
        %v450 = vadd.s32 %v449, 8
        %vm451 = vcmp.ge.s32.totalorder %v449, 1
        %vm452 = vcmp.ge.s32.totalorder %v450, 1
        %vm453 = vcmp.lt.s32.totalorder %v449, 17
        %vm454 = vcmp.lt.s32.totalorder %v450, 17
        %vm455 = vmand %vm451, %vm453
        %vm456 = vmand %vm452, %vm454
        %vm457 = vcmp.ge.s32.totalorder %v449, 0
        %vm458 = vcmp.ge.s32.totalorder %v450, 0
        %vm459 = vcmp.lt.s32.totalorder %v449, 16
        %vm460 = vcmp.lt.s32.totalorder %v450, 16
        %vm461 = vmand %vm457, %vm459
        %vm462 = vmand %vm458, %vm460
        %vm463 = vcmp.ge.s32.totalorder %v449, 4294967295
        %vm464 = vcmp.ge.s32.totalorder %v450, 4294967295
        %vm465 = vcmp.lt.s32.totalorder %v449, 15
        %vm466 = vcmp.lt.s32.totalorder %v450, 15
        %vm467 = vmand %vm463, %vm465
        %vm468 = vmand %vm464, %vm466
        %v469 = vrot.slane %v272, 7
        %v470 = vrot.slane %v273, 7
        %v471 = vrot.slane %v274, 7
        %v472 = vrot.slane %v275, 7
        %v473 = vrot.slane %v276, 7
        %v474 = vrot.slane %v277, 7
        %v475 = vrot.slane %v278, 7
        %v476 = vrot.slane %v279, 7
        %v477 = vrot.slane %v280, 7
        %v478 = vrot.slane %v281, 7
        %v479 = vrot.slane %v282, 7
        %v480 = vrot.slane %v283, 7
        %v481 = vrot.slane %v284, 7
        %v482 = vrot.slane %v285, 7
        %v483 = vrot.slane %v286, 7
        %v484 = vrot.slane %v287, 7
        %v485 = vrot.slane %v288, 7
        %v486 = vrot.slane %v289, 7
        %v487 = vrot.slane %v290, 7
        %v488 = vrot.slane %v291, 7
        %v489 = vrot.slane %v292, 7
        %v490 = vrot.slane %v293, 7
        %v491 = vrot.slane %v294, 7
        %v492 = vrot.slane %v295, 7
        %v493 = vrot.slane %v296, 7
        %v494 = vrot.slane %v297, 7
        %v495 = vrot.slane %v298, 7
        %v496 = vrot.slane %v299, 7
        %v497 = vrot.slane %v300, 7
        %v498 = vrot.slane %v301, 7
        %v499 = vrot.slane %v303, 7
        %vm500 = vcmp.lt.s32.totalorder %v449, 1
        %v501 = vsel %vm500, %v497, %v498
        %v502 = vsel %vm500, %v496, %v497
        %v503 = vsel %vm500, %v495, %v496
        %v504 = vsel %vm500, %v494, %v495
        %v505 = vsel %vm500, %v493, %v494
        %v506 = vsel %vm500, %v492, %v493
        %v507 = vsel %vm500, %v491, %v492
        %v508 = vsel %vm500, %v490, %v491
        %v509 = vsel %vm500, %v489, %v490
        %v510 = vsel %vm500, %v488, %v489
        %v511 = vsel %vm500, %v487, %v488
        %v512 = vsel %vm500, %v486, %v487
        %v513 = vsel %vm500, %v485, %v486
        %v514 = vsel %vm500, %v484, %v485
        %v515 = vsel %vm500, %v483, %v484
        %v516 = vsel %vm500, %v482, %v483
        %v517 = vsel %vm500, %v481, %v482
        %v518 = vsel %vm500, %v480, %v481
        %v519 = vsel %vm500, %v479, %v480
        %v520 = vsel %vm500, %v478, %v479
        %v521 = vsel %vm500, %v477, %v478
        %v522 = vsel %vm500, %v476, %v477
        %v523 = vsel %vm500, %v475, %v476
        %v524 = vsel %vm500, %v474, %v475
        %v525 = vsel %vm500, %v473, %v474
        %v526 = vsel %vm500, %v472, %v473
        %v527 = vsel %vm500, %v471, %v472
        %v528 = vsel %vm500, %v470, %v471
        %v529 = vsel %vm500, %v469, %v470
        %v530 = vsel %vm500, %v499, %v469
        %v531 = vsel %vm455, %v530, 0.0
        %v532 = vsel %vm456, %v529, 0.0
        %v533 = vsel %vm455, %v528, 0.0
        %v534 = vsel %vm456, %v527, 0.0
        %v535 = vsel %vm455, %v526, 0.0
        %v536 = vsel %vm456, %v525, 0.0
        %v537 = vsel %vm455, %v524, 0.0
        %v538 = vsel %vm456, %v523, 0.0
        %v539 = vsel %vm455, %v522, 0.0
        %v540 = vsel %vm456, %v521, 0.0
        %v541 = vsel %vm455, %v520, 0.0
        %v542 = vsel %vm456, %v519, 0.0
        %v543 = vsel %vm455, %v518, 0.0
        %v544 = vsel %vm456, %v517, 0.0
        %v545 = vsel %vm455, %v516, 0.0
        %v546 = vsel %vm456, %v515, 0.0
        %v547 = vsel %vm455, %v514, 0.0
        %v548 = vsel %vm456, %v513, 0.0
        %v549 = vsel %vm455, %v512, 0.0
        %v550 = vsel %vm456, %v511, 0.0
        %v551 = vsel %vm455, %v510, 0.0
        %v552 = vsel %vm456, %v509, 0.0
        %v553 = vsel %vm455, %v508, 0.0
        %v554 = vsel %vm456, %v507, 0.0
        %v555 = vsel %vm455, %v506, 0.0
        %v556 = vsel %vm456, %v505, 0.0
        %v557 = vsel %vm455, %v504, 0.0
        %v558 = vsel %vm456, %v503, 0.0
        %v559 = vsel %vm455, %v502, 0.0
        %v560 = vsel %vm456, %v501, 0.0
        %v561 = vsel %vm461, %v272, 0.0
        %v562 = vsel %vm462, %v273, 0.0
        %v563 = vsel %vm461, %v274, 0.0
        %v564 = vsel %vm462, %v275, 0.0
        %v565 = vsel %vm461, %v276, 0.0
        %v566 = vsel %vm462, %v277, 0.0
        %v567 = vsel %vm461, %v278, 0.0
        %v568 = vsel %vm462, %v279, 0.0
        %v569 = vsel %vm461, %v280, 0.0
        %v570 = vsel %vm462, %v281, 0.0
        %v571 = vsel %vm461, %v282, 0.0
        %v572 = vsel %vm462, %v283, 0.0
        %v573 = vsel %vm461, %v284, 0.0
        %v574 = vsel %vm462, %v285, 0.0
        %v575 = vsel %vm461, %v286, 0.0
        %v576 = vsel %vm462, %v287, 0.0
        %v577 = vsel %vm461, %v288, 0.0
        %v578 = vsel %vm462, %v289, 0.0
        %v579 = vsel %vm461, %v290, 0.0
        %v580 = vsel %vm462, %v291, 0.0
        %v581 = vsel %vm461, %v292, 0.0
        %v582 = vsel %vm462, %v293, 0.0
        %v583 = vsel %vm461, %v294, 0.0
        %v584 = vsel %vm462, %v295, 0.0
        %v585 = vsel %vm461, %v296, 0.0
        %v586 = vsel %vm462, %v297, 0.0
        %v587 = vsel %vm461, %v298, 0.0
        %v588 = vsel %vm462, %v299, 0.0
        %v589 = vsel %vm461, %v300, 0.0
        %v590 = vsel %vm462, %v301, 0.0
        %v591 = vrot.slane %v272, 1
        %v592 = vrot.slane %v273, 1
        %v593 = vrot.slane %v274, 1
        %v594 = vrot.slane %v275, 1
        %v595 = vrot.slane %v276, 1
        %v596 = vrot.slane %v277, 1
        %v597 = vrot.slane %v278, 1
        %v598 = vrot.slane %v279, 1
        %v599 = vrot.slane %v280, 1
        %v600 = vrot.slane %v281, 1
        %v601 = vrot.slane %v282, 1
        %v602 = vrot.slane %v283, 1
        %v603 = vrot.slane %v284, 1
        %v604 = vrot.slane %v285, 1
        %v605 = vrot.slane %v286, 1
        %v606 = vrot.slane %v287, 1
        %v607 = vrot.slane %v288, 1
        %v608 = vrot.slane %v289, 1
        %v609 = vrot.slane %v290, 1
        %v610 = vrot.slane %v291, 1
        %v611 = vrot.slane %v292, 1
        %v612 = vrot.slane %v293, 1
        %v613 = vrot.slane %v294, 1
        %v614 = vrot.slane %v295, 1
        %v615 = vrot.slane %v296, 1
        %v616 = vrot.slane %v297, 1
        %v617 = vrot.slane %v298, 1
        %v618 = vrot.slane %v299, 1
        %v619 = vrot.slane %v300, 1
        %v620 = vrot.slane %v301, 1
        %v621 = vrot.slane %v302, 1
        %vm622 = vcmp.lt.s32.totalorder %v449, 7
        %v623 = vsel %vm622, %v620, %v621
        %v624 = vsel %vm622, %v619, %v620
        %v625 = vsel %vm622, %v618, %v619
        %v626 = vsel %vm622, %v617, %v618
        %v627 = vsel %vm622, %v616, %v617
        %v628 = vsel %vm622, %v615, %v616
        %v629 = vsel %vm622, %v614, %v615
        %v630 = vsel %vm622, %v613, %v614
        %v631 = vsel %vm622, %v612, %v613
        %v632 = vsel %vm622, %v611, %v612
        %v633 = vsel %vm622, %v610, %v611
        %v634 = vsel %vm622, %v609, %v610
        %v635 = vsel %vm622, %v608, %v609
        %v636 = vsel %vm622, %v607, %v608
        %v637 = vsel %vm622, %v606, %v607
        %v638 = vsel %vm622, %v605, %v606
        %v639 = vsel %vm622, %v604, %v605
        %v640 = vsel %vm622, %v603, %v604
        %v641 = vsel %vm622, %v602, %v603
        %v642 = vsel %vm622, %v601, %v602
        %v643 = vsel %vm622, %v600, %v601
        %v644 = vsel %vm622, %v599, %v600
        %v645 = vsel %vm622, %v598, %v599
        %v646 = vsel %vm622, %v597, %v598
        %v647 = vsel %vm622, %v596, %v597
        %v648 = vsel %vm622, %v595, %v596
        %v649 = vsel %vm622, %v594, %v595
        %v650 = vsel %vm622, %v593, %v594
        %v651 = vsel %vm622, %v592, %v593
        %v652 = vsel %vm622, %v591, %v592
        %v653 = vsel %vm467, %v652, 0.0
        %v654 = vsel %vm468, %v651, 0.0
        %v655 = vsel %vm467, %v650, 0.0
        %v656 = vsel %vm468, %v649, 0.0
        %v657 = vsel %vm467, %v648, 0.0
        %v658 = vsel %vm468, %v647, 0.0
        %v659 = vsel %vm467, %v646, 0.0
        %v660 = vsel %vm468, %v645, 0.0
        %v661 = vsel %vm467, %v644, 0.0
        %v662 = vsel %vm468, %v643, 0.0
        %v663 = vsel %vm467, %v642, 0.0
        %v664 = vsel %vm468, %v641, 0.0
        %v665 = vsel %vm467, %v640, 0.0
        %v666 = vsel %vm468, %v639, 0.0
        %v667 = vsel %vm467, %v638, 0.0
        %v668 = vsel %vm468, %v637, 0.0
        %v669 = vsel %vm467, %v636, 0.0
        %v670 = vsel %vm468, %v635, 0.0
        %v671 = vsel %vm467, %v634, 0.0
        %v672 = vsel %vm468, %v633, 0.0
        %v673 = vsel %vm467, %v632, 0.0
        %v674 = vsel %vm468, %v631, 0.0
        %v675 = vsel %vm467, %v630, 0.0
        %v676 = vsel %vm468, %v629, 0.0
        %v677 = vsel %vm467, %v628, 0.0
        %v678 = vsel %vm468, %v627, 0.0
        %v679 = vsel %vm467, %v626, 0.0
        %v680 = vsel %vm468, %v625, 0.0
        %v681 = vsel %vm467, %v624, 0.0
        %v682 = vsel %vm468, %v623, 0.0
        %v683 = vrot.slane %v302, 7
        %v684 = vsel %vm500, %v683, %v499
        %v685 = vsel %vm500, %v498, %v683
        %v686 = vsel %vm455, %v685, 0.0
        %v687 = vsel %vm456, %v684, 0.0
        %v688 = vsel %vm461, %v302, 0.0
        %v689 = vsel %vm462, %v303, 0.0
        %v690 = vrot.slane %v303, 1
        %v691 = vsel %vm622, %v621, %v690
        %v692 = vsel %vm622, %v690, %v591
        %v693 = vsel %vm467, %v691, 0.0
        %v694 = vsel %vm468, %v692, 0.0
        %v695 = vld [vmem:[%s2] sm:$0x1]
        %v697 = vlaneseq
        %v698 = vshrl.u32 %v697, 7
        %v699 = vsub.s32 0, %v698
        %v700 = vrot.slane %v695, %v699
        %702 = vmatprep.subr.mxu0 0.0
        %703 = vmatpush1.msra.mxu0 %v304
        %704 = vmatprep.subr.mxu0 0.0
        %705 = vmatpush1.msra.mxu0 %v305
        %706 = vmatprep.subr.mxu0 0.0
        %707 = vmatpush1.msra.mxu0 %v306
        %708 = vmatprep.subr.mxu0 0.0
        %709 = vmatpush1.msra.mxu0 %v307
        %710 = vmatprep.subr.mxu0 0.0
        %711 = vmatpush1.msra.mxu0 %v308
        %712 = vmatprep.subr.mxu0 0.0
        %713 = vmatpush1.msra.mxu0 %v309
        %714 = vmatprep.subr.mxu0 0.0
        %715 = vmatpush1.msra.mxu0 %v310
        %716 = vmatprep.subr.mxu0 0.0
        %717 = vmatpush1.msra.mxu0 %v311
        %718 = vmatprep.subr.mxu0 0.0
        %719 = vmatpush1.msra.mxu0 %v312
        %720 = vmatprep.subr.mxu0 0.0
        %721 = vmatpush1.msra.mxu0 %v313
        %722 = vmatprep.subr.mxu0 0.0
        %723 = vmatpush1.msra.mxu0 %v314
        %724 = vmatprep.subr.mxu0 0.0
        %725 = vmatpush1.msra.mxu0 %v315
        %726 = vmatprep.subr.mxu0 0.0
        %727 = vmatpush1.msra.mxu0 %v316
        %728 = vmatprep.subr.mxu0 0.0
        %729 = vmatpush1.msra.mxu0 %v317
        %730 = vmatprep.subr.mxu0 0.0
        %731 = vmatpush1.msra.mxu0 %v318
        %732 = vmatprep.subr.mxu0 0.0
        %733 = vmatpush1.msra.mxu0 %v319
        %734 = vmatprep.subr.mxu0 0.0
        %735 = vmatpush1.msra.mxu0 %v320
        %736 = vmatprep.subr.mxu0 0.0
        %737 = vmatpush1.msra.mxu0 %v321
        %738 = vmatprep.subr.mxu0 0.0
        %739 = vmatpush1.msra.mxu0 %v322
        %740 = vmatprep.subr.mxu0 0.0
        %741 = vmatpush1.msra.mxu0 %v323
        %742 = vmatprep.subr.mxu0 0.0
        %743 = vmatpush1.msra.mxu0 %v324
        %744 = vmatprep.subr.mxu0 0.0
        %745 = vmatpush1.msra.mxu0 %v325
        %746 = vmatprep.subr.mxu0 0.0
        %747 = vmatpush1.msra.mxu0 %v326
        %748 = vmatprep.subr.mxu0 0.0
        %749 = vmatpush1.msra.mxu0 %v327
        %750 = vmatprep.subr.mxu0 0.0
        %751 = vmatpush1.msra.mxu0 %v328
        %752 = vmatprep.subr.mxu0 0.0
        %753 = vmatpush1.msra.mxu0 %v329
        %754 = vmatprep.subr.mxu0 0.0
        %755 = vmatpush1.msra.mxu0 %v330
        %756 = vmatprep.subr.mxu0 0.0
        %757 = vmatpush1.msra.mxu0 %v331
        %758 = vmatprep.subr.mxu0 0.0
        %759 = vmatpush1.msra.mxu0 %v332
        %760 = vmatprep.subr.mxu0 0.0
        %761 = vmatpush1.msra.mxu0 %v333
        %762 = vmatprep.subr.mxu0 0.0
        %763 = vmatpush1.msra.mxu0 %v334
        %764 = vmatprep.subr.mxu0 0.0
        %765 = vmatpush1.msra.mxu0 %v335
        %766 = vmatprep.mubr.f32.mxu0 0.0
        %767 = vmatmul.mubr.f32.gmra.mrb[0].mxu0 0.0
        %v768 = vpop.f32.mrb[0].mxu0
        %v769 = vadd.f32 %v700, %v768
        %v770 = vpop.f32.mrb[0].mxu0
        %771 = vmatprep.mubr.f32.mxu0 0.0
        %772 = vmatmul.mubr.f32.gmra.mrb[0].mxu0 0.0
        %v773 = vpop.f32.mrb[0].mxu0
        %v774 = vadd.f32 %v700, %v773
        %v775 = vpop.f32.mrb[0].mxu0
        %776 = vmatprep.mubr.f32.mxu0 %v561
        %777 = vmatmul.mubr.f32.gmra.mrb[0].mxu0 %v531
        %v778 = vpop.f32.mrb[0].mxu0
        %v779 = vadd.f32 %v700, %v778
        %v780 = vpop.f32.mrb[0].mxu0
        %781 = vmatprep.mubr.f32.mxu0 %v562
        %782 = vmatmul.mubr.f32.gmra.mrb[0].mxu0 %v532
        %v783 = vpop.f32.mrb[0].mxu0
        %v784 = vadd.f32 %v700, %v783
        %v785 = vpop.f32.mrb[0].mxu0
        %786 = vmatprep.mubr.f32.mxu0 %v563
        %787 = vmatmul.mubr.f32.gmra.mrb[0].mxu0 %v533
        %v788 = vpop.f32.mrb[0].mxu0
        %v789 = vadd.f32 %v700, %v788
        %v790 = vpop.f32.mrb[0].mxu0
        %791 = vmatprep.mubr.f32.mxu0 %v564
        %792 = vmatmul.mubr.f32.gmra.mrb[0].mxu0 %v534
        %v793 = vpop.f32.mrb[0].mxu0
        %v794 = vadd.f32 %v700, %v793
        %v795 = vpop.f32.mrb[0].mxu0
        %796 = vmatprep.mubr.f32.mxu0 %v565
        %797 = vmatmul.mubr.f32.gmra.mrb[0].mxu0 %v535
        %v798 = vpop.f32.mrb[0].mxu0
        %v799 = vadd.f32 %v700, %v798
        %v800 = vpop.f32.mrb[0].mxu0
        %801 = vmatprep.mubr.f32.mxu0 %v566
        %802 = vmatmul.mubr.f32.gmra.mrb[0].mxu0 %v536
        %v803 = vpop.f32.mrb[0].mxu0
        %v804 = vadd.f32 %v700, %v803
        %v805 = vpop.f32.mrb[0].mxu0
        %806 = vmatprep.mubr.f32.mxu0 %v567
        %807 = vmatmul.mubr.f32.gmra.mrb[0].mxu0 %v537
        %v808 = vpop.f32.mrb[0].mxu0
        %v809 = vadd.f32 %v700, %v808
        %v810 = vpop.f32.mrb[0].mxu0
        %811 = vmatprep.mubr.f32.mxu0 %v568
        %812 = vmatmul.mubr.f32.gmra.mrb[0].mxu0 %v538
        %v813 = vpop.f32.mrb[0].mxu0
        %v814 = vadd.f32 %v700, %v813
        %v815 = vpop.f32.mrb[0].mxu0
        %816 = vmatprep.mubr.f32.mxu0 %v569
        %817 = vmatmul.mubr.f32.gmra.mrb[0].mxu0 %v539
        %v818 = vpop.f32.mrb[0].mxu0
        %v819 = vadd.f32 %v700, %v818
        %v820 = vpop.f32.mrb[0].mxu0
        %821 = vmatprep.mubr.f32.mxu0 %v570
        %822 = vmatmul.mubr.f32.gmra.mrb[0].mxu0 %v540
        %v823 = vpop.f32.mrb[0].mxu0
        %v824 = vadd.f32 %v700, %v823
        %v825 = vpop.f32.mrb[0].mxu0
        %826 = vmatprep.mubr.f32.mxu0 %v571
        %827 = vmatmul.mubr.f32.gmra.mrb[0].mxu0 %v541
        %v828 = vpop.f32.mrb[0].mxu0
        %v829 = vadd.f32 %v700, %v828
        %v830 = vpop.f32.mrb[0].mxu0
        %831 = vmatprep.mubr.f32.mxu0 %v572
        %832 = vmatmul.mubr.f32.gmra.mrb[0].mxu0 %v542
        %v833 = vpop.f32.mrb[0].mxu0
        %v834 = vadd.f32 %v700, %v833
        %v835 = vpop.f32.mrb[0].mxu0
        %836 = vmatprep.mubr.f32.mxu0 %v573
        %837 = vmatmul.mubr.f32.gmra.mrb[0].mxu0 %v543
        %v838 = vpop.f32.mrb[0].mxu0
        %v839 = vadd.f32 %v700, %v838
        %v840 = vpop.f32.mrb[0].mxu0
        %841 = vmatprep.mubr.f32.mxu0 %v574
        %842 = vmatmul.mubr.f32.gmra.mrb[0].mxu0 %v544
        %v843 = vpop.f32.mrb[0].mxu0
        %v844 = vadd.f32 %v700, %v843
        %v845 = vpop.f32.mrb[0].mxu0
        %846 = vmatprep.mubr.f32.mxu0 %v575
        %847 = vmatmul.mubr.f32.gmra.mrb[0].mxu0 %v545
        %v848 = vpop.f32.mrb[0].mxu0
        %v849 = vadd.f32 %v700, %v848
        %v850 = vpop.f32.mrb[0].mxu0
        %851 = vmatprep.mubr.f32.mxu0 %v576
        %852 = vmatmul.mubr.f32.gmra.mrb[0].mxu0 %v546
        %v853 = vpop.f32.mrb[0].mxu0
        %v854 = vadd.f32 %v700, %v853
        %v855 = vpop.f32.mrb[0].mxu0
        %856 = vmatprep.mubr.f32.mxu0 %v577
        %857 = vmatmul.mubr.f32.gmra.mrb[0].mxu0 %v547
        %v858 = vpop.f32.mrb[0].mxu0
        %v859 = vadd.f32 %v700, %v858
        %v860 = vpop.f32.mrb[0].mxu0
        %861 = vmatprep.mubr.f32.mxu0 %v578
        %862 = vmatmul.mubr.f32.gmra.mrb[0].mxu0 %v548
        %v863 = vpop.f32.mrb[0].mxu0
        %v864 = vadd.f32 %v700, %v863
        %v865 = vpop.f32.mrb[0].mxu0
        %866 = vmatprep.mubr.f32.mxu0 %v579
        %867 = vmatmul.mubr.f32.gmra.mrb[0].mxu0 %v549
        %v868 = vpop.f32.mrb[0].mxu0
        %v869 = vadd.f32 %v700, %v868
        %v870 = vpop.f32.mrb[0].mxu0
        %871 = vmatprep.mubr.f32.mxu0 %v580
        %872 = vmatmul.mubr.f32.gmra.mrb[0].mxu0 %v550
        %v873 = vpop.f32.mrb[0].mxu0
        %v874 = vadd.f32 %v700, %v873
        %v875 = vpop.f32.mrb[0].mxu0
        %876 = vmatprep.mubr.f32.mxu0 %v581
        %877 = vmatmul.mubr.f32.gmra.mrb[0].mxu0 %v551
        %v878 = vpop.f32.mrb[0].mxu0
        %v879 = vadd.f32 %v700, %v878
        %v880 = vpop.f32.mrb[0].mxu0
        %881 = vmatprep.mubr.f32.mxu0 %v582
        %882 = vmatmul.mubr.f32.gmra.mrb[0].mxu0 %v552
        %v883 = vpop.f32.mrb[0].mxu0
        %v884 = vadd.f32 %v700, %v883
        %v885 = vpop.f32.mrb[0].mxu0
        %886 = vmatprep.mubr.f32.mxu0 %v583
        %887 = vmatmul.mubr.f32.gmra.mrb[0].mxu0 %v553
        %v888 = vpop.f32.mrb[0].mxu0
        %v889 = vadd.f32 %v700, %v888
        %v890 = vpop.f32.mrb[0].mxu0
        %891 = vmatprep.mubr.f32.mxu0 %v584
        %892 = vmatmul.mubr.f32.gmra.mrb[0].mxu0 %v554
        %v893 = vpop.f32.mrb[0].mxu0
        %v894 = vadd.f32 %v700, %v893
        %v895 = vpop.f32.mrb[0].mxu0
        %896 = vmatprep.mubr.f32.mxu0 %v585
        %897 = vmatmul.mubr.f32.gmra.mrb[0].mxu0 %v555
        %v898 = vpop.f32.mrb[0].mxu0
        %v899 = vadd.f32 %v700, %v898
        %v900 = vpop.f32.mrb[0].mxu0
        %901 = vmatprep.mubr.f32.mxu0 %v586
        %902 = vmatmul.mubr.f32.gmra.mrb[0].mxu0 %v556
        %v903 = vpop.f32.mrb[0].mxu0
        %v904 = vadd.f32 %v700, %v903
        %v905 = vpop.f32.mrb[0].mxu0
        %906 = vmatprep.mubr.f32.mxu0 %v587
        %907 = vmatmul.mubr.f32.gmra.mrb[0].mxu0 %v557
        %v908 = vpop.f32.mrb[0].mxu0
        %v909 = vadd.f32 %v700, %v908
        %v910 = vpop.f32.mrb[0].mxu0
        %911 = vmatprep.mubr.f32.mxu0 %v588
        %912 = vmatmul.mubr.f32.gmra.mrb[0].mxu0 %v558
        %v913 = vpop.f32.mrb[0].mxu0
        %v914 = vadd.f32 %v700, %v913
        %v915 = vpop.f32.mrb[0].mxu0
        %916 = vmatprep.mubr.f32.mxu0 %v589
        %917 = vmatmul.mubr.f32.gmra.mrb[0].mxu0 %v559
        %v918 = vpop.f32.mrb[0].mxu0
        %v919 = vadd.f32 %v700, %v918
        %v920 = vpop.f32.mrb[0].mxu0
        %921 = vmatprep.mubr.f32.mxu0 %v590
        %922 = vmatmul.mubr.f32.gmra.mrb[0].mxu0 %v560
        %v923 = vpop.f32.mrb[0].mxu0
        %v924 = vadd.f32 %v700, %v923
        %v925 = vpop.f32.mrb[0].mxu0
        %926 = vdwg.mxu0
        %927 = vmatprep.subr.mxu0 0.0
        %928 = vmatpush1.msra.mxu0 %v336
        %929 = vmatprep.subr.mxu0 0.0
        %930 = vmatpush1.msra.mxu0 %v337
        %931 = vmatprep.subr.mxu0 0.0
        %932 = vmatpush1.msra.mxu0 %v338
        %933 = vmatprep.subr.mxu0 0.0
        %934 = vmatpush1.msra.mxu0 %v339
        %935 = vmatprep.subr.mxu0 0.0
        %936 = vmatpush1.msra.mxu0 %v340
        %937 = vmatprep.subr.mxu0 0.0
        %938 = vmatpush1.msra.mxu0 %v341
        %939 = vmatprep.subr.mxu0 0.0
        %940 = vmatpush1.msra.mxu0 %v342
        %941 = vmatprep.subr.mxu0 0.0
        %942 = vmatpush1.msra.mxu0 %v343
        %943 = vmatprep.subr.mxu0 0.0
        %944 = vmatpush1.msra.mxu0 %v344
        %945 = vmatprep.subr.mxu0 0.0
        %946 = vmatpush1.msra.mxu0 %v345
        %947 = vmatprep.subr.mxu0 0.0
        %948 = vmatpush1.msra.mxu0 %v346
        %949 = vmatprep.subr.mxu0 0.0
        %950 = vmatpush1.msra.mxu0 %v347
        %951 = vmatprep.subr.mxu0 0.0
        %952 = vmatpush1.msra.mxu0 %v348
        %953 = vmatprep.subr.mxu0 0.0
        %954 = vmatpush1.msra.mxu0 %v349
        %955 = vmatprep.subr.mxu0 0.0
        %956 = vmatpush1.msra.mxu0 %v350
        %957 = vmatprep.subr.mxu0 0.0
        %958 = vmatpush1.msra.mxu0 %v351
        %959 = vmatprep.subr.mxu0 0.0
        %960 = vmatpush1.msra.mxu0 %v352
        %961 = vmatprep.subr.mxu0 0.0
        %962 = vmatpush1.msra.mxu0 %v353
        %963 = vmatprep.subr.mxu0 0.0
        %964 = vmatpush1.msra.mxu0 %v354
        %965 = vmatprep.subr.mxu0 0.0
        %966 = vmatpush1.msra.mxu0 %v355
        %967 = vmatprep.subr.mxu0 0.0
        %968 = vmatpush1.msra.mxu0 %v356
        %969 = vmatprep.subr.mxu0 0.0
        %970 = vmatpush1.msra.mxu0 %v357
        %971 = vmatprep.subr.mxu0 0.0
        %972 = vmatpush1.msra.mxu0 %v358
        %973 = vmatprep.subr.mxu0 0.0
        %974 = vmatpush1.msra.mxu0 %v359
        %975 = vmatprep.subr.mxu0 0.0
        %976 = vmatpush1.msra.mxu0 %v360
        %977 = vmatprep.subr.mxu0 0.0
        %978 = vmatpush1.msra.mxu0 %v361
        %979 = vmatprep.subr.mxu0 0.0
        %980 = vmatpush1.msra.mxu0 %v362
        %981 = vmatprep.subr.mxu0 0.0
        %982 = vmatpush1.msra.mxu0 %v363
        %983 = vmatprep.subr.mxu0 0.0
        %984 = vmatpush1.msra.mxu0 %v364
        %985 = vmatprep.subr.mxu0 0.0
        %986 = vmatpush1.msra.mxu0 %v365
        %987 = vmatprep.subr.mxu0 0.0
        %988 = vmatpush1.msra.mxu0 %v366
        %989 = vmatprep.subr.mxu0 0.0
        %990 = vmatpush1.msra.mxu0 %v367
        %991 = vmatprep.mubr.f32.mxu0 %v531
        %992 = vmatmul.mubr.f32.gmra.mrb[0].mxu0 0.0
        %v993 = vpop.f32.mrb[0].mxu0
        %v994 = vadd.f32 %v769, %v993
        %v995 = vpop.f32.mrb[0].mxu0
        %996 = vmatprep.mubr.f32.mxu0 %v532
        %997 = vmatmul.mubr.f32.gmra.mrb[0].mxu0 0.0
        %v998 = vpop.f32.mrb[0].mxu0
        %v999 = vadd.f32 %v774, %v998
        %v1000 = vpop.f32.mrb[0].mxu0
        %1001 = vmatprep.mubr.f32.mxu0 %v533
        %1002 = vmatmul.mubr.f32.gmra.mrb[0].mxu0 %v653
        %v1003 = vpop.f32.mrb[0].mxu0
        %v1004 = vadd.f32 %v779, %v1003
        %v1005 = vpop.f32.mrb[0].mxu0
        %1006 = vmatprep.mubr.f32.mxu0 %v534
        %1007 = vmatmul.mubr.f32.gmra.mrb[0].mxu0 %v654
        %v1008 = vpop.f32.mrb[0].mxu0
        %v1009 = vadd.f32 %v784, %v1008
        %v1010 = vpop.f32.mrb[0].mxu0
        %1011 = vmatprep.mubr.f32.mxu0 %v535
        %1012 = vmatmul.mubr.f32.gmra.mrb[0].mxu0 %v655
        %v1013 = vpop.f32.mrb[0].mxu0
        %v1014 = vadd.f32 %v789, %v1013
        %v1015 = vpop.f32.mrb[0].mxu0
        %1016 = vmatprep.mubr.f32.mxu0 %v536
        %1017 = vmatmul.mubr.f32.gmra.mrb[0].mxu0 %v656
        %v1018 = vpop.f32.mrb[0].mxu0
        %v1019 = vadd.f32 %v794, %v1018
        %v1020 = vpop.f32.mrb[0].mxu0
        %1021 = vmatprep.mubr.f32.mxu0 %v537
        %1022 = vmatmul.mubr.f32.gmra.mrb[0].mxu0 %v657
        %v1023 = vpop.f32.mrb[0].mxu0
        %v1024 = vadd.f32 %v799, %v1023
        %v1025 = vpop.f32.mrb[0].mxu0
        %1026 = vmatprep.mubr.f32.mxu0 %v538
        %1027 = vmatmul.mubr.f32.gmra.mrb[0].mxu0 %v658
        %v1028 = vpop.f32.mrb[0].mxu0
        %v1029 = vadd.f32 %v804, %v1028
        %v1030 = vpop.f32.mrb[0].mxu0
        %1031 = vmatprep.mubr.f32.mxu0 %v539
        %1032 = vmatmul.mubr.f32.gmra.mrb[0].mxu0 %v659
        %v1033 = vpop.f32.mrb[0].mxu0
        %v1034 = vadd.f32 %v809, %v1033
        %v1035 = vpop.f32.mrb[0].mxu0
        %1036 = vmatprep.mubr.f32.mxu0 %v540
        %1037 = vmatmul.mubr.f32.gmra.mrb[0].mxu0 %v660
        %v1038 = vpop.f32.mrb[0].mxu0
        %v1039 = vadd.f32 %v814, %v1038
        %v1040 = vpop.f32.mrb[0].mxu0
        %1041 = vmatprep.mubr.f32.mxu0 %v541
        %1042 = vmatmul.mubr.f32.gmra.mrb[0].mxu0 %v661
        %v1043 = vpop.f32.mrb[0].mxu0
        %v1044 = vadd.f32 %v819, %v1043
        %v1045 = vpop.f32.mrb[0].mxu0
        %1046 = vmatprep.mubr.f32.mxu0 %v542
        %1047 = vmatmul.mubr.f32.gmra.mrb[0].mxu0 %v662
        %v1048 = vpop.f32.mrb[0].mxu0
        %v1049 = vadd.f32 %v824, %v1048
        %v1050 = vpop.f32.mrb[0].mxu0
        %1051 = vmatprep.mubr.f32.mxu0 %v543
        %1052 = vmatmul.mubr.f32.gmra.mrb[0].mxu0 %v663
        %v1053 = vpop.f32.mrb[0].mxu0
        %v1054 = vadd.f32 %v829, %v1053
        %v1055 = vpop.f32.mrb[0].mxu0
        %1056 = vmatprep.mubr.f32.mxu0 %v544
        %1057 = vmatmul.mubr.f32.gmra.mrb[0].mxu0 %v664
        %v1058 = vpop.f32.mrb[0].mxu0
        %v1059 = vadd.f32 %v834, %v1058
        %v1060 = vpop.f32.mrb[0].mxu0
        %1061 = vmatprep.mubr.f32.mxu0 %v545
        %1062 = vmatmul.mubr.f32.gmra.mrb[0].mxu0 %v665
        %v1063 = vpop.f32.mrb[0].mxu0
        %v1064 = vadd.f32 %v839, %v1063
        %v1065 = vpop.f32.mrb[0].mxu0
        %1066 = vmatprep.mubr.f32.mxu0 %v546
        %1067 = vmatmul.mubr.f32.gmra.mrb[0].mxu0 %v666
        %v1068 = vpop.f32.mrb[0].mxu0
        %v1069 = vadd.f32 %v844, %v1068
        %v1070 = vpop.f32.mrb[0].mxu0
        %1071 = vmatprep.mubr.f32.mxu0 %v547
        %1072 = vmatmul.mubr.f32.gmra.mrb[0].mxu0 %v667
        %v1073 = vpop.f32.mrb[0].mxu0
        %v1074 = vadd.f32 %v849, %v1073
        %v1075 = vpop.f32.mrb[0].mxu0
        %1076 = vmatprep.mubr.f32.mxu0 %v548
        %1077 = vmatmul.mubr.f32.gmra.mrb[0].mxu0 %v668
        %v1078 = vpop.f32.mrb[0].mxu0
        %v1079 = vadd.f32 %v854, %v1078
        %v1080 = vpop.f32.mrb[0].mxu0
        %1081 = vmatprep.mubr.f32.mxu0 %v549
        %1082 = vmatmul.mubr.f32.gmra.mrb[0].mxu0 %v669
        %v1083 = vpop.f32.mrb[0].mxu0
        %v1084 = vadd.f32 %v859, %v1083
        %v1085 = vpop.f32.mrb[0].mxu0
        %1086 = vmatprep.mubr.f32.mxu0 %v550
        %1087 = vmatmul.mubr.f32.gmra.mrb[0].mxu0 %v670
        %v1088 = vpop.f32.mrb[0].mxu0
        %v1089 = vadd.f32 %v864, %v1088
        %v1090 = vpop.f32.mrb[0].mxu0
        %1091 = vmatprep.mubr.f32.mxu0 %v551
        %1092 = vmatmul.mubr.f32.gmra.mrb[0].mxu0 %v671
        %v1093 = vpop.f32.mrb[0].mxu0
        %v1094 = vadd.f32 %v869, %v1093
        %v1095 = vpop.f32.mrb[0].mxu0
        %1096 = vmatprep.mubr.f32.mxu0 %v552
        %1097 = vmatmul.mubr.f32.gmra.mrb[0].mxu0 %v672
        %v1098 = vpop.f32.mrb[0].mxu0
        %v1099 = vadd.f32 %v874, %v1098
        %v1100 = vpop.f32.mrb[0].mxu0
        %1101 = vmatprep.mubr.f32.mxu0 %v553
        %1102 = vmatmul.mubr.f32.gmra.mrb[0].mxu0 %v673
        %v1103 = vpop.f32.mrb[0].mxu0
        %v1104 = vadd.f32 %v879, %v1103
        %v1105 = vpop.f32.mrb[0].mxu0
        %1106 = vmatprep.mubr.f32.mxu0 %v554
        %1107 = vmatmul.mubr.f32.gmra.mrb[0].mxu0 %v674
        %v1108 = vpop.f32.mrb[0].mxu0
        %v1109 = vadd.f32 %v884, %v1108
        %v1110 = vpop.f32.mrb[0].mxu0
        %1111 = vmatprep.mubr.f32.mxu0 %v555
        %1112 = vmatmul.mubr.f32.gmra.mrb[0].mxu0 %v675
        %v1113 = vpop.f32.mrb[0].mxu0
        %v1114 = vadd.f32 %v889, %v1113
        %v1115 = vpop.f32.mrb[0].mxu0
        %1116 = vmatprep.mubr.f32.mxu0 %v556
        %1117 = vmatmul.mubr.f32.gmra.mrb[0].mxu0 %v676
        %v1118 = vpop.f32.mrb[0].mxu0
        %v1119 = vadd.f32 %v894, %v1118
        %v1120 = vpop.f32.mrb[0].mxu0
        %1121 = vmatprep.mubr.f32.mxu0 %v557
        %1122 = vmatmul.mubr.f32.gmra.mrb[0].mxu0 %v677
        %v1123 = vpop.f32.mrb[0].mxu0
        %v1124 = vadd.f32 %v899, %v1123
        %v1125 = vpop.f32.mrb[0].mxu0
        %1126 = vmatprep.mubr.f32.mxu0 %v558
        %1127 = vmatmul.mubr.f32.gmra.mrb[0].mxu0 %v678
        %v1128 = vpop.f32.mrb[0].mxu0
        %v1129 = vadd.f32 %v904, %v1128
        %v1130 = vpop.f32.mrb[0].mxu0
        %1131 = vmatprep.mubr.f32.mxu0 %v559
        %1132 = vmatmul.mubr.f32.gmra.mrb[0].mxu0 %v679
        %v1133 = vpop.f32.mrb[0].mxu0
        %v1134 = vadd.f32 %v909, %v1133
        %v1135 = vpop.f32.mrb[0].mxu0
        %1136 = vmatprep.mubr.f32.mxu0 %v560
        %1137 = vmatmul.mubr.f32.gmra.mrb[0].mxu0 %v680
        %v1138 = vpop.f32.mrb[0].mxu0
        %v1139 = vadd.f32 %v914, %v1138
        %v1140 = vpop.f32.mrb[0].mxu0
        %1141 = vmatprep.mubr.f32.mxu0 %v686
        %1142 = vmatmul.mubr.f32.gmra.mrb[0].mxu0 %v681
        %v1143 = vpop.f32.mrb[0].mxu0
        %v1144 = vadd.f32 %v919, %v1143
        %v1145 = vpop.f32.mrb[0].mxu0
        %1146 = vmatprep.mubr.f32.mxu0 %v687
        %1147 = vmatmul.mubr.f32.gmra.mrb[0].mxu0 %v682
        %v1148 = vpop.f32.mrb[0].mxu0
        %v1149 = vadd.f32 %v924, %v1148
        %v1150 = vpop.f32.mrb[0].mxu0
        %1151 = vdwg.mxu0
        %1152 = vmatprep.subr.mxu0 0.0
        %1153 = vmatpush1.msra.mxu0 %v368
        %1154 = vmatprep.subr.mxu0 0.0
        %1155 = vmatpush1.msra.mxu0 %v369
        %1156 = vmatprep.subr.mxu0 0.0
        %1157 = vmatpush1.msra.mxu0 %v370
        %1158 = vmatprep.subr.mxu0 0.0
        %1159 = vmatpush1.msra.mxu0 %v371
        %1160 = vmatprep.subr.mxu0 0.0
        %1161 = vmatpush1.msra.mxu0 %v372
        %1162 = vmatprep.subr.mxu0 0.0
        %1163 = vmatpush1.msra.mxu0 %v373
        %1164 = vmatprep.subr.mxu0 0.0
        %1165 = vmatpush1.msra.mxu0 %v374
        %1166 = vmatprep.subr.mxu0 0.0
        %1167 = vmatpush1.msra.mxu0 %v375
        %1168 = vmatprep.subr.mxu0 0.0
        %1169 = vmatpush1.msra.mxu0 %v376
        %1170 = vmatprep.subr.mxu0 0.0
        %1171 = vmatpush1.msra.mxu0 %v377
        %1172 = vmatprep.subr.mxu0 0.0
        %1173 = vmatpush1.msra.mxu0 %v378
        %1174 = vmatprep.subr.mxu0 0.0
        %1175 = vmatpush1.msra.mxu0 %v379
        %1176 = vmatprep.subr.mxu0 0.0
        %1177 = vmatpush1.msra.mxu0 %v380
        %1178 = vmatprep.subr.mxu0 0.0
        %1179 = vmatpush1.msra.mxu0 %v381
        %1180 = vmatprep.subr.mxu0 0.0
        %1181 = vmatpush1.msra.mxu0 %v382
        %1182 = vmatprep.subr.mxu0 0.0
        %1183 = vmatpush1.msra.mxu0 %v383
        %1184 = vmatprep.subr.mxu0 0.0
        %1185 = vmatpush1.msra.mxu0 %v384
        %1186 = vmatprep.subr.mxu0 0.0
        %1187 = vmatpush1.msra.mxu0 %v385
        %1188 = vmatprep.subr.mxu0 0.0
        %1189 = vmatpush1.msra.mxu0 %v386
        %1190 = vmatprep.subr.mxu0 0.0
        %1191 = vmatpush1.msra.mxu0 %v387
        %1192 = vmatprep.subr.mxu0 0.0
        %1193 = vmatpush1.msra.mxu0 %v388
        %1194 = vmatprep.subr.mxu0 0.0
        %1195 = vmatpush1.msra.mxu0 %v389
        %1196 = vmatprep.subr.mxu0 0.0
        %1197 = vmatpush1.msra.mxu0 %v390
        %1198 = vmatprep.subr.mxu0 0.0
        %1199 = vmatpush1.msra.mxu0 %v391
        %1200 = vmatprep.subr.mxu0 0.0
        %1201 = vmatpush1.msra.mxu0 %v392
        %1202 = vmatprep.subr.mxu0 0.0
        %1203 = vmatpush1.msra.mxu0 %v393
        %1204 = vmatprep.subr.mxu0 0.0
        %1205 = vmatpush1.msra.mxu0 %v394
        %1206 = vmatprep.subr.mxu0 0.0
        %1207 = vmatpush1.msra.mxu0 %v395
        %1208 = vmatprep.subr.mxu0 0.0
        %1209 = vmatpush1.msra.mxu0 %v396
        %1210 = vmatprep.subr.mxu0 0.0
        %1211 = vmatpush1.msra.mxu0 %v397
        %1212 = vmatprep.subr.mxu0 0.0
        %1213 = vmatpush1.msra.mxu0 %v398
        %1214 = vmatprep.subr.mxu0 0.0
        %1215 = vmatpush1.msra.mxu0 %v399
        %1216 = vmatprep.mubr.f32.mxu0 %v653
        %1217 = vmatmul.mubr.f32.gmra.mrb[0].mxu0 %v561
        %v1218 = vpop.f32.mrb[0].mxu0
        %v1219 = vadd.f32 %v994, %v1218
        %v1220 = vpop.f32.mrb[0].mxu0
        %1221 = vmatprep.mubr.f32.mxu0 %v654
        %1222 = vmatmul.mubr.f32.gmra.mrb[0].mxu0 %v562
        %v1223 = vpop.f32.mrb[0].mxu0
        %v1224 = vadd.f32 %v999, %v1223
        %v1225 = vpop.f32.mrb[0].mxu0
        %1226 = vmatprep.mubr.f32.mxu0 %v655
        %1227 = vmatmul.mubr.f32.gmra.mrb[0].mxu0 %v563
        %v1228 = vpop.f32.mrb[0].mxu0
        %v1229 = vadd.f32 %v1004, %v1228
        %v1230 = vpop.f32.mrb[0].mxu0
        %1231 = vmatprep.mubr.f32.mxu0 %v656
        %1232 = vmatmul.mubr.f32.gmra.mrb[0].mxu0 %v564
        %v1233 = vpop.f32.mrb[0].mxu0
        %v1234 = vadd.f32 %v1009, %v1233
        %v1235 = vpop.f32.mrb[0].mxu0
        %1236 = vmatprep.mubr.f32.mxu0 %v657
        %1237 = vmatmul.mubr.f32.gmra.mrb[0].mxu0 %v565
        %v1238 = vpop.f32.mrb[0].mxu0
        %v1239 = vadd.f32 %v1014, %v1238
        %v1240 = vpop.f32.mrb[0].mxu0
        %1241 = vmatprep.mubr.f32.mxu0 %v658
        %1242 = vmatmul.mubr.f32.gmra.mrb[0].mxu0 %v566
        %v1243 = vpop.f32.mrb[0].mxu0
        %v1244 = vadd.f32 %v1019, %v1243
        %v1245 = vpop.f32.mrb[0].mxu0
        %1246 = vmatprep.mubr.f32.mxu0 %v659
        %1247 = vmatmul.mubr.f32.gmra.mrb[0].mxu0 %v567
        %v1248 = vpop.f32.mrb[0].mxu0
        %v1249 = vadd.f32 %v1024, %v1248
        %v1250 = vpop.f32.mrb[0].mxu0
        %1251 = vmatprep.mubr.f32.mxu0 %v660
        %1252 = vmatmul.mubr.f32.gmra.mrb[0].mxu0 %v568
        %v1253 = vpop.f32.mrb[0].mxu0
        %v1254 = vadd.f32 %v1029, %v1253
        %v1255 = vpop.f32.mrb[0].mxu0
        %1256 = vmatprep.mubr.f32.mxu0 %v661
        %1257 = vmatmul.mubr.f32.gmra.mrb[0].mxu0 %v569
        %v1258 = vpop.f32.mrb[0].mxu0
        %v1259 = vadd.f32 %v1034, %v1258
        %v1260 = vpop.f32.mrb[0].mxu0
        %1261 = vmatprep.mubr.f32.mxu0 %v662
        %1262 = vmatmul.mubr.f32.gmra.mrb[0].mxu0 %v570
        %v1263 = vpop.f32.mrb[0].mxu0
        %v1264 = vadd.f32 %v1039, %v1263
        %v1265 = vpop.f32.mrb[0].mxu0
        %1266 = vmatprep.mubr.f32.mxu0 %v663
        %1267 = vmatmul.mubr.f32.gmra.mrb[0].mxu0 %v571
        %v1268 = vpop.f32.mrb[0].mxu0
        %v1269 = vadd.f32 %v1044, %v1268
        %v1270 = vpop.f32.mrb[0].mxu0
        %1271 = vmatprep.mubr.f32.mxu0 %v664
        %1272 = vmatmul.mubr.f32.gmra.mrb[0].mxu0 %v572
        %v1273 = vpop.f32.mrb[0].mxu0
        %v1274 = vadd.f32 %v1049, %v1273
        %v1275 = vpop.f32.mrb[0].mxu0
        %1276 = vmatprep.mubr.f32.mxu0 %v665
        %1277 = vmatmul.mubr.f32.gmra.mrb[0].mxu0 %v573
        %v1278 = vpop.f32.mrb[0].mxu0
        %v1279 = vadd.f32 %v1054, %v1278
        %v1280 = vpop.f32.mrb[0].mxu0
        %1281 = vmatprep.mubr.f32.mxu0 %v666
        %1282 = vmatmul.mubr.f32.gmra.mrb[0].mxu0 %v574
        %v1283 = vpop.f32.mrb[0].mxu0
        %v1284 = vadd.f32 %v1059, %v1283
        %v1285 = vpop.f32.mrb[0].mxu0
        %1286 = vmatprep.mubr.f32.mxu0 %v667
        %1287 = vmatmul.mubr.f32.gmra.mrb[0].mxu0 %v575
        %v1288 = vpop.f32.mrb[0].mxu0
        %v1289 = vadd.f32 %v1064, %v1288
        %v1290 = vpop.f32.mrb[0].mxu0
        %1291 = vmatprep.mubr.f32.mxu0 %v668
        %1292 = vmatmul.mubr.f32.gmra.mrb[0].mxu0 %v576
        %v1293 = vpop.f32.mrb[0].mxu0
        %v1294 = vadd.f32 %v1069, %v1293
        %v1295 = vpop.f32.mrb[0].mxu0
        %1296 = vmatprep.mubr.f32.mxu0 %v669
        %1297 = vmatmul.mubr.f32.gmra.mrb[0].mxu0 %v577
        %v1298 = vpop.f32.mrb[0].mxu0
        %v1299 = vadd.f32 %v1074, %v1298
        %v1300 = vpop.f32.mrb[0].mxu0
        %1301 = vmatprep.mubr.f32.mxu0 %v670
        %1302 = vmatmul.mubr.f32.gmra.mrb[0].mxu0 %v578
        %v1303 = vpop.f32.mrb[0].mxu0
        %v1304 = vadd.f32 %v1079, %v1303
        %v1305 = vpop.f32.mrb[0].mxu0
        %1306 = vmatprep.mubr.f32.mxu0 %v671
        %1307 = vmatmul.mubr.f32.gmra.mrb[0].mxu0 %v579
        %v1308 = vpop.f32.mrb[0].mxu0
        %v1309 = vadd.f32 %v1084, %v1308
        %v1310 = vpop.f32.mrb[0].mxu0
        %1311 = vmatprep.mubr.f32.mxu0 %v672
        %1312 = vmatmul.mubr.f32.gmra.mrb[0].mxu0 %v580
        %v1313 = vpop.f32.mrb[0].mxu0
        %v1314 = vadd.f32 %v1089, %v1313
        %v1315 = vpop.f32.mrb[0].mxu0
        %1316 = vmatprep.mubr.f32.mxu0 %v673
        %1317 = vmatmul.mubr.f32.gmra.mrb[0].mxu0 %v581
        %v1318 = vpop.f32.mrb[0].mxu0
        %v1319 = vadd.f32 %v1094, %v1318
        %v1320 = vpop.f32.mrb[0].mxu0
        %1321 = vmatprep.mubr.f32.mxu0 %v674
        %1322 = vmatmul.mubr.f32.gmra.mrb[0].mxu0 %v582
        %v1323 = vpop.f32.mrb[0].mxu0
        %v1324 = vadd.f32 %v1099, %v1323
        %v1325 = vpop.f32.mrb[0].mxu0
        %1326 = vmatprep.mubr.f32.mxu0 %v675
        %1327 = vmatmul.mubr.f32.gmra.mrb[0].mxu0 %v583
        %v1328 = vpop.f32.mrb[0].mxu0
        %v1329 = vadd.f32 %v1104, %v1328
        %v1330 = vpop.f32.mrb[0].mxu0
        %1331 = vmatprep.mubr.f32.mxu0 %v676
        %1332 = vmatmul.mubr.f32.gmra.mrb[0].mxu0 %v584
        %v1333 = vpop.f32.mrb[0].mxu0
        %v1334 = vadd.f32 %v1109, %v1333
        %v1335 = vpop.f32.mrb[0].mxu0
        %1336 = vmatprep.mubr.f32.mxu0 %v677
        %1337 = vmatmul.mubr.f32.gmra.mrb[0].mxu0 %v585
        %v1338 = vpop.f32.mrb[0].mxu0
        %v1339 = vadd.f32 %v1114, %v1338
        %v1340 = vpop.f32.mrb[0].mxu0
        %1341 = vmatprep.mubr.f32.mxu0 %v678
        %1342 = vmatmul.mubr.f32.gmra.mrb[0].mxu0 %v586
        %v1343 = vpop.f32.mrb[0].mxu0
        %v1344 = vadd.f32 %v1119, %v1343
        %v1345 = vpop.f32.mrb[0].mxu0
        %1346 = vmatprep.mubr.f32.mxu0 %v679
        %1347 = vmatmul.mubr.f32.gmra.mrb[0].mxu0 %v587
        %v1348 = vpop.f32.mrb[0].mxu0
        %v1349 = vadd.f32 %v1124, %v1348
        %v1350 = vpop.f32.mrb[0].mxu0
        %1351 = vmatprep.mubr.f32.mxu0 %v680
        %1352 = vmatmul.mubr.f32.gmra.mrb[0].mxu0 %v588
        %v1353 = vpop.f32.mrb[0].mxu0
        %v1354 = vadd.f32 %v1129, %v1353
        %v1355 = vpop.f32.mrb[0].mxu0
        %1356 = vmatprep.mubr.f32.mxu0 %v681
        %1357 = vmatmul.mubr.f32.gmra.mrb[0].mxu0 %v589
        %v1358 = vpop.f32.mrb[0].mxu0
        %v1359 = vadd.f32 %v1134, %v1358
        %v1360 = vpop.f32.mrb[0].mxu0
        %1361 = vmatprep.mubr.f32.mxu0 %v682
        %1362 = vmatmul.mubr.f32.gmra.mrb[0].mxu0 %v590
        %v1363 = vpop.f32.mrb[0].mxu0
        %v1364 = vadd.f32 %v1139, %v1363
        %v1365 = vpop.f32.mrb[0].mxu0
        %1366 = vmatprep.mubr.f32.mxu0 %v693
        %1367 = vmatmul.mubr.f32.gmra.mrb[0].mxu0 %v688
        %v1368 = vpop.f32.mrb[0].mxu0
        %v1369 = vadd.f32 %v1144, %v1368
        %v1370 = vpop.f32.mrb[0].mxu0
        %1371 = vmatprep.mubr.f32.mxu0 %v694
        %1372 = vmatmul.mubr.f32.gmra.mrb[0].mxu0 %v689
        %v1373 = vpop.f32.mrb[0].mxu0
        %v1374 = vadd.f32 %v1149, %v1373
        %v1375 = vpop.f32.mrb[0].mxu0
        %1376 = vdwg.mxu0
        %1377 = vmatprep.subr.mxu0 0.0
        %1378 = vmatpush1.msra.mxu0 %v400
        %1379 = vmatprep.subr.mxu0 0.0
        %1380 = vmatpush1.msra.mxu0 %v401
        %1381 = vmatprep.subr.mxu0 0.0
        %1382 = vmatpush1.msra.mxu0 %v402
        %1383 = vmatprep.subr.mxu0 0.0
        %1384 = vmatpush1.msra.mxu0 %v403
        %1385 = vmatprep.subr.mxu0 0.0
        %1386 = vmatpush1.msra.mxu0 %v404
        %1387 = vmatprep.subr.mxu0 0.0
        %1388 = vmatpush1.msra.mxu0 %v405
        %1389 = vmatprep.subr.mxu0 0.0
        %1390 = vmatpush1.msra.mxu0 %v406
        %1391 = vmatprep.subr.mxu0 0.0
        %1392 = vmatpush1.msra.mxu0 %v407
        %1393 = vmatprep.subr.mxu0 0.0
        %1394 = vmatpush1.msra.mxu0 %v408
        %1395 = vmatprep.subr.mxu0 0.0
        %1396 = vmatpush1.msra.mxu0 %v409
        %1397 = vmatprep.subr.mxu0 0.0
        %1398 = vmatpush1.msra.mxu0 %v410
        %1399 = vmatprep.subr.mxu0 0.0
        %1400 = vmatpush1.msra.mxu0 %v411
        %1401 = vmatprep.subr.mxu0 0.0
        %1402 = vmatpush1.msra.mxu0 %v412
        %1403 = vmatprep.subr.mxu0 0.0
        %1404 = vmatpush1.msra.mxu0 %v413
        %1405 = vmatprep.subr.mxu0 0.0
        %1406 = vmatpush1.msra.mxu0 %v414
        %1407 = vmatprep.subr.mxu0 0.0
        %1408 = vmatpush1.msra.mxu0 %v415
        %1409 = vmatprep.subr.mxu0 0.0
        %1410 = vmatpush1.msra.mxu0 %v416
        %1411 = vmatprep.subr.mxu0 0.0
        %1412 = vmatpush1.msra.mxu0 %v417
        %1413 = vmatprep.subr.mxu0 0.0
        %1414 = vmatpush1.msra.mxu0 %v418
        %1415 = vmatprep.subr.mxu0 0.0
        %1416 = vmatpush1.msra.mxu0 %v419
        %1417 = vmatprep.subr.mxu0 0.0
        %1418 = vmatpush1.msra.mxu0 %v420
        %1419 = vmatprep.subr.mxu0 0.0
        %1420 = vmatpush1.msra.mxu0 %v421
        %1421 = vmatprep.subr.mxu0 0.0
        %1422 = vmatpush1.msra.mxu0 %v422
        %1423 = vmatprep.subr.mxu0 0.0
        %1424 = vmatpush1.msra.mxu0 %v423
        %1425 = vmatprep.subr.mxu0 0.0
        %1426 = vmatpush1.msra.mxu0 %v424
        %1427 = vmatprep.subr.mxu0 0.0
        %1428 = vmatpush1.msra.mxu0 %v425
        %1429 = vmatprep.subr.mxu0 0.0
        %1430 = vmatpush1.msra.mxu0 %v426
        %1431 = vmatprep.subr.mxu0 0.0
        %1432 = vmatpush1.msra.mxu0 %v427
        %1433 = vmatprep.subr.mxu0 0.0
        %1434 = vmatpush1.msra.mxu0 %v428
        %1435 = vmatprep.subr.mxu0 0.0
        %1436 = vmatpush1.msra.mxu0 %v429
        %1437 = vmatprep.subr.mxu0 0.0
        %1438 = vmatpush1.msra.mxu0 %v430
        %1439 = vmatprep.subr.mxu0 0.0
        %1440 = vmatpush1.msra.mxu0 %v431
        %1441 = vmatprep.mubr.f32.mxu0 %v563
        %1442 = vmatmul.mubr.f32.gmra.mrb[0].mxu0 %v533
        %v1443 = vpop.f32.mrb[0].mxu0
        %v1444 = vadd.f32 %v1219, %v1443
        %v1445 = vpop.f32.mrb[0].mxu0
        %1446 = vmatprep.mubr.f32.mxu0 %v564
        %1447 = vmatmul.mubr.f32.gmra.mrb[0].mxu0 %v534
        %v1448 = vpop.f32.mrb[0].mxu0
        %v1449 = vadd.f32 %v1224, %v1448
        %v1450 = vpop.f32.mrb[0].mxu0
        %1451 = vmatprep.mubr.f32.mxu0 %v565
        %1452 = vmatmul.mubr.f32.gmra.mrb[0].mxu0 %v535
        %v1453 = vpop.f32.mrb[0].mxu0
        %v1454 = vadd.f32 %v1229, %v1453
        %v1455 = vpop.f32.mrb[0].mxu0
        %1456 = vmatprep.mubr.f32.mxu0 %v566
        %1457 = vmatmul.mubr.f32.gmra.mrb[0].mxu0 %v536
        %v1458 = vpop.f32.mrb[0].mxu0
        %v1459 = vadd.f32 %v1234, %v1458
        %v1460 = vpop.f32.mrb[0].mxu0
        %1461 = vmatprep.mubr.f32.mxu0 %v567
        %1462 = vmatmul.mubr.f32.gmra.mrb[0].mxu0 %v537
        %v1463 = vpop.f32.mrb[0].mxu0
        %v1464 = vadd.f32 %v1239, %v1463
        %v1465 = vpop.f32.mrb[0].mxu0
        %1466 = vmatprep.mubr.f32.mxu0 %v568
        %1467 = vmatmul.mubr.f32.gmra.mrb[0].mxu0 %v538
        %v1468 = vpop.f32.mrb[0].mxu0
        %v1469 = vadd.f32 %v1244, %v1468
        %v1470 = vpop.f32.mrb[0].mxu0
        %1471 = vmatprep.mubr.f32.mxu0 %v569
        %1472 = vmatmul.mubr.f32.gmra.mrb[0].mxu0 %v539
        %v1473 = vpop.f32.mrb[0].mxu0
        %v1474 = vadd.f32 %v1249, %v1473
        %v1475 = vpop.f32.mrb[0].mxu0
        %1476 = vmatprep.mubr.f32.mxu0 %v570
        %1477 = vmatmul.mubr.f32.gmra.mrb[0].mxu0 %v540
        %v1478 = vpop.f32.mrb[0].mxu0
        %v1479 = vadd.f32 %v1254, %v1478
        %v1480 = vpop.f32.mrb[0].mxu0
        %1481 = vmatprep.mubr.f32.mxu0 %v571
        %1482 = vmatmul.mubr.f32.gmra.mrb[0].mxu0 %v541
        %v1483 = vpop.f32.mrb[0].mxu0
        %v1484 = vadd.f32 %v1259, %v1483
        %v1485 = vpop.f32.mrb[0].mxu0
        %1486 = vmatprep.mubr.f32.mxu0 %v572
        %1487 = vmatmul.mubr.f32.gmra.mrb[0].mxu0 %v542
        %v1488 = vpop.f32.mrb[0].mxu0
        %v1489 = vadd.f32 %v1264, %v1488
        %v1490 = vpop.f32.mrb[0].mxu0
        %1491 = vmatprep.mubr.f32.mxu0 %v573
        %1492 = vmatmul.mubr.f32.gmra.mrb[0].mxu0 %v543
        %v1493 = vpop.f32.mrb[0].mxu0
        %v1494 = vadd.f32 %v1269, %v1493
        %v1495 = vpop.f32.mrb[0].mxu0
        %1496 = vmatprep.mubr.f32.mxu0 %v574
        %1497 = vmatmul.mubr.f32.gmra.mrb[0].mxu0 %v544
        %v1498 = vpop.f32.mrb[0].mxu0
        %v1499 = vadd.f32 %v1274, %v1498
        %v1500 = vpop.f32.mrb[0].mxu0
        %1501 = vmatprep.mubr.f32.mxu0 %v575
        %1502 = vmatmul.mubr.f32.gmra.mrb[0].mxu0 %v545
        %v1503 = vpop.f32.mrb[0].mxu0
        %v1504 = vadd.f32 %v1279, %v1503
        %v1505 = vpop.f32.mrb[0].mxu0
        %1506 = vmatprep.mubr.f32.mxu0 %v576
        %1507 = vmatmul.mubr.f32.gmra.mrb[0].mxu0 %v546
        %v1508 = vpop.f32.mrb[0].mxu0
        %v1509 = vadd.f32 %v1284, %v1508
        %v1510 = vpop.f32.mrb[0].mxu0
        %1511 = vmatprep.mubr.f32.mxu0 %v577
        %1512 = vmatmul.mubr.f32.gmra.mrb[0].mxu0 %v547
        %v1513 = vpop.f32.mrb[0].mxu0
        %v1514 = vadd.f32 %v1289, %v1513
        %v1515 = vpop.f32.mrb[0].mxu0
        %1516 = vmatprep.mubr.f32.mxu0 %v578
        %1517 = vmatmul.mubr.f32.gmra.mrb[0].mxu0 %v548
        %v1518 = vpop.f32.mrb[0].mxu0
        %v1519 = vadd.f32 %v1294, %v1518
        %v1520 = vpop.f32.mrb[0].mxu0
        %1521 = vmatprep.mubr.f32.mxu0 %v579
        %1522 = vmatmul.mubr.f32.gmra.mrb[0].mxu0 %v549
        %v1523 = vpop.f32.mrb[0].mxu0
        %v1524 = vadd.f32 %v1299, %v1523
        %v1525 = vpop.f32.mrb[0].mxu0
        %1526 = vmatprep.mubr.f32.mxu0 %v580
        %1527 = vmatmul.mubr.f32.gmra.mrb[0].mxu0 %v550
        %v1528 = vpop.f32.mrb[0].mxu0
        %v1529 = vadd.f32 %v1304, %v1528
        %v1530 = vpop.f32.mrb[0].mxu0
        %1531 = vmatprep.mubr.f32.mxu0 %v581
        %1532 = vmatmul.mubr.f32.gmra.mrb[0].mxu0 %v551
        %v1533 = vpop.f32.mrb[0].mxu0
        %v1534 = vadd.f32 %v1309, %v1533
        %v1535 = vpop.f32.mrb[0].mxu0
        %1536 = vmatprep.mubr.f32.mxu0 %v582
        %1537 = vmatmul.mubr.f32.gmra.mrb[0].mxu0 %v552
        %v1538 = vpop.f32.mrb[0].mxu0
        %v1539 = vadd.f32 %v1314, %v1538
        %v1540 = vpop.f32.mrb[0].mxu0
        %1541 = vmatprep.mubr.f32.mxu0 %v583
        %1542 = vmatmul.mubr.f32.gmra.mrb[0].mxu0 %v553
        %v1543 = vpop.f32.mrb[0].mxu0
        %v1544 = vadd.f32 %v1319, %v1543
        %v1545 = vpop.f32.mrb[0].mxu0
        %1546 = vmatprep.mubr.f32.mxu0 %v584
        %1547 = vmatmul.mubr.f32.gmra.mrb[0].mxu0 %v554
        %v1548 = vpop.f32.mrb[0].mxu0
        %v1549 = vadd.f32 %v1324, %v1548
        %v1550 = vpop.f32.mrb[0].mxu0
        %1551 = vmatprep.mubr.f32.mxu0 %v585
        %1552 = vmatmul.mubr.f32.gmra.mrb[0].mxu0 %v555
        %v1553 = vpop.f32.mrb[0].mxu0
        %v1554 = vadd.f32 %v1329, %v1553
        %v1555 = vpop.f32.mrb[0].mxu0
        %1556 = vmatprep.mubr.f32.mxu0 %v586
        %1557 = vmatmul.mubr.f32.gmra.mrb[0].mxu0 %v556
        %v1558 = vpop.f32.mrb[0].mxu0
        %v1559 = vadd.f32 %v1334, %v1558
        %v1560 = vpop.f32.mrb[0].mxu0
        %1561 = vmatprep.mubr.f32.mxu0 %v587
        %1562 = vmatmul.mubr.f32.gmra.mrb[0].mxu0 %v557
        %v1563 = vpop.f32.mrb[0].mxu0
        %v1564 = vadd.f32 %v1339, %v1563
        %v1565 = vpop.f32.mrb[0].mxu0
        %1566 = vmatprep.mubr.f32.mxu0 %v588
        %1567 = vmatmul.mubr.f32.gmra.mrb[0].mxu0 %v558
        %v1568 = vpop.f32.mrb[0].mxu0
        %v1569 = vadd.f32 %v1344, %v1568
        %v1570 = vpop.f32.mrb[0].mxu0
        %1571 = vmatprep.mubr.f32.mxu0 %v589
        %1572 = vmatmul.mubr.f32.gmra.mrb[0].mxu0 %v559
        %v1573 = vpop.f32.mrb[0].mxu0
        %v1574 = vadd.f32 %v1349, %v1573
        %v1575 = vpop.f32.mrb[0].mxu0
        %1576 = vmatprep.mubr.f32.mxu0 %v590
        %1577 = vmatmul.mubr.f32.gmra.mrb[0].mxu0 %v560
        %v1578 = vpop.f32.mrb[0].mxu0
        %v1579 = vadd.f32 %v1354, %v1578
        %v1580 = vpop.f32.mrb[0].mxu0
        %1581 = vmatprep.mubr.f32.mxu0 %v688
        %1582 = vmatmul.mubr.f32.gmra.mrb[0].mxu0 %v686
        %v1583 = vpop.f32.mrb[0].mxu0
        %v1584 = vadd.f32 %v1359, %v1583
        %v1585 = vpop.f32.mrb[0].mxu0
        %1586 = vmatprep.mubr.f32.mxu0 %v689
        %1587 = vmatmul.mubr.f32.gmra.mrb[0].mxu0 %v687
        %v1588 = vpop.f32.mrb[0].mxu0
        %v1589 = vadd.f32 %v1364, %v1588
        %v1590 = vpop.f32.mrb[0].mxu0
        %1591 = vmatprep.mubr.f32.mxu0 0.0
        %1592 = vmatmul.mubr.f32.gmra.mrb[0].mxu0 0.0
        %v1593 = vpop.f32.mrb[0].mxu0
        %v1594 = vadd.f32 %v1369, %v1593
        %v1595 = vpop.f32.mrb[0].mxu0
        %1596 = vmatprep.mubr.f32.mxu0 0.0
        %1597 = vmatmul.mubr.f32.gmra.mrb[0].mxu0 0.0
        %v1598 = vpop.f32.mrb[0].mxu0
        %v1599 = vadd.f32 %v1374, %v1598
        %v1600 = vpop.f32.mrb[0].mxu0
        %1601 = vdwg.mxu0
        %1602 = vmatprep.subr.mxu0 0.0
        %1603 = vmatpush1.msra.mxu0 %v432
        %1604 = vmatprep.subr.mxu0 0.0
        %1605 = vmatpush1.msra.mxu0 %v433
        %1606 = vmatprep.subr.mxu0 0.0
        %1607 = vmatpush1.msra.mxu0 %v434
        %1608 = vmatprep.subr.mxu0 0.0
        %1609 = vmatpush1.msra.mxu0 %v435
        %1610 = vmatprep.subr.mxu0 0.0
        %1611 = vmatpush1.msra.mxu0 %v436
        %1612 = vmatprep.subr.mxu0 0.0
        %1613 = vmatpush1.msra.mxu0 %v437
        %1614 = vmatprep.subr.mxu0 0.0
        %1615 = vmatpush1.msra.mxu0 %v438
        %1616 = vmatprep.subr.mxu0 0.0
        %1617 = vmatpush1.msra.mxu0 %v439
        %1618 = vmatprep.subr.mxu0 0.0
        %1619 = vmatpush1.msra.mxu0 %v440
        %1620 = vmatprep.subr.mxu0 0.0
        %1621 = vmatpush1.msra.mxu0 %v441
        %1622 = vmatprep.subr.mxu0 0.0
        %1623 = vmatpush1.msra.mxu0 %v442
        %1624 = vmatprep.subr.mxu0 0.0
        %1625 = vmatpush1.msra.mxu0 %v443
        %1626 = vmatprep.subr.mxu0 0.0
        %1627 = vmatpush1.msra.mxu0 %v444
        %1628 = vmatprep.subr.mxu0 0.0
        %1629 = vmatpush1.msra.mxu0 %v445
        %1630 = vmatprep.subr.mxu0 0.0
        %1631 = vmatpush1.msra.mxu0 %v446
        %1632 = vmatprep.subr.mxu0 0.0
        %1633 = vmatpush1.msra.mxu0 %v447
        %1634 = vmatprep.subr.mxu0 0.0
        %1635 = vmatpush1.msra.mxu0 0.0
        %1636 = vmatprep.subr.mxu0 0.0
        %1637 = vmatpush1.msra.mxu0 0.0
        %1638 = vmatprep.subr.mxu0 0.0
        %1639 = vmatpush1.msra.mxu0 0.0
        %1640 = vmatprep.subr.mxu0 0.0
        %1641 = vmatpush1.msra.mxu0 0.0
        %1642 = vmatprep.subr.mxu0 0.0
        %1643 = vmatpush1.msra.mxu0 0.0
        %1644 = vmatprep.subr.mxu0 0.0
        %1645 = vmatpush1.msra.mxu0 0.0
        %1646 = vmatprep.subr.mxu0 0.0
        %1647 = vmatpush1.msra.mxu0 0.0
        %1648 = vmatprep.subr.mxu0 0.0
        %1649 = vmatpush1.msra.mxu0 0.0
        %1650 = vmatprep.subr.mxu0 0.0
        %1651 = vmatpush1.msra.mxu0 0.0
        %1652 = vmatprep.subr.mxu0 0.0
        %1653 = vmatpush1.msra.mxu0 0.0
        %1654 = vmatprep.subr.mxu0 0.0
        %1655 = vmatpush1.msra.mxu0 0.0
        %1656 = vmatprep.subr.mxu0 0.0
        %1657 = vmatpush1.msra.mxu0 0.0
        %1658 = vmatprep.subr.mxu0 0.0
        %1659 = vmatpush1.msra.mxu0 0.0
        %1660 = vmatprep.subr.mxu0 0.0
        %1661 = vmatpush1.msra.mxu0 0.0
        %1662 = vmatprep.subr.mxu0 0.0
        %1663 = vmatpush1.msra.mxu0 0.0
        %1664 = vmatprep.subr.mxu0 0.0
        %1665 = vmatpush1.msra.mxu0 0.0
        %1666 = vmatprep.mubr.f32.mxu0 0.0
        %1667 = vmatmul.mubr.f32.gmra.mrb[0].mxu0 %v655
        %v1668 = vpop.f32.mrb[0].mxu0
        %v1669 = vadd.f32 %v1444, %v1668
        %v1670 = vpop.f32.mrb[0].mxu0
        %1671 = vmatprep.mubr.f32.mxu0 0.0
        %1672 = vmatmul.mubr.f32.gmra.mrb[0].mxu0 %v656
        %v1673 = vpop.f32.mrb[0].mxu0
        %v1674 = vadd.f32 %v1449, %v1673
        %v1675 = vpop.f32.mrb[0].mxu0
        %1676 = vmatprep.mubr.f32.mxu0 0.0
        %1677 = vmatmul.mubr.f32.gmra.mrb[0].mxu0 %v657
        %v1678 = vpop.f32.mrb[0].mxu0
        %v1679 = vadd.f32 %v1454, %v1678
        %v1680 = vpop.f32.mrb[0].mxu0
        %1681 = vmatprep.mubr.f32.mxu0 0.0
        %1682 = vmatmul.mubr.f32.gmra.mrb[0].mxu0 %v658
        %v1683 = vpop.f32.mrb[0].mxu0
        %v1684 = vadd.f32 %v1459, %v1683
        %v1685 = vpop.f32.mrb[0].mxu0
        %1686 = vmatprep.mubr.f32.mxu0 0.0
        %1687 = vmatmul.mubr.f32.gmra.mrb[0].mxu0 %v659
        %v1688 = vpop.f32.mrb[0].mxu0
        %v1689 = vadd.f32 %v1464, %v1688
        %v1690 = vpop.f32.mrb[0].mxu0
        %1691 = vmatprep.mubr.f32.mxu0 0.0
        %1692 = vmatmul.mubr.f32.gmra.mrb[0].mxu0 %v660
        %v1693 = vpop.f32.mrb[0].mxu0
        %v1694 = vadd.f32 %v1469, %v1693
        %v1695 = vpop.f32.mrb[0].mxu0
        %1696 = vmatprep.mubr.f32.mxu0 0.0
        %1697 = vmatmul.mubr.f32.gmra.mrb[0].mxu0 %v661
        %v1698 = vpop.f32.mrb[0].mxu0
        %v1699 = vadd.f32 %v1474, %v1698
        %v1700 = vpop.f32.mrb[0].mxu0
        %1701 = vmatprep.mubr.f32.mxu0 0.0
        %1702 = vmatmul.mubr.f32.gmra.mrb[0].mxu0 %v662
        %v1703 = vpop.f32.mrb[0].mxu0
        %v1704 = vadd.f32 %v1479, %v1703
        %v1705 = vpop.f32.mrb[0].mxu0
        %1706 = vmatprep.mubr.f32.mxu0 0.0
        %1707 = vmatmul.mubr.f32.gmra.mrb[0].mxu0 %v663
        %v1708 = vpop.f32.mrb[0].mxu0
        %v1709 = vadd.f32 %v1484, %v1708
        %v1710 = vpop.f32.mrb[0].mxu0
        %1711 = vmatprep.mubr.f32.mxu0 0.0
        %1712 = vmatmul.mubr.f32.gmra.mrb[0].mxu0 %v664
        %v1713 = vpop.f32.mrb[0].mxu0
        %v1714 = vadd.f32 %v1489, %v1713
        %v1715 = vpop.f32.mrb[0].mxu0
        %1716 = vmatprep.mubr.f32.mxu0 0.0
        %1717 = vmatmul.mubr.f32.gmra.mrb[0].mxu0 %v665
        %v1718 = vpop.f32.mrb[0].mxu0
        %v1719 = vadd.f32 %v1494, %v1718
        %v1720 = vpop.f32.mrb[0].mxu0
        %1721 = vmatprep.mubr.f32.mxu0 0.0
        %1722 = vmatmul.mubr.f32.gmra.mrb[0].mxu0 %v666
        %v1723 = vpop.f32.mrb[0].mxu0
        %v1724 = vadd.f32 %v1499, %v1723
        %v1725 = vpop.f32.mrb[0].mxu0
        %1726 = vmatprep.mubr.f32.mxu0 0.0
        %1727 = vmatmul.mubr.f32.gmra.mrb[0].mxu0 %v667
        %v1728 = vpop.f32.mrb[0].mxu0
        %v1729 = vadd.f32 %v1504, %v1728
        %v1730 = vpop.f32.mrb[0].mxu0
        %1731 = vmatprep.mubr.f32.mxu0 0.0
        %1732 = vmatmul.mubr.f32.gmra.mrb[0].mxu0 %v668
        %v1733 = vpop.f32.mrb[0].mxu0
        %v1734 = vadd.f32 %v1509, %v1733
        %v1735 = vpop.f32.mrb[0].mxu0
        %1736 = vmatprep.mubr.f32.mxu0 0.0
        %1737 = vmatmul.mubr.f32.gmra.mrb[0].mxu0 %v669
        %v1738 = vpop.f32.mrb[0].mxu0
        %v1739 = vadd.f32 %v1514, %v1738
        %v1740 = vpop.f32.mrb[0].mxu0
        %1741 = vmatprep.mubr.f32.mxu0 0.0
        %1742 = vmatmul.mubr.f32.gmra.mrb[0].mxu0 %v670
        %v1743 = vpop.f32.mrb[0].mxu0
        %v1744 = vadd.f32 %v1519, %v1743
        %v1745 = vpop.f32.mrb[0].mxu0
        %1746 = vmatprep.mubr.f32.mxu0 0.0
        %1747 = vmatmul.mubr.f32.gmra.mrb[0].mxu0 %v671
        %v1748 = vpop.f32.mrb[0].mxu0
        %v1749 = vadd.f32 %v1524, %v1748
        %v1750 = vpop.f32.mrb[0].mxu0
        %1751 = vmatprep.mubr.f32.mxu0 0.0
        %1752 = vmatmul.mubr.f32.gmra.mrb[0].mxu0 %v672
        %v1753 = vpop.f32.mrb[0].mxu0
        %v1754 = vadd.f32 %v1529, %v1753
        %v1755 = vpop.f32.mrb[0].mxu0
        %1756 = vmatprep.mubr.f32.mxu0 0.0
        %1757 = vmatmul.mubr.f32.gmra.mrb[0].mxu0 %v673
        %v1758 = vpop.f32.mrb[0].mxu0
        %v1759 = vadd.f32 %v1534, %v1758
        %v1760 = vpop.f32.mrb[0].mxu0
        %1761 = vmatprep.mubr.f32.mxu0 0.0
        %1762 = vmatmul.mubr.f32.gmra.mrb[0].mxu0 %v674
        %v1763 = vpop.f32.mrb[0].mxu0
        %v1764 = vadd.f32 %v1539, %v1763
        %v1765 = vpop.f32.mrb[0].mxu0
        %1766 = vmatprep.mubr.f32.mxu0 0.0
        %1767 = vmatmul.mubr.f32.gmra.mrb[0].mxu0 %v675
        %v1768 = vpop.f32.mrb[0].mxu0
        %v1769 = vadd.f32 %v1544, %v1768
        %v1770 = vpop.f32.mrb[0].mxu0
        %1771 = vmatprep.mubr.f32.mxu0 0.0
        %1772 = vmatmul.mubr.f32.gmra.mrb[0].mxu0 %v676
        %v1773 = vpop.f32.mrb[0].mxu0
        %v1774 = vadd.f32 %v1549, %v1773
        %v1775 = vpop.f32.mrb[0].mxu0
        %1776 = vmatprep.mubr.f32.mxu0 0.0
        %1777 = vmatmul.mubr.f32.gmra.mrb[0].mxu0 %v677
        %v1778 = vpop.f32.mrb[0].mxu0
        %v1779 = vadd.f32 %v1554, %v1778
        %v1780 = vpop.f32.mrb[0].mxu0
        %1781 = vmatprep.mubr.f32.mxu0 0.0
        %1782 = vmatmul.mubr.f32.gmra.mrb[0].mxu0 %v678
        %v1783 = vpop.f32.mrb[0].mxu0
        %v1784 = vadd.f32 %v1559, %v1783
        %v1785 = vpop.f32.mrb[0].mxu0
        %1786 = vmatprep.mubr.f32.mxu0 0.0
        %1787 = vmatmul.mubr.f32.gmra.mrb[0].mxu0 %v679
        %v1788 = vpop.f32.mrb[0].mxu0
        %v1789 = vadd.f32 %v1564, %v1788
        %v1790 = vpop.f32.mrb[0].mxu0
        %1791 = vmatprep.mubr.f32.mxu0 0.0
        %1792 = vmatmul.mubr.f32.gmra.mrb[0].mxu0 %v680
        %v1793 = vpop.f32.mrb[0].mxu0
        %v1794 = vadd.f32 %v1569, %v1793
        %v1795 = vpop.f32.mrb[0].mxu0
        %1796 = vmatprep.mubr.f32.mxu0 0.0
        %1797 = vmatmul.mubr.f32.gmra.mrb[0].mxu0 %v681
        %v1798 = vpop.f32.mrb[0].mxu0
        %v1799 = vadd.f32 %v1574, %v1798
        %v1800 = vpop.f32.mrb[0].mxu0
        %1801 = vmatprep.mubr.f32.mxu0 0.0
        %1802 = vmatmul.mubr.f32.gmra.mrb[0].mxu0 %v682
        %v1803 = vpop.f32.mrb[0].mxu0
        %v1804 = vadd.f32 %v1579, %v1803
        %v1805 = vpop.f32.mrb[0].mxu0
        %1806 = vmatprep.mubr.f32.mxu0 0.0
        %1807 = vmatmul.mubr.f32.gmra.mrb[0].mxu0 %v693
        %v1808 = vpop.f32.mrb[0].mxu0
        %v1809 = vadd.f32 %v1584, %v1808
        %v1810 = vpop.f32.mrb[0].mxu0
        %1811 = vmatprep.mubr.f32.mxu0 0.0
        %1812 = vmatmul.mubr.f32.gmra.mrb[0].mxu0 %v694
        %v1813 = vpop.f32.mrb[0].mxu0
        %v1814 = vadd.f32 %v1589, %v1813
        %v1815 = vpop.f32.mrb[0].mxu0
        %1816 = vmatprep.mubr.f32.mxu0 0.0
        %1817 = vmatmul.mubr.f32.gmra.mrb[0].mxu0 0.0
        %v1818 = vpop.f32.mrb[0].mxu0
        %v1819 = vadd.f32 %v1594, %v1818
        %v1820 = vpop.f32.mrb[0].mxu0
        %1821 = vmatprep.mubr.f32.mxu0 0.0
        %1822 = vmatmul.mubr.f32.gmra.mrb[0].mxu0 0.0
        %v1823 = vpop.f32.mrb[0].mxu0
        %v1824 = vadd.f32 %v1599, %v1823
        %v1825 = vpop.f32.mrb[0].mxu0
        %1826 = vdwg.mxu0
        %v1827 = vmax.f32 %v1669, 0.0
        %v1828 = vmax.f32 %v1674, 0.0
        %v1829 = vmax.f32 %v1679, 0.0
        %v1830 = vmax.f32 %v1684, 0.0
        %v1831 = vmax.f32 %v1689, 0.0
        %v1832 = vmax.f32 %v1694, 0.0
        %v1833 = vmax.f32 %v1699, 0.0
        %v1834 = vmax.f32 %v1704, 0.0
        %v1835 = vmax.f32 %v1709, 0.0
        %v1836 = vmax.f32 %v1714, 0.0
        %v1837 = vmax.f32 %v1719, 0.0
        %v1838 = vmax.f32 %v1724, 0.0
        %v1839 = vmax.f32 %v1729, 0.0
        %v1840 = vmax.f32 %v1734, 0.0
        %v1841 = vmax.f32 %v1739, 0.0
        %v1842 = vmax.f32 %v1744, 0.0
        %v1843 = vmax.f32 %v1749, 0.0
        %v1844 = vmax.f32 %v1754, 0.0
        %v1845 = vmax.f32 %v1759, 0.0
        %v1846 = vmax.f32 %v1764, 0.0
        %v1847 = vmax.f32 %v1769, 0.0
        %v1848 = vmax.f32 %v1774, 0.0
        %v1849 = vmax.f32 %v1779, 0.0
        %v1850 = vmax.f32 %v1784, 0.0
        %v1851 = vmax.f32 %v1789, 0.0
        %v1852 = vmax.f32 %v1794, 0.0
        %v1853 = vmax.f32 %v1799, 0.0
        %v1854 = vmax.f32 %v1804, 0.0
        %v1855 = vmax.f32 %v1809, 0.0
        %v1856 = vmax.f32 %v1814, 0.0
        %v1857 = vmax.f32 %v1819, 0.0
        %v1858 = vmax.f32 %v1824, 0.0
        %v1859 = vld [vmem:[#allocation7] sm:$0xff]
        %v1860 = vld [vmem:[#allocation7 + $0x8] sm:$0xff]
        %v1861 = vld [vmem:[#allocation7 + $0x10] sm:$0xff]
        %v1862 = vld [vmem:[#allocation7 + $0x18] sm:$0xff]
        %v1863 = vld [vmem:[#allocation7 + $0x20] sm:$0xff]
        %v1864 = vld [vmem:[#allocation7 + $0x28] sm:$0xff]
        %v1865 = vld [vmem:[#allocation7 + $0x30] sm:$0xff]
        %v1866 = vld [vmem:[#allocation7 + $0x38] sm:$0xff]
        %v1867 = vld [vmem:[#allocation7 + $0x40] sm:$0xff]
        %v1868 = vld [vmem:[#allocation7 + $0x48] sm:$0xff]
        %v1869 = vld [vmem:[#allocation7 + $0x50] sm:$0xff]
        %v1870 = vld [vmem:[#allocation7 + $0x58] sm:$0xff]
        %v1871 = vld [vmem:[#allocation7 + $0x60] sm:$0xff]
        %v1872 = vld [vmem:[#allocation7 + $0x68] sm:$0xff]
        %v1873 = vld [vmem:[#allocation7 + $0x70] sm:$0xff]
        %v1874 = vld [vmem:[#allocation7 + $0x78] sm:$0xff]
        %v1875 = vld [vmem:[#allocation7 + $0x80] sm:$0xff]
        %v1876 = vld [vmem:[#allocation7 + $0x88] sm:$0xff]
        %v1877 = vld [vmem:[#allocation7 + $0x90] sm:$0xff]
        %v1878 = vld [vmem:[#allocation7 + $0x98] sm:$0xff]
        %v1879 = vld [vmem:[#allocation7 + $0xa0] sm:$0xff]
        %v1880 = vld [vmem:[#allocation7 + $0xa8] sm:$0xff]
        %v1881 = vld [vmem:[#allocation7 + $0xb0] sm:$0xff]
        %v1882 = vld [vmem:[#allocation7 + $0xb8] sm:$0xff]
        %v1883 = vld [vmem:[#allocation7 + $0xc0] sm:$0xff]
        %v1884 = vld [vmem:[#allocation7 + $0xc8] sm:$0xff]
        %v1885 = vld [vmem:[#allocation7 + $0xd0] sm:$0xff]
        %v1886 = vld [vmem:[#allocation7 + $0xd8] sm:$0xff]
        %v1887 = vld [vmem:[#allocation7 + $0xe0] sm:$0xff]
        %v1888 = vld [vmem:[#allocation7 + $0xe8] sm:$0xff]
        %v1889 = vld [vmem:[#allocation7 + $0xf0] sm:$0xff]
        %v1890 = vld [vmem:[#allocation7 + $0xf8] sm:$0xff]
        %v1891 = vld [vmem:[#allocation7 + $0x100] sm:$0xff]
        %v1892 = vld [vmem:[#allocation7 + $0x108] sm:$0xff]
        %v1893 = vld [vmem:[#allocation7 + $0x110] sm:$0xff]
        %v1894 = vld [vmem:[#allocation7 + $0x118] sm:$0xff]
        %v1895 = vld [vmem:[#allocation7 + $0x120] sm:$0xff]
        %v1896 = vld [vmem:[#allocation7 + $0x128] sm:$0xff]
        %v1897 = vld [vmem:[#allocation7 + $0x130] sm:$0xff]
        %v1898 = vld [vmem:[#allocation7 + $0x138] sm:$0xff]
        %v1899 = vld [vmem:[#allocation7 + $0x140] sm:$0xff]
        %v1900 = vld [vmem:[#allocation7 + $0x148] sm:$0xff]
        %v1901 = vld [vmem:[#allocation7 + $0x150] sm:$0xff]
        %v1902 = vld [vmem:[#allocation7 + $0x158] sm:$0xff]
        %v1903 = vld [vmem:[#allocation7 + $0x160] sm:$0xff]
        %v1904 = vld [vmem:[#allocation7 + $0x168] sm:$0xff]
        %v1905 = vld [vmem:[#allocation7 + $0x170] sm:$0xff]
        %v1906 = vld [vmem:[#allocation7 + $0x178] sm:$0xff]
        %v1907 = vld [vmem:[#allocation7 + $0x180] sm:$0xff]
        %v1908 = vld [vmem:[#allocation7 + $0x188] sm:$0xff]
        %v1909 = vld [vmem:[#allocation7 + $0x190] sm:$0xff]
        %v1910 = vld [vmem:[#allocation7 + $0x198] sm:$0xff]
        %v1911 = vld [vmem:[#allocation7 + $0x1a0] sm:$0xff]
        %v1912 = vld [vmem:[#allocation7 + $0x1a8] sm:$0xff]
        %v1913 = vld [vmem:[#allocation7 + $0x1b0] sm:$0xff]
        %v1914 = vld [vmem:[#allocation7 + $0x1b8] sm:$0xff]
        %v1915 = vld [vmem:[#allocation7 + $0x1c0] sm:$0xff]
        %v1916 = vld [vmem:[#allocation7 + $0x1c8] sm:$0xff]
        %v1917 = vld [vmem:[#allocation7 + $0x1d0] sm:$0xff]
        %v1918 = vld [vmem:[#allocation7 + $0x1d8] sm:$0xff]
        %v1919 = vld [vmem:[#allocation7 + $0x1e0] sm:$0xff]
        %v1920 = vld [vmem:[#allocation7 + $0x1e8] sm:$0xff]
        %v1921 = vld [vmem:[#allocation7 + $0x1f0] sm:$0xff]
        %v1922 = vld [vmem:[#allocation7 + $0x1f8] sm:$0xff]
        %v1923 = vld [vmem:[#allocation7 + $0x200] sm:$0xff]
        %v1924 = vld [vmem:[#allocation7 + $0x208] sm:$0xff]
        %v1925 = vld [vmem:[#allocation7 + $0x210] sm:$0xff]
        %v1926 = vld [vmem:[#allocation7 + $0x218] sm:$0xff]
        %v1927 = vld [vmem:[#allocation7 + $0x220] sm:$0xff]
        %v1928 = vld [vmem:[#allocation7 + $0x228] sm:$0xff]
        %v1929 = vld [vmem:[#allocation7 + $0x230] sm:$0xff]
        %v1930 = vld [vmem:[#allocation7 + $0x238] sm:$0xff]
        %v1931 = vld [vmem:[#allocation7 + $0x240] sm:$0xff]
        %v1932 = vld [vmem:[#allocation7 + $0x248] sm:$0xff]
        %v1933 = vld [vmem:[#allocation7 + $0x250] sm:$0xff]
        %v1934 = vld [vmem:[#allocation7 + $0x258] sm:$0xff]
        %v1935 = vld [vmem:[#allocation7 + $0x260] sm:$0xff]
        %v1936 = vld [vmem:[#allocation7 + $0x268] sm:$0xff]
        %v1937 = vld [vmem:[#allocation7 + $0x270] sm:$0xff]
        %v1938 = vld [vmem:[#allocation7 + $0x278] sm:$0xff]
        %v1939 = vld [vmem:[#allocation7 + $0x280] sm:$0xff]
        %v1940 = vld [vmem:[#allocation7 + $0x288] sm:$0xff]
        %v1941 = vld [vmem:[#allocation7 + $0x290] sm:$0xff]
        %v1942 = vld [vmem:[#allocation7 + $0x298] sm:$0xff]
        %v1943 = vld [vmem:[#allocation7 + $0x2a0] sm:$0xff]
        %v1944 = vld [vmem:[#allocation7 + $0x2a8] sm:$0xff]
        %v1945 = vld [vmem:[#allocation7 + $0x2b0] sm:$0xff]
        %v1946 = vld [vmem:[#allocation7 + $0x2b8] sm:$0xff]
        %v1947 = vld [vmem:[#allocation7 + $0x2c0] sm:$0xff]
        %v1948 = vld [vmem:[#allocation7 + $0x2c8] sm:$0xff]
        %v1949 = vld [vmem:[#allocation7 + $0x2d0] sm:$0xff]
        %v1950 = vld [vmem:[#allocation7 + $0x2d8] sm:$0xff]
        %v1951 = vld [vmem:[#allocation7 + $0x2e0] sm:$0xff]
        %v1952 = vld [vmem:[#allocation7 + $0x2e8] sm:$0xff]
        %v1953 = vld [vmem:[#allocation7 + $0x2f0] sm:$0xff]
        %v1954 = vld [vmem:[#allocation7 + $0x2f8] sm:$0xff]
        %v1955 = vld [vmem:[#allocation7 + $0x300] sm:$0xff]
        %v1956 = vld [vmem:[#allocation7 + $0x308] sm:$0xff]
        %v1957 = vld [vmem:[#allocation7 + $0x310] sm:$0xff]
        %v1958 = vld [vmem:[#allocation7 + $0x318] sm:$0xff]
        %v1959 = vld [vmem:[#allocation7 + $0x320] sm:$0xff]
        %v1960 = vld [vmem:[#allocation7 + $0x328] sm:$0xff]
        %v1961 = vld [vmem:[#allocation7 + $0x330] sm:$0xff]
        %v1962 = vld [vmem:[#allocation7 + $0x338] sm:$0xff]
        %v1963 = vld [vmem:[#allocation7 + $0x340] sm:$0xff]
        %v1964 = vld [vmem:[#allocation7 + $0x348] sm:$0xff]
        %v1965 = vld [vmem:[#allocation7 + $0x350] sm:$0xff]
        %v1966 = vld [vmem:[#allocation7 + $0x358] sm:$0xff]
        %v1967 = vld [vmem:[#allocation7 + $0x360] sm:$0xff]
        %v1968 = vld [vmem:[#allocation7 + $0x368] sm:$0xff]
        %v1969 = vld [vmem:[#allocation7 + $0x370] sm:$0xff]
        %v1970 = vld [vmem:[#allocation7 + $0x378] sm:$0xff]
        %v1971 = vld [vmem:[#allocation7 + $0x380] sm:$0xff]
        %v1972 = vld [vmem:[#allocation7 + $0x388] sm:$0xff]
        %v1973 = vld [vmem:[#allocation7 + $0x390] sm:$0xff]
        %v1974 = vld [vmem:[#allocation7 + $0x398] sm:$0xff]
        %v1975 = vld [vmem:[#allocation7 + $0x3a0] sm:$0xff]
        %v1976 = vld [vmem:[#allocation7 + $0x3a8] sm:$0xff]
        %v1977 = vld [vmem:[#allocation7 + $0x3b0] sm:$0xff]
        %v1978 = vld [vmem:[#allocation7 + $0x3b8] sm:$0xff]
        %v1979 = vld [vmem:[#allocation7 + $0x3c0] sm:$0xff]
        %v1980 = vld [vmem:[#allocation7 + $0x3c8] sm:$0xff]
        %v1981 = vld [vmem:[#allocation7 + $0x3d0] sm:$0xff]
        %v1982 = vld [vmem:[#allocation7 + $0x3d8] sm:$0xff]
        %v1983 = vld [vmem:[#allocation7 + $0x3e0] sm:$0xff]
        %v1984 = vld [vmem:[#allocation7 + $0x3e8] sm:$0xff]
        %v1985 = vld [vmem:[#allocation7 + $0x3f0] sm:$0xff]
        %v1986 = vld [vmem:[#allocation7 + $0x3f8] sm:$0xff]
        %v1987 = vld [vmem:[#allocation7 + $0x400] sm:$0xff]
        %v1988 = vld [vmem:[#allocation7 + $0x408] sm:$0xff]
        %v1989 = vld [vmem:[#allocation7 + $0x410] sm:$0xff]
        %v1990 = vld [vmem:[#allocation7 + $0x418] sm:$0xff]
        %v1991 = vld [vmem:[#allocation7 + $0x420] sm:$0xff]
        %v1992 = vld [vmem:[#allocation7 + $0x428] sm:$0xff]
        %v1993 = vld [vmem:[#allocation7 + $0x430] sm:$0xff]
        %v1994 = vld [vmem:[#allocation7 + $0x438] sm:$0xff]
        %v1995 = vld [vmem:[#allocation7 + $0x440] sm:$0xff]
        %v1996 = vld [vmem:[#allocation7 + $0x448] sm:$0xff]
        %v1997 = vld [vmem:[#allocation7 + $0x450] sm:$0xff]
        %v1998 = vld [vmem:[#allocation7 + $0x458] sm:$0xff]
        %v1999 = vld [vmem:[#allocation7 + $0x460] sm:$0xff]
        %v2000 = vld [vmem:[#allocation7 + $0x468] sm:$0xff]
        %v2001 = vld [vmem:[#allocation7 + $0x470] sm:$0xff]
        %v2002 = vld [vmem:[#allocation7 + $0x478] sm:$0xff]
        %v2003 = vrot.slane %v1827, 7
        %v2004 = vrot.slane %v1828, 7
        %v2005 = vrot.slane %v1829, 7
        %v2006 = vrot.slane %v1830, 7
        %v2007 = vrot.slane %v1831, 7
        %v2008 = vrot.slane %v1832, 7
        %v2009 = vrot.slane %v1833, 7
        %v2010 = vrot.slane %v1834, 7
        %v2011 = vrot.slane %v1835, 7
        %v2012 = vrot.slane %v1836, 7
        %v2013 = vrot.slane %v1837, 7
        %v2014 = vrot.slane %v1838, 7
        %v2015 = vrot.slane %v1839, 7
        %v2016 = vrot.slane %v1840, 7
        %v2017 = vrot.slane %v1841, 7
        %v2018 = vrot.slane %v1842, 7
        %v2019 = vrot.slane %v1843, 7
        %v2020 = vrot.slane %v1844, 7
        %v2021 = vrot.slane %v1845, 7
        %v2022 = vrot.slane %v1846, 7
        %v2023 = vrot.slane %v1847, 7
        %v2024 = vrot.slane %v1848, 7
        %v2025 = vrot.slane %v1849, 7
        %v2026 = vrot.slane %v1850, 7
        %v2027 = vrot.slane %v1851, 7
        %v2028 = vrot.slane %v1852, 7
        %v2029 = vrot.slane %v1853, 7
        %v2030 = vrot.slane %v1854, 7
        %v2031 = vrot.slane %v1855, 7
        %v2032 = vrot.slane %v1856, 7
        %v2033 = vrot.slane %v1858, 7
        %v2034 = vsel %vm500, %v2031, %v2032
        %v2035 = vsel %vm500, %v2030, %v2031
        %v2036 = vsel %vm500, %v2029, %v2030
        %v2037 = vsel %vm500, %v2028, %v2029
        %v2038 = vsel %vm500, %v2027, %v2028
        %v2039 = vsel %vm500, %v2026, %v2027
        %v2040 = vsel %vm500, %v2025, %v2026
        %v2041 = vsel %vm500, %v2024, %v2025
        %v2042 = vsel %vm500, %v2023, %v2024
        %v2043 = vsel %vm500, %v2022, %v2023
        %v2044 = vsel %vm500, %v2021, %v2022
        %v2045 = vsel %vm500, %v2020, %v2021
        %v2046 = vsel %vm500, %v2019, %v2020
        %v2047 = vsel %vm500, %v2018, %v2019
        %v2048 = vsel %vm500, %v2017, %v2018
        %v2049 = vsel %vm500, %v2016, %v2017
        %v2050 = vsel %vm500, %v2015, %v2016
        %v2051 = vsel %vm500, %v2014, %v2015
        %v2052 = vsel %vm500, %v2013, %v2014
        %v2053 = vsel %vm500, %v2012, %v2013
        %v2054 = vsel %vm500, %v2011, %v2012
        %v2055 = vsel %vm500, %v2010, %v2011
        %v2056 = vsel %vm500, %v2009, %v2010
        %v2057 = vsel %vm500, %v2008, %v2009
        %v2058 = vsel %vm500, %v2007, %v2008
        %v2059 = vsel %vm500, %v2006, %v2007
        %v2060 = vsel %vm500, %v2005, %v2006
        %v2061 = vsel %vm500, %v2004, %v2005
        %v2062 = vsel %vm500, %v2003, %v2004
        %v2063 = vsel %vm500, %v2033, %v2003
        %v2064 = vsel %vm455, %v2063, 0.0
        %v2065 = vsel %vm456, %v2062, 0.0
        %v2066 = vsel %vm455, %v2061, 0.0
        %v2067 = vsel %vm456, %v2060, 0.0
        %v2068 = vsel %vm455, %v2059, 0.0
        %v2069 = vsel %vm456, %v2058, 0.0
        %v2070 = vsel %vm455, %v2057, 0.0
        %v2071 = vsel %vm456, %v2056, 0.0
        %v2072 = vsel %vm455, %v2055, 0.0
        %v2073 = vsel %vm456, %v2054, 0.0
        %v2074 = vsel %vm455, %v2053, 0.0
        %v2075 = vsel %vm456, %v2052, 0.0
        %v2076 = vsel %vm455, %v2051, 0.0
        %v2077 = vsel %vm456, %v2050, 0.0
        %v2078 = vsel %vm455, %v2049, 0.0
        %v2079 = vsel %vm456, %v2048, 0.0
        %v2080 = vsel %vm455, %v2047, 0.0
        %v2081 = vsel %vm456, %v2046, 0.0
        %v2082 = vsel %vm455, %v2045, 0.0
        %v2083 = vsel %vm456, %v2044, 0.0
        %v2084 = vsel %vm455, %v2043, 0.0
        %v2085 = vsel %vm456, %v2042, 0.0
        %v2086 = vsel %vm455, %v2041, 0.0
        %v2087 = vsel %vm456, %v2040, 0.0
        %v2088 = vsel %vm455, %v2039, 0.0
        %v2089 = vsel %vm456, %v2038, 0.0
        %v2090 = vsel %vm455, %v2037, 0.0
        %v2091 = vsel %vm456, %v2036, 0.0
        %v2092 = vsel %vm455, %v2035, 0.0
        %v2093 = vsel %vm456, %v2034, 0.0
        %v2094 = vsel %vm461, %v1827, 0.0
        %v2095 = vsel %vm462, %v1828, 0.0
        %v2096 = vsel %vm461, %v1829, 0.0
        %v2097 = vsel %vm462, %v1830, 0.0
        %v2098 = vsel %vm461, %v1831, 0.0
        %v2099 = vsel %vm462, %v1832, 0.0
        %v2100 = vsel %vm461, %v1833, 0.0
        %v2101 = vsel %vm462, %v1834, 0.0
        %v2102 = vsel %vm461, %v1835, 0.0
        %v2103 = vsel %vm462, %v1836, 0.0
        %v2104 = vsel %vm461, %v1837, 0.0
        %v2105 = vsel %vm462, %v1838, 0.0
        %v2106 = vsel %vm461, %v1839, 0.0
        %v2107 = vsel %vm462, %v1840, 0.0
        %v2108 = vsel %vm461, %v1841, 0.0
        %v2109 = vsel %vm462, %v1842, 0.0
        %v2110 = vsel %vm461, %v1843, 0.0
        %v2111 = vsel %vm462, %v1844, 0.0
        %v2112 = vsel %vm461, %v1845, 0.0
        %v2113 = vsel %vm462, %v1846, 0.0
        %v2114 = vsel %vm461, %v1847, 0.0
        %v2115 = vsel %vm462, %v1848, 0.0
        %v2116 = vsel %vm461, %v1849, 0.0
        %v2117 = vsel %vm462, %v1850, 0.0
        %v2118 = vsel %vm461, %v1851, 0.0
        %v2119 = vsel %vm462, %v1852, 0.0
        %v2120 = vsel %vm461, %v1853, 0.0
        %v2121 = vsel %vm462, %v1854, 0.0
        %v2122 = vsel %vm461, %v1855, 0.0
        %v2123 = vsel %vm462, %v1856, 0.0
        %v2124 = vrot.slane %v1827, 1
        %v2125 = vrot.slane %v1828, 1
        %v2126 = vrot.slane %v1829, 1
        %v2127 = vrot.slane %v1830, 1
        %v2128 = vrot.slane %v1831, 1
        %v2129 = vrot.slane %v1832, 1
        %v2130 = vrot.slane %v1833, 1
        %v2131 = vrot.slane %v1834, 1
        %v2132 = vrot.slane %v1835, 1
        %v2133 = vrot.slane %v1836, 1
        %v2134 = vrot.slane %v1837, 1
        %v2135 = vrot.slane %v1838, 1
        %v2136 = vrot.slane %v1839, 1
        %v2137 = vrot.slane %v1840, 1
        %v2138 = vrot.slane %v1841, 1
        %v2139 = vrot.slane %v1842, 1
        %v2140 = vrot.slane %v1843, 1
        %v2141 = vrot.slane %v1844, 1
        %v2142 = vrot.slane %v1845, 1
        %v2143 = vrot.slane %v1846, 1
        %v2144 = vrot.slane %v1847, 1
        %v2145 = vrot.slane %v1848, 1
        %v2146 = vrot.slane %v1849, 1
        %v2147 = vrot.slane %v1850, 1
        %v2148 = vrot.slane %v1851, 1
        %v2149 = vrot.slane %v1852, 1
        %v2150 = vrot.slane %v1853, 1
        %v2151 = vrot.slane %v1854, 1
        %v2152 = vrot.slane %v1855, 1
        %v2153 = vrot.slane %v1856, 1
        %v2154 = vrot.slane %v1857, 1
        %v2155 = vsel %vm622, %v2153, %v2154
        %v2156 = vsel %vm622, %v2152, %v2153
        %v2157 = vsel %vm622, %v2151, %v2152
        %v2158 = vsel %vm622, %v2150, %v2151
        %v2159 = vsel %vm622, %v2149, %v2150
        %v2160 = vsel %vm622, %v2148, %v2149
        %v2161 = vsel %vm622, %v2147, %v2148
        %v2162 = vsel %vm622, %v2146, %v2147
        %v2163 = vsel %vm622, %v2145, %v2146
        %v2164 = vsel %vm622, %v2144, %v2145
        %v2165 = vsel %vm622, %v2143, %v2144
        %v2166 = vsel %vm622, %v2142, %v2143
        %v2167 = vsel %vm622, %v2141, %v2142
        %v2168 = vsel %vm622, %v2140, %v2141
        %v2169 = vsel %vm622, %v2139, %v2140
        %v2170 = vsel %vm622, %v2138, %v2139
        %v2171 = vsel %vm622, %v2137, %v2138
        %v2172 = vsel %vm622, %v2136, %v2137
        %v2173 = vsel %vm622, %v2135, %v2136
        %v2174 = vsel %vm622, %v2134, %v2135
        %v2175 = vsel %vm622, %v2133, %v2134
        %v2176 = vsel %vm622, %v2132, %v2133
        %v2177 = vsel %vm622, %v2131, %v2132
        %v2178 = vsel %vm622, %v2130, %v2131
        %v2179 = vsel %vm622, %v2129, %v2130
        %v2180 = vsel %vm622, %v2128, %v2129
        %v2181 = vsel %vm622, %v2127, %v2128
        %v2182 = vsel %vm622, %v2126, %v2127
        %v2183 = vsel %vm622, %v2125, %v2126
        %v2184 = vsel %vm622, %v2124, %v2125
        %v2185 = vsel %vm467, %v2184, 0.0
        %v2186 = vsel %vm468, %v2183, 0.0
        %v2187 = vsel %vm467, %v2182, 0.0
        %v2188 = vsel %vm468, %v2181, 0.0
        %v2189 = vsel %vm467, %v2180, 0.0
        %v2190 = vsel %vm468, %v2179, 0.0
        %v2191 = vsel %vm467, %v2178, 0.0
        %v2192 = vsel %vm468, %v2177, 0.0
        %v2193 = vsel %vm467, %v2176, 0.0
        %v2194 = vsel %vm468, %v2175, 0.0
        %v2195 = vsel %vm467, %v2174, 0.0
        %v2196 = vsel %vm468, %v2173, 0.0
        %v2197 = vsel %vm467, %v2172, 0.0
        %v2198 = vsel %vm468, %v2171, 0.0
        %v2199 = vsel %vm467, %v2170, 0.0
        %v2200 = vsel %vm468, %v2169, 0.0
        %v2201 = vsel %vm467, %v2168, 0.0
        %v2202 = vsel %vm468, %v2167, 0.0
        %v2203 = vsel %vm467, %v2166, 0.0
        %v2204 = vsel %vm468, %v2165, 0.0
        %v2205 = vsel %vm467, %v2164, 0.0
        %v2206 = vsel %vm468, %v2163, 0.0
        %v2207 = vsel %vm467, %v2162, 0.0
        %v2208 = vsel %vm468, %v2161, 0.0
        %v2209 = vsel %vm467, %v2160, 0.0
        %v2210 = vsel %vm468, %v2159, 0.0
        %v2211 = vsel %vm467, %v2158, 0.0
        %v2212 = vsel %vm468, %v2157, 0.0
        %v2213 = vsel %vm467, %v2156, 0.0
        %v2214 = vsel %vm468, %v2155, 0.0
        %v2215 = vrot.slane %v1857, 7
        %v2216 = vsel %vm500, %v2215, %v2033
        %v2217 = vsel %vm500, %v2032, %v2215
        %v2218 = vsel %vm455, %v2217, 0.0
        %v2219 = vsel %vm456, %v2216, 0.0
        %v2220 = vsel %vm461, %v1857, 0.0
        %v2221 = vsel %vm462, %v1858, 0.0
        %v2222 = vrot.slane %v1858, 1
        %v2223 = vsel %vm622, %v2154, %v2222
        %v2224 = vsel %vm622, %v2222, %v2124
        %v2225 = vsel %vm467, %v2223, 0.0
        %v2226 = vsel %vm468, %v2224, 0.0
        %v2227 = vld [vmem:[%s4] sm:$0x1]
        %v2229 = vlaneseq
        %v2230 = vshrl.u32 %v2229, 7
        %v2231 = vsub.s32 0, %v2230
        %v2232 = vrot.slane %v2227, %v2231
        %2234 = vmatprep.subr.mxu0 0.0
        %2235 = vmatpush1.msra.mxu0 %v1859
        %2236 = vmatprep.subr.mxu0 0.0
        %2237 = vmatpush1.msra.mxu0 %v1860
        %2238 = vmatprep.subr.mxu0 0.0
        %2239 = vmatpush1.msra.mxu0 %v1861
        %2240 = vmatprep.subr.mxu0 0.0
        %2241 = vmatpush1.msra.mxu0 %v1862
        %2242 = vmatprep.subr.mxu0 0.0
        %2243 = vmatpush1.msra.mxu0 %v1863
        %2244 = vmatprep.subr.mxu0 0.0
        %2245 = vmatpush1.msra.mxu0 %v1864
        %2246 = vmatprep.subr.mxu0 0.0
        %2247 = vmatpush1.msra.mxu0 %v1865
        %2248 = vmatprep.subr.mxu0 0.0
        %2249 = vmatpush1.msra.mxu0 %v1866
        %2250 = vmatprep.subr.mxu0 0.0
        %2251 = vmatpush1.msra.mxu0 %v1867
        %2252 = vmatprep.subr.mxu0 0.0
        %2253 = vmatpush1.msra.mxu0 %v1868
        %2254 = vmatprep.subr.mxu0 0.0
        %2255 = vmatpush1.msra.mxu0 %v1869
        %2256 = vmatprep.subr.mxu0 0.0
        %2257 = vmatpush1.msra.mxu0 %v1870
        %2258 = vmatprep.subr.mxu0 0.0
        %2259 = vmatpush1.msra.mxu0 %v1871
        %2260 = vmatprep.subr.mxu0 0.0
        %2261 = vmatpush1.msra.mxu0 %v1872
        %2262 = vmatprep.subr.mxu0 0.0
        %2263 = vmatpush1.msra.mxu0 %v1873
        %2264 = vmatprep.subr.mxu0 0.0
        %2265 = vmatpush1.msra.mxu0 %v1874
        %2266 = vmatprep.subr.mxu0 0.0
        %2267 = vmatpush1.msra.mxu0 %v1875
        %2268 = vmatprep.subr.mxu0 0.0
        %2269 = vmatpush1.msra.mxu0 %v1876
        %2270 = vmatprep.subr.mxu0 0.0
        %2271 = vmatpush1.msra.mxu0 %v1877
        %2272 = vmatprep.subr.mxu0 0.0
        %2273 = vmatpush1.msra.mxu0 %v1878
        %2274 = vmatprep.subr.mxu0 0.0
        %2275 = vmatpush1.msra.mxu0 %v1879
        %2276 = vmatprep.subr.mxu0 0.0
        %2277 = vmatpush1.msra.mxu0 %v1880
        %2278 = vmatprep.subr.mxu0 0.0
        %2279 = vmatpush1.msra.mxu0 %v1881
        %2280 = vmatprep.subr.mxu0 0.0
        %2281 = vmatpush1.msra.mxu0 %v1882
        %2282 = vmatprep.subr.mxu0 0.0
        %2283 = vmatpush1.msra.mxu0 %v1883
        %2284 = vmatprep.subr.mxu0 0.0
        %2285 = vmatpush1.msra.mxu0 %v1884
        %2286 = vmatprep.subr.mxu0 0.0
        %2287 = vmatpush1.msra.mxu0 %v1885
        %2288 = vmatprep.subr.mxu0 0.0
        %2289 = vmatpush1.msra.mxu0 %v1886
        %2290 = vmatprep.subr.mxu0 0.0
        %2291 = vmatpush1.msra.mxu0 %v1887
        %2292 = vmatprep.subr.mxu0 0.0
        %2293 = vmatpush1.msra.mxu0 %v1888
        %2294 = vmatprep.subr.mxu0 0.0
        %2295 = vmatpush1.msra.mxu0 %v1889
        %2296 = vmatprep.subr.mxu0 0.0
        %2297 = vmatpush1.msra.mxu0 %v1890
        %2298 = vmatprep.mubr.f32.mxu0 0.0
        %2299 = vmatmul.mubr.f32.gmra.mrb[0].mxu0 0.0
        %v2300 = vpop.f32.mrb[0].mxu0
        %v2301 = vadd.f32 %v2232, %v2300
        %v2302 = vpop.f32.mrb[0].mxu0
        %2303 = vmatprep.mubr.f32.mxu0 0.0
        %2304 = vmatmul.mubr.f32.gmra.mrb[0].mxu0 0.0
        %v2305 = vpop.f32.mrb[0].mxu0
        %v2306 = vadd.f32 %v2232, %v2305
        %v2307 = vpop.f32.mrb[0].mxu0
        %2308 = vmatprep.mubr.f32.mxu0 %v2094
        %2309 = vmatmul.mubr.f32.gmra.mrb[0].mxu0 %v2064
        %v2310 = vpop.f32.mrb[0].mxu0
        %v2311 = vadd.f32 %v2232, %v2310
        %v2312 = vpop.f32.mrb[0].mxu0
        %2313 = vmatprep.mubr.f32.mxu0 %v2095
        %2314 = vmatmul.mubr.f32.gmra.mrb[0].mxu0 %v2065
        %v2315 = vpop.f32.mrb[0].mxu0
        %v2316 = vadd.f32 %v2232, %v2315
        %v2317 = vpop.f32.mrb[0].mxu0
        %2318 = vmatprep.mubr.f32.mxu0 %v2096
        %2319 = vmatmul.mubr.f32.gmra.mrb[0].mxu0 %v2066
        %v2320 = vpop.f32.mrb[0].mxu0
        %v2321 = vadd.f32 %v2232, %v2320
        %v2322 = vpop.f32.mrb[0].mxu0
        %2323 = vmatprep.mubr.f32.mxu0 %v2097
        %2324 = vmatmul.mubr.f32.gmra.mrb[0].mxu0 %v2067
        %v2325 = vpop.f32.mrb[0].mxu0
        %v2326 = vadd.f32 %v2232, %v2325
        %v2327 = vpop.f32.mrb[0].mxu0
        %2328 = vmatprep.mubr.f32.mxu0 %v2098
        %2329 = vmatmul.mubr.f32.gmra.mrb[0].mxu0 %v2068
        %v2330 = vpop.f32.mrb[0].mxu0
        %v2331 = vadd.f32 %v2232, %v2330
        %v2332 = vpop.f32.mrb[0].mxu0
        %2333 = vmatprep.mubr.f32.mxu0 %v2099
        %2334 = vmatmul.mubr.f32.gmra.mrb[0].mxu0 %v2069
        %v2335 = vpop.f32.mrb[0].mxu0
        %v2336 = vadd.f32 %v2232, %v2335
        %v2337 = vpop.f32.mrb[0].mxu0
        %2338 = vmatprep.mubr.f32.mxu0 %v2100
        %2339 = vmatmul.mubr.f32.gmra.mrb[0].mxu0 %v2070
        %v2340 = vpop.f32.mrb[0].mxu0
        %v2341 = vadd.f32 %v2232, %v2340
        %v2342 = vpop.f32.mrb[0].mxu0
        %2343 = vmatprep.mubr.f32.mxu0 %v2101
        %2344 = vmatmul.mubr.f32.gmra.mrb[0].mxu0 %v2071
        %v2345 = vpop.f32.mrb[0].mxu0
        %v2346 = vadd.f32 %v2232, %v2345
        %v2347 = vpop.f32.mrb[0].mxu0
        %2348 = vmatprep.mubr.f32.mxu0 %v2102
        %2349 = vmatmul.mubr.f32.gmra.mrb[0].mxu0 %v2072
        %v2350 = vpop.f32.mrb[0].mxu0
        %v2351 = vadd.f32 %v2232, %v2350
        %v2352 = vpop.f32.mrb[0].mxu0
        %2353 = vmatprep.mubr.f32.mxu0 %v2103
        %2354 = vmatmul.mubr.f32.gmra.mrb[0].mxu0 %v2073
        %v2355 = vpop.f32.mrb[0].mxu0
        %v2356 = vadd.f32 %v2232, %v2355
        %v2357 = vpop.f32.mrb[0].mxu0
        %2358 = vmatprep.mubr.f32.mxu0 %v2104
        %2359 = vmatmul.mubr.f32.gmra.mrb[0].mxu0 %v2074
        %v2360 = vpop.f32.mrb[0].mxu0
        %v2361 = vadd.f32 %v2232, %v2360
        %v2362 = vpop.f32.mrb[0].mxu0
        %2363 = vmatprep.mubr.f32.mxu0 %v2105
        %2364 = vmatmul.mubr.f32.gmra.mrb[0].mxu0 %v2075
        %v2365 = vpop.f32.mrb[0].mxu0
        %v2366 = vadd.f32 %v2232, %v2365
        %v2367 = vpop.f32.mrb[0].mxu0
        %2368 = vmatprep.mubr.f32.mxu0 %v2106
        %2369 = vmatmul.mubr.f32.gmra.mrb[0].mxu0 %v2076
        %v2370 = vpop.f32.mrb[0].mxu0
        %v2371 = vadd.f32 %v2232, %v2370
        %v2372 = vpop.f32.mrb[0].mxu0
        %2373 = vmatprep.mubr.f32.mxu0 %v2107
        %2374 = vmatmul.mubr.f32.gmra.mrb[0].mxu0 %v2077
        %v2375 = vpop.f32.mrb[0].mxu0
        %v2376 = vadd.f32 %v2232, %v2375
        %v2377 = vpop.f32.mrb[0].mxu0
        %2378 = vmatprep.mubr.f32.mxu0 %v2108
        %2379 = vmatmul.mubr.f32.gmra.mrb[0].mxu0 %v2078
        %v2380 = vpop.f32.mrb[0].mxu0
        %v2381 = vadd.f32 %v2232, %v2380
        %v2382 = vpop.f32.mrb[0].mxu0
        %2383 = vmatprep.mubr.f32.mxu0 %v2109
        %2384 = vmatmul.mubr.f32.gmra.mrb[0].mxu0 %v2079
        %v2385 = vpop.f32.mrb[0].mxu0
        %v2386 = vadd.f32 %v2232, %v2385
        %v2387 = vpop.f32.mrb[0].mxu0
        %2388 = vmatprep.mubr.f32.mxu0 %v2110
        %2389 = vmatmul.mubr.f32.gmra.mrb[0].mxu0 %v2080
        %v2390 = vpop.f32.mrb[0].mxu0
        %v2391 = vadd.f32 %v2232, %v2390
        %v2392 = vpop.f32.mrb[0].mxu0
        %2393 = vmatprep.mubr.f32.mxu0 %v2111
        %2394 = vmatmul.mubr.f32.gmra.mrb[0].mxu0 %v2081
        %v2395 = vpop.f32.mrb[0].mxu0
        %v2396 = vadd.f32 %v2232, %v2395
        %v2397 = vpop.f32.mrb[0].mxu0
        %2398 = vmatprep.mubr.f32.mxu0 %v2112
        %2399 = vmatmul.mubr.f32.gmra.mrb[0].mxu0 %v2082
        %v2400 = vpop.f32.mrb[0].mxu0
        %v2401 = vadd.f32 %v2232, %v2400
        %v2402 = vpop.f32.mrb[0].mxu0
        %2403 = vmatprep.mubr.f32.mxu0 %v2113
        %2404 = vmatmul.mubr.f32.gmra.mrb[0].mxu0 %v2083
        %v2405 = vpop.f32.mrb[0].mxu0
        %v2406 = vadd.f32 %v2232, %v2405
        %v2407 = vpop.f32.mrb[0].mxu0
        %2408 = vmatprep.mubr.f32.mxu0 %v2114
        %2409 = vmatmul.mubr.f32.gmra.mrb[0].mxu0 %v2084
        %v2410 = vpop.f32.mrb[0].mxu0
        %v2411 = vadd.f32 %v2232, %v2410
        %v2412 = vpop.f32.mrb[0].mxu0
        %2413 = vmatprep.mubr.f32.mxu0 %v2115
        %2414 = vmatmul.mubr.f32.gmra.mrb[0].mxu0 %v2085
        %v2415 = vpop.f32.mrb[0].mxu0
        %v2416 = vadd.f32 %v2232, %v2415
        %v2417 = vpop.f32.mrb[0].mxu0
        %2418 = vmatprep.mubr.f32.mxu0 %v2116
        %2419 = vmatmul.mubr.f32.gmra.mrb[0].mxu0 %v2086
        %v2420 = vpop.f32.mrb[0].mxu0
        %v2421 = vadd.f32 %v2232, %v2420
        %v2422 = vpop.f32.mrb[0].mxu0
        %2423 = vmatprep.mubr.f32.mxu0 %v2117
        %2424 = vmatmul.mubr.f32.gmra.mrb[0].mxu0 %v2087
        %v2425 = vpop.f32.mrb[0].mxu0
        %v2426 = vadd.f32 %v2232, %v2425
        %v2427 = vpop.f32.mrb[0].mxu0
        %2428 = vmatprep.mubr.f32.mxu0 %v2118
        %2429 = vmatmul.mubr.f32.gmra.mrb[0].mxu0 %v2088
        %v2430 = vpop.f32.mrb[0].mxu0
        %v2431 = vadd.f32 %v2232, %v2430
        %v2432 = vpop.f32.mrb[0].mxu0
        %2433 = vmatprep.mubr.f32.mxu0 %v2119
        %2434 = vmatmul.mubr.f32.gmra.mrb[0].mxu0 %v2089
        %v2435 = vpop.f32.mrb[0].mxu0
        %v2436 = vadd.f32 %v2232, %v2435
        %v2437 = vpop.f32.mrb[0].mxu0
        %2438 = vmatprep.mubr.f32.mxu0 %v2120
        %2439 = vmatmul.mubr.f32.gmra.mrb[0].mxu0 %v2090
        %v2440 = vpop.f32.mrb[0].mxu0
        %v2441 = vadd.f32 %v2232, %v2440
        %v2442 = vpop.f32.mrb[0].mxu0
        %2443 = vmatprep.mubr.f32.mxu0 %v2121
        %2444 = vmatmul.mubr.f32.gmra.mrb[0].mxu0 %v2091
        %v2445 = vpop.f32.mrb[0].mxu0
        %v2446 = vadd.f32 %v2232, %v2445
        %v2447 = vpop.f32.mrb[0].mxu0
        %2448 = vmatprep.mubr.f32.mxu0 %v2122
        %2449 = vmatmul.mubr.f32.gmra.mrb[0].mxu0 %v2092
        %v2450 = vpop.f32.mrb[0].mxu0
        %v2451 = vadd.f32 %v2232, %v2450
        %v2452 = vpop.f32.mrb[0].mxu0
        %2453 = vmatprep.mubr.f32.mxu0 %v2123
        %2454 = vmatmul.mubr.f32.gmra.mrb[0].mxu0 %v2093
        %v2455 = vpop.f32.mrb[0].mxu0
        %v2456 = vadd.f32 %v2232, %v2455
        %v2457 = vpop.f32.mrb[0].mxu0
        %2458 = vdwg.mxu0
        %2459 = vmatprep.subr.mxu0 0.0
        %2460 = vmatpush1.msra.mxu0 %v1891
        %2461 = vmatprep.subr.mxu0 0.0
        %2462 = vmatpush1.msra.mxu0 %v1892
        %2463 = vmatprep.subr.mxu0 0.0
        %2464 = vmatpush1.msra.mxu0 %v1893
        %2465 = vmatprep.subr.mxu0 0.0
        %2466 = vmatpush1.msra.mxu0 %v1894
        %2467 = vmatprep.subr.mxu0 0.0
        %2468 = vmatpush1.msra.mxu0 %v1895
        %2469 = vmatprep.subr.mxu0 0.0
        %2470 = vmatpush1.msra.mxu0 %v1896
        %2471 = vmatprep.subr.mxu0 0.0
        %2472 = vmatpush1.msra.mxu0 %v1897
        %2473 = vmatprep.subr.mxu0 0.0
        %2474 = vmatpush1.msra.mxu0 %v1898
        %2475 = vmatprep.subr.mxu0 0.0
        %2476 = vmatpush1.msra.mxu0 %v1899
        %2477 = vmatprep.subr.mxu0 0.0
        %2478 = vmatpush1.msra.mxu0 %v1900
        %2479 = vmatprep.subr.mxu0 0.0
        %2480 = vmatpush1.msra.mxu0 %v1901
        %2481 = vmatprep.subr.mxu0 0.0
        %2482 = vmatpush1.msra.mxu0 %v1902
        %2483 = vmatprep.subr.mxu0 0.0
        %2484 = vmatpush1.msra.mxu0 %v1903
        %2485 = vmatprep.subr.mxu0 0.0
        %2486 = vmatpush1.msra.mxu0 %v1904
        %2487 = vmatprep.subr.mxu0 0.0
        %2488 = vmatpush1.msra.mxu0 %v1905
        %2489 = vmatprep.subr.mxu0 0.0
        %2490 = vmatpush1.msra.mxu0 %v1906
        %2491 = vmatprep.subr.mxu0 0.0
        %2492 = vmatpush1.msra.mxu0 %v1907
        %2493 = vmatprep.subr.mxu0 0.0
        %2494 = vmatpush1.msra.mxu0 %v1908
        %2495 = vmatprep.subr.mxu0 0.0
        %2496 = vmatpush1.msra.mxu0 %v1909
        %2497 = vmatprep.subr.mxu0 0.0
        %2498 = vmatpush1.msra.mxu0 %v1910
        %2499 = vmatprep.subr.mxu0 0.0
        %2500 = vmatpush1.msra.mxu0 %v1911
        %2501 = vmatprep.subr.mxu0 0.0
        %2502 = vmatpush1.msra.mxu0 %v1912
        %2503 = vmatprep.subr.mxu0 0.0
        %2504 = vmatpush1.msra.mxu0 %v1913
        %2505 = vmatprep.subr.mxu0 0.0
        %2506 = vmatpush1.msra.mxu0 %v1914
        %2507 = vmatprep.subr.mxu0 0.0
        %2508 = vmatpush1.msra.mxu0 %v1915
        %2509 = vmatprep.subr.mxu0 0.0
        %2510 = vmatpush1.msra.mxu0 %v1916
        %2511 = vmatprep.subr.mxu0 0.0
        %2512 = vmatpush1.msra.mxu0 %v1917
        %2513 = vmatprep.subr.mxu0 0.0
        %2514 = vmatpush1.msra.mxu0 %v1918
        %2515 = vmatprep.subr.mxu0 0.0
        %2516 = vmatpush1.msra.mxu0 %v1919
        %2517 = vmatprep.subr.mxu0 0.0
        %2518 = vmatpush1.msra.mxu0 %v1920
        %2519 = vmatprep.subr.mxu0 0.0
        %2520 = vmatpush1.msra.mxu0 %v1921
        %2521 = vmatprep.subr.mxu0 0.0
        %2522 = vmatpush1.msra.mxu0 %v1922
        %2523 = vmatprep.mubr.f32.mxu0 %v2064
        %2524 = vmatmul.mubr.f32.gmra.mrb[0].mxu0 0.0
        %v2525 = vpop.f32.mrb[0].mxu0
        %v2526 = vadd.f32 %v2301, %v2525
        %v2527 = vpop.f32.mrb[0].mxu0
        %2528 = vmatprep.mubr.f32.mxu0 %v2065
        %2529 = vmatmul.mubr.f32.gmra.mrb[0].mxu0 0.0
        %v2530 = vpop.f32.mrb[0].mxu0
        %v2531 = vadd.f32 %v2306, %v2530
        %v2532 = vpop.f32.mrb[0].mxu0
        %2533 = vmatprep.mubr.f32.mxu0 %v2066
        %2534 = vmatmul.mubr.f32.gmra.mrb[0].mxu0 %v2185
        %v2535 = vpop.f32.mrb[0].mxu0
        %v2536 = vadd.f32 %v2311, %v2535
        %v2537 = vpop.f32.mrb[0].mxu0
        %2538 = vmatprep.mubr.f32.mxu0 %v2067
        %2539 = vmatmul.mubr.f32.gmra.mrb[0].mxu0 %v2186
        %v2540 = vpop.f32.mrb[0].mxu0
        %v2541 = vadd.f32 %v2316, %v2540
        %v2542 = vpop.f32.mrb[0].mxu0
        %2543 = vmatprep.mubr.f32.mxu0 %v2068
        %2544 = vmatmul.mubr.f32.gmra.mrb[0].mxu0 %v2187
        %v2545 = vpop.f32.mrb[0].mxu0
        %v2546 = vadd.f32 %v2321, %v2545
        %v2547 = vpop.f32.mrb[0].mxu0
        %2548 = vmatprep.mubr.f32.mxu0 %v2069
        %2549 = vmatmul.mubr.f32.gmra.mrb[0].mxu0 %v2188
        %v2550 = vpop.f32.mrb[0].mxu0
        %v2551 = vadd.f32 %v2326, %v2550
        %v2552 = vpop.f32.mrb[0].mxu0
        %2553 = vmatprep.mubr.f32.mxu0 %v2070
        %2554 = vmatmul.mubr.f32.gmra.mrb[0].mxu0 %v2189
        %v2555 = vpop.f32.mrb[0].mxu0
        %v2556 = vadd.f32 %v2331, %v2555
        %v2557 = vpop.f32.mrb[0].mxu0
        %2558 = vmatprep.mubr.f32.mxu0 %v2071
        %2559 = vmatmul.mubr.f32.gmra.mrb[0].mxu0 %v2190
        %v2560 = vpop.f32.mrb[0].mxu0
        %v2561 = vadd.f32 %v2336, %v2560
        %v2562 = vpop.f32.mrb[0].mxu0
        %2563 = vmatprep.mubr.f32.mxu0 %v2072
        %2564 = vmatmul.mubr.f32.gmra.mrb[0].mxu0 %v2191
        %v2565 = vpop.f32.mrb[0].mxu0
        %v2566 = vadd.f32 %v2341, %v2565
        %v2567 = vpop.f32.mrb[0].mxu0
        %2568 = vmatprep.mubr.f32.mxu0 %v2073
        %2569 = vmatmul.mubr.f32.gmra.mrb[0].mxu0 %v2192
        %v2570 = vpop.f32.mrb[0].mxu0
        %v2571 = vadd.f32 %v2346, %v2570
        %v2572 = vpop.f32.mrb[0].mxu0
        %2573 = vmatprep.mubr.f32.mxu0 %v2074
        %2574 = vmatmul.mubr.f32.gmra.mrb[0].mxu0 %v2193
        %v2575 = vpop.f32.mrb[0].mxu0
        %v2576 = vadd.f32 %v2351, %v2575
        %v2577 = vpop.f32.mrb[0].mxu0
        %2578 = vmatprep.mubr.f32.mxu0 %v2075
        %2579 = vmatmul.mubr.f32.gmra.mrb[0].mxu0 %v2194
        %v2580 = vpop.f32.mrb[0].mxu0
        %v2581 = vadd.f32 %v2356, %v2580
        %v2582 = vpop.f32.mrb[0].mxu0
        %2583 = vmatprep.mubr.f32.mxu0 %v2076
        %2584 = vmatmul.mubr.f32.gmra.mrb[0].mxu0 %v2195
        %v2585 = vpop.f32.mrb[0].mxu0
        %v2586 = vadd.f32 %v2361, %v2585
        %v2587 = vpop.f32.mrb[0].mxu0
        %2588 = vmatprep.mubr.f32.mxu0 %v2077
        %2589 = vmatmul.mubr.f32.gmra.mrb[0].mxu0 %v2196
        %v2590 = vpop.f32.mrb[0].mxu0
        %v2591 = vadd.f32 %v2366, %v2590
        %v2592 = vpop.f32.mrb[0].mxu0
        %2593 = vmatprep.mubr.f32.mxu0 %v2078
        %2594 = vmatmul.mubr.f32.gmra.mrb[0].mxu0 %v2197
        %v2595 = vpop.f32.mrb[0].mxu0
        %v2596 = vadd.f32 %v2371, %v2595
        %v2597 = vpop.f32.mrb[0].mxu0
        %2598 = vmatprep.mubr.f32.mxu0 %v2079
        %2599 = vmatmul.mubr.f32.gmra.mrb[0].mxu0 %v2198
        %v2600 = vpop.f32.mrb[0].mxu0
        %v2601 = vadd.f32 %v2376, %v2600
        %v2602 = vpop.f32.mrb[0].mxu0
        %2603 = vmatprep.mubr.f32.mxu0 %v2080
        %2604 = vmatmul.mubr.f32.gmra.mrb[0].mxu0 %v2199
        %v2605 = vpop.f32.mrb[0].mxu0
        %v2606 = vadd.f32 %v2381, %v2605
        %v2607 = vpop.f32.mrb[0].mxu0
        %2608 = vmatprep.mubr.f32.mxu0 %v2081
        %2609 = vmatmul.mubr.f32.gmra.mrb[0].mxu0 %v2200
        %v2610 = vpop.f32.mrb[0].mxu0
        %v2611 = vadd.f32 %v2386, %v2610
        %v2612 = vpop.f32.mrb[0].mxu0
        %2613 = vmatprep.mubr.f32.mxu0 %v2082
        %2614 = vmatmul.mubr.f32.gmra.mrb[0].mxu0 %v2201
        %v2615 = vpop.f32.mrb[0].mxu0
        %v2616 = vadd.f32 %v2391, %v2615
        %v2617 = vpop.f32.mrb[0].mxu0
        %2618 = vmatprep.mubr.f32.mxu0 %v2083
        %2619 = vmatmul.mubr.f32.gmra.mrb[0].mxu0 %v2202
        %v2620 = vpop.f32.mrb[0].mxu0
        %v2621 = vadd.f32 %v2396, %v2620
        %v2622 = vpop.f32.mrb[0].mxu0
        %2623 = vmatprep.mubr.f32.mxu0 %v2084
        %2624 = vmatmul.mubr.f32.gmra.mrb[0].mxu0 %v2203
        %v2625 = vpop.f32.mrb[0].mxu0
        %v2626 = vadd.f32 %v2401, %v2625
        %v2627 = vpop.f32.mrb[0].mxu0
        %2628 = vmatprep.mubr.f32.mxu0 %v2085
        %2629 = vmatmul.mubr.f32.gmra.mrb[0].mxu0 %v2204
        %v2630 = vpop.f32.mrb[0].mxu0
        %v2631 = vadd.f32 %v2406, %v2630
        %v2632 = vpop.f32.mrb[0].mxu0
        %2633 = vmatprep.mubr.f32.mxu0 %v2086
        %2634 = vmatmul.mubr.f32.gmra.mrb[0].mxu0 %v2205
        %v2635 = vpop.f32.mrb[0].mxu0
        %v2636 = vadd.f32 %v2411, %v2635
        %v2637 = vpop.f32.mrb[0].mxu0
        %2638 = vmatprep.mubr.f32.mxu0 %v2087
        %2639 = vmatmul.mubr.f32.gmra.mrb[0].mxu0 %v2206
        %v2640 = vpop.f32.mrb[0].mxu0
        %v2641 = vadd.f32 %v2416, %v2640
        %v2642 = vpop.f32.mrb[0].mxu0
        %2643 = vmatprep.mubr.f32.mxu0 %v2088
        %2644 = vmatmul.mubr.f32.gmra.mrb[0].mxu0 %v2207
        %v2645 = vpop.f32.mrb[0].mxu0
        %v2646 = vadd.f32 %v2421, %v2645
        %v2647 = vpop.f32.mrb[0].mxu0
        %2648 = vmatprep.mubr.f32.mxu0 %v2089
        %2649 = vmatmul.mubr.f32.gmra.mrb[0].mxu0 %v2208
        %v2650 = vpop.f32.mrb[0].mxu0
        %v2651 = vadd.f32 %v2426, %v2650
        %v2652 = vpop.f32.mrb[0].mxu0
        %2653 = vmatprep.mubr.f32.mxu0 %v2090
        %2654 = vmatmul.mubr.f32.gmra.mrb[0].mxu0 %v2209
        %v2655 = vpop.f32.mrb[0].mxu0
        %v2656 = vadd.f32 %v2431, %v2655
        %v2657 = vpop.f32.mrb[0].mxu0
        %2658 = vmatprep.mubr.f32.mxu0 %v2091
        %2659 = vmatmul.mubr.f32.gmra.mrb[0].mxu0 %v2210
        %v2660 = vpop.f32.mrb[0].mxu0
        %v2661 = vadd.f32 %v2436, %v2660
        %v2662 = vpop.f32.mrb[0].mxu0
        %2663 = vmatprep.mubr.f32.mxu0 %v2092
        %2664 = vmatmul.mubr.f32.gmra.mrb[0].mxu0 %v2211
        %v2665 = vpop.f32.mrb[0].mxu0
        %v2666 = vadd.f32 %v2441, %v2665
        %v2667 = vpop.f32.mrb[0].mxu0
        %2668 = vmatprep.mubr.f32.mxu0 %v2093
        %2669 = vmatmul.mubr.f32.gmra.mrb[0].mxu0 %v2212
        %v2670 = vpop.f32.mrb[0].mxu0
        %v2671 = vadd.f32 %v2446, %v2670
        %v2672 = vpop.f32.mrb[0].mxu0
        %2673 = vmatprep.mubr.f32.mxu0 %v2218
        %2674 = vmatmul.mubr.f32.gmra.mrb[0].mxu0 %v2213
        %v2675 = vpop.f32.mrb[0].mxu0
        %v2676 = vadd.f32 %v2451, %v2675
        %v2677 = vpop.f32.mrb[0].mxu0
        %2678 = vmatprep.mubr.f32.mxu0 %v2219
        %2679 = vmatmul.mubr.f32.gmra.mrb[0].mxu0 %v2214
        %v2680 = vpop.f32.mrb[0].mxu0
        %v2681 = vadd.f32 %v2456, %v2680
        %v2682 = vpop.f32.mrb[0].mxu0
        %2683 = vdwg.mxu0
        %2684 = vmatprep.subr.mxu0 0.0
        %2685 = vmatpush1.msra.mxu0 %v1923
        %2686 = vmatprep.subr.mxu0 0.0
        %2687 = vmatpush1.msra.mxu0 %v1924
        %2688 = vmatprep.subr.mxu0 0.0
        %2689 = vmatpush1.msra.mxu0 %v1925
        %2690 = vmatprep.subr.mxu0 0.0
        %2691 = vmatpush1.msra.mxu0 %v1926
        %2692 = vmatprep.subr.mxu0 0.0
        %2693 = vmatpush1.msra.mxu0 %v1927
        %2694 = vmatprep.subr.mxu0 0.0
        %2695 = vmatpush1.msra.mxu0 %v1928
        %2696 = vmatprep.subr.mxu0 0.0
        %2697 = vmatpush1.msra.mxu0 %v1929
        %2698 = vmatprep.subr.mxu0 0.0
        %2699 = vmatpush1.msra.mxu0 %v1930
        %2700 = vmatprep.subr.mxu0 0.0
        %2701 = vmatpush1.msra.mxu0 %v1931
        %2702 = vmatprep.subr.mxu0 0.0
        %2703 = vmatpush1.msra.mxu0 %v1932
        %2704 = vmatprep.subr.mxu0 0.0
        %2705 = vmatpush1.msra.mxu0 %v1933
        %2706 = vmatprep.subr.mxu0 0.0
        %2707 = vmatpush1.msra.mxu0 %v1934
        %2708 = vmatprep.subr.mxu0 0.0
        %2709 = vmatpush1.msra.mxu0 %v1935
        %2710 = vmatprep.subr.mxu0 0.0
        %2711 = vmatpush1.msra.mxu0 %v1936
        %2712 = vmatprep.subr.mxu0 0.0
        %2713 = vmatpush1.msra.mxu0 %v1937
        %2714 = vmatprep.subr.mxu0 0.0
        %2715 = vmatpush1.msra.mxu0 %v1938
        %2716 = vmatprep.subr.mxu0 0.0
        %2717 = vmatpush1.msra.mxu0 %v1939
        %2718 = vmatprep.subr.mxu0 0.0
        %2719 = vmatpush1.msra.mxu0 %v1940
        %2720 = vmatprep.subr.mxu0 0.0
        %2721 = vmatpush1.msra.mxu0 %v1941
        %2722 = vmatprep.subr.mxu0 0.0
        %2723 = vmatpush1.msra.mxu0 %v1942
        %2724 = vmatprep.subr.mxu0 0.0
        %2725 = vmatpush1.msra.mxu0 %v1943
        %2726 = vmatprep.subr.mxu0 0.0
        %2727 = vmatpush1.msra.mxu0 %v1944
        %2728 = vmatprep.subr.mxu0 0.0
        %2729 = vmatpush1.msra.mxu0 %v1945
        %2730 = vmatprep.subr.mxu0 0.0
        %2731 = vmatpush1.msra.mxu0 %v1946
        %2732 = vmatprep.subr.mxu0 0.0
        %2733 = vmatpush1.msra.mxu0 %v1947
        %2734 = vmatprep.subr.mxu0 0.0
        %2735 = vmatpush1.msra.mxu0 %v1948
        %2736 = vmatprep.subr.mxu0 0.0
        %2737 = vmatpush1.msra.mxu0 %v1949
        %2738 = vmatprep.subr.mxu0 0.0
        %2739 = vmatpush1.msra.mxu0 %v1950
        %2740 = vmatprep.subr.mxu0 0.0
        %2741 = vmatpush1.msra.mxu0 %v1951
        %2742 = vmatprep.subr.mxu0 0.0
        %2743 = vmatpush1.msra.mxu0 %v1952
        %2744 = vmatprep.subr.mxu0 0.0
        %2745 = vmatpush1.msra.mxu0 %v1953
        %2746 = vmatprep.subr.mxu0 0.0
        %2747 = vmatpush1.msra.mxu0 %v1954
        %2748 = vmatprep.mubr.f32.mxu0 %v2185
        %2749 = vmatmul.mubr.f32.gmra.mrb[0].mxu0 %v2094
        %v2750 = vpop.f32.mrb[0].mxu0
        %v2751 = vadd.f32 %v2526, %v2750
        %v2752 = vpop.f32.mrb[0].mxu0
        %2753 = vmatprep.mubr.f32.mxu0 %v2186
        %2754 = vmatmul.mubr.f32.gmra.mrb[0].mxu0 %v2095
        %v2755 = vpop.f32.mrb[0].mxu0
        %v2756 = vadd.f32 %v2531, %v2755
        %v2757 = vpop.f32.mrb[0].mxu0
        %2758 = vmatprep.mubr.f32.mxu0 %v2187
        %2759 = vmatmul.mubr.f32.gmra.mrb[0].mxu0 %v2096
        %v2760 = vpop.f32.mrb[0].mxu0
        %v2761 = vadd.f32 %v2536, %v2760
        %v2762 = vpop.f32.mrb[0].mxu0
        %2763 = vmatprep.mubr.f32.mxu0 %v2188
        %2764 = vmatmul.mubr.f32.gmra.mrb[0].mxu0 %v2097
        %v2765 = vpop.f32.mrb[0].mxu0
        %v2766 = vadd.f32 %v2541, %v2765
        %v2767 = vpop.f32.mrb[0].mxu0
        %2768 = vmatprep.mubr.f32.mxu0 %v2189
        %2769 = vmatmul.mubr.f32.gmra.mrb[0].mxu0 %v2098
        %v2770 = vpop.f32.mrb[0].mxu0
        %v2771 = vadd.f32 %v2546, %v2770
        %v2772 = vpop.f32.mrb[0].mxu0
        %2773 = vmatprep.mubr.f32.mxu0 %v2190
        %2774 = vmatmul.mubr.f32.gmra.mrb[0].mxu0 %v2099
        %v2775 = vpop.f32.mrb[0].mxu0
        %v2776 = vadd.f32 %v2551, %v2775
        %v2777 = vpop.f32.mrb[0].mxu0
        %2778 = vmatprep.mubr.f32.mxu0 %v2191
        %2779 = vmatmul.mubr.f32.gmra.mrb[0].mxu0 %v2100
        %v2780 = vpop.f32.mrb[0].mxu0
        %v2781 = vadd.f32 %v2556, %v2780
        %v2782 = vpop.f32.mrb[0].mxu0
        %2783 = vmatprep.mubr.f32.mxu0 %v2192
        %2784 = vmatmul.mubr.f32.gmra.mrb[0].mxu0 %v2101
        %v2785 = vpop.f32.mrb[0].mxu0
        %v2786 = vadd.f32 %v2561, %v2785
        %v2787 = vpop.f32.mrb[0].mxu0
        %2788 = vmatprep.mubr.f32.mxu0 %v2193
        %2789 = vmatmul.mubr.f32.gmra.mrb[0].mxu0 %v2102
        %v2790 = vpop.f32.mrb[0].mxu0
        %v2791 = vadd.f32 %v2566, %v2790
        %v2792 = vpop.f32.mrb[0].mxu0
        %2793 = vmatprep.mubr.f32.mxu0 %v2194
        %2794 = vmatmul.mubr.f32.gmra.mrb[0].mxu0 %v2103
        %v2795 = vpop.f32.mrb[0].mxu0
        %v2796 = vadd.f32 %v2571, %v2795
        %v2797 = vpop.f32.mrb[0].mxu0
        %2798 = vmatprep.mubr.f32.mxu0 %v2195
        %2799 = vmatmul.mubr.f32.gmra.mrb[0].mxu0 %v2104
        %v2800 = vpop.f32.mrb[0].mxu0
        %v2801 = vadd.f32 %v2576, %v2800
        %v2802 = vpop.f32.mrb[0].mxu0
        %2803 = vmatprep.mubr.f32.mxu0 %v2196
        %2804 = vmatmul.mubr.f32.gmra.mrb[0].mxu0 %v2105
        %v2805 = vpop.f32.mrb[0].mxu0
        %v2806 = vadd.f32 %v2581, %v2805
        %v2807 = vpop.f32.mrb[0].mxu0
        %2808 = vmatprep.mubr.f32.mxu0 %v2197
        %2809 = vmatmul.mubr.f32.gmra.mrb[0].mxu0 %v2106
        %v2810 = vpop.f32.mrb[0].mxu0
        %v2811 = vadd.f32 %v2586, %v2810
        %v2812 = vpop.f32.mrb[0].mxu0
        %2813 = vmatprep.mubr.f32.mxu0 %v2198
        %2814 = vmatmul.mubr.f32.gmra.mrb[0].mxu0 %v2107
        %v2815 = vpop.f32.mrb[0].mxu0
        %v2816 = vadd.f32 %v2591, %v2815
        %v2817 = vpop.f32.mrb[0].mxu0
        %2818 = vmatprep.mubr.f32.mxu0 %v2199
        %2819 = vmatmul.mubr.f32.gmra.mrb[0].mxu0 %v2108
        %v2820 = vpop.f32.mrb[0].mxu0
        %v2821 = vadd.f32 %v2596, %v2820
        %v2822 = vpop.f32.mrb[0].mxu0
        %2823 = vmatprep.mubr.f32.mxu0 %v2200
        %2824 = vmatmul.mubr.f32.gmra.mrb[0].mxu0 %v2109
        %v2825 = vpop.f32.mrb[0].mxu0
        %v2826 = vadd.f32 %v2601, %v2825
        %v2827 = vpop.f32.mrb[0].mxu0
        %2828 = vmatprep.mubr.f32.mxu0 %v2201
        %2829 = vmatmul.mubr.f32.gmra.mrb[0].mxu0 %v2110
        %v2830 = vpop.f32.mrb[0].mxu0
        %v2831 = vadd.f32 %v2606, %v2830
        %v2832 = vpop.f32.mrb[0].mxu0
        %2833 = vmatprep.mubr.f32.mxu0 %v2202
        %2834 = vmatmul.mubr.f32.gmra.mrb[0].mxu0 %v2111
        %v2835 = vpop.f32.mrb[0].mxu0
        %v2836 = vadd.f32 %v2611, %v2835
        %v2837 = vpop.f32.mrb[0].mxu0
        %2838 = vmatprep.mubr.f32.mxu0 %v2203
        %2839 = vmatmul.mubr.f32.gmra.mrb[0].mxu0 %v2112
        %v2840 = vpop.f32.mrb[0].mxu0
        %v2841 = vadd.f32 %v2616, %v2840
        %v2842 = vpop.f32.mrb[0].mxu0
        %2843 = vmatprep.mubr.f32.mxu0 %v2204
        %2844 = vmatmul.mubr.f32.gmra.mrb[0].mxu0 %v2113
        %v2845 = vpop.f32.mrb[0].mxu0
        %v2846 = vadd.f32 %v2621, %v2845
        %v2847 = vpop.f32.mrb[0].mxu0
        %2848 = vmatprep.mubr.f32.mxu0 %v2205
        %2849 = vmatmul.mubr.f32.gmra.mrb[0].mxu0 %v2114
        %v2850 = vpop.f32.mrb[0].mxu0
        %v2851 = vadd.f32 %v2626, %v2850
        %v2852 = vpop.f32.mrb[0].mxu0
        %2853 = vmatprep.mubr.f32.mxu0 %v2206
        %2854 = vmatmul.mubr.f32.gmra.mrb[0].mxu0 %v2115
        %v2855 = vpop.f32.mrb[0].mxu0
        %v2856 = vadd.f32 %v2631, %v2855
        %v2857 = vpop.f32.mrb[0].mxu0
        %2858 = vmatprep.mubr.f32.mxu0 %v2207
        %2859 = vmatmul.mubr.f32.gmra.mrb[0].mxu0 %v2116
        %v2860 = vpop.f32.mrb[0].mxu0
        %v2861 = vadd.f32 %v2636, %v2860
        %v2862 = vpop.f32.mrb[0].mxu0
        %2863 = vmatprep.mubr.f32.mxu0 %v2208
        %2864 = vmatmul.mubr.f32.gmra.mrb[0].mxu0 %v2117
        %v2865 = vpop.f32.mrb[0].mxu0
        %v2866 = vadd.f32 %v2641, %v2865
        %v2867 = vpop.f32.mrb[0].mxu0
        %2868 = vmatprep.mubr.f32.mxu0 %v2209
        %2869 = vmatmul.mubr.f32.gmra.mrb[0].mxu0 %v2118
        %v2870 = vpop.f32.mrb[0].mxu0
        %v2871 = vadd.f32 %v2646, %v2870
        %v2872 = vpop.f32.mrb[0].mxu0
        %2873 = vmatprep.mubr.f32.mxu0 %v2210
        %2874 = vmatmul.mubr.f32.gmra.mrb[0].mxu0 %v2119
        %v2875 = vpop.f32.mrb[0].mxu0
        %v2876 = vadd.f32 %v2651, %v2875
        %v2877 = vpop.f32.mrb[0].mxu0
        %2878 = vmatprep.mubr.f32.mxu0 %v2211
        %2879 = vmatmul.mubr.f32.gmra.mrb[0].mxu0 %v2120
        %v2880 = vpop.f32.mrb[0].mxu0
        %v2881 = vadd.f32 %v2656, %v2880
        %v2882 = vpop.f32.mrb[0].mxu0
        %2883 = vmatprep.mubr.f32.mxu0 %v2212
        %2884 = vmatmul.mubr.f32.gmra.mrb[0].mxu0 %v2121
        %v2885 = vpop.f32.mrb[0].mxu0
        %v2886 = vadd.f32 %v2661, %v2885
        %v2887 = vpop.f32.mrb[0].mxu0
        %2888 = vmatprep.mubr.f32.mxu0 %v2213
        %2889 = vmatmul.mubr.f32.gmra.mrb[0].mxu0 %v2122
        %v2890 = vpop.f32.mrb[0].mxu0
        %v2891 = vadd.f32 %v2666, %v2890
        %v2892 = vpop.f32.mrb[0].mxu0
        %2893 = vmatprep.mubr.f32.mxu0 %v2214
        %2894 = vmatmul.mubr.f32.gmra.mrb[0].mxu0 %v2123
        %v2895 = vpop.f32.mrb[0].mxu0
        %v2896 = vadd.f32 %v2671, %v2895
        %v2897 = vpop.f32.mrb[0].mxu0
        %2898 = vmatprep.mubr.f32.mxu0 %v2225
        %2899 = vmatmul.mubr.f32.gmra.mrb[0].mxu0 %v2220
        %v2900 = vpop.f32.mrb[0].mxu0
        %v2901 = vadd.f32 %v2676, %v2900
        %v2902 = vpop.f32.mrb[0].mxu0
        %2903 = vmatprep.mubr.f32.mxu0 %v2226
        %2904 = vmatmul.mubr.f32.gmra.mrb[0].mxu0 %v2221
        %v2905 = vpop.f32.mrb[0].mxu0
        %v2906 = vadd.f32 %v2681, %v2905
        %v2907 = vpop.f32.mrb[0].mxu0
        %2908 = vdwg.mxu0
        %2909 = vmatprep.subr.mxu0 0.0
        %2910 = vmatpush1.msra.mxu0 %v1955
        %2911 = vmatprep.subr.mxu0 0.0
        %2912 = vmatpush1.msra.mxu0 %v1956
        %2913 = vmatprep.subr.mxu0 0.0
        %2914 = vmatpush1.msra.mxu0 %v1957
        %2915 = vmatprep.subr.mxu0 0.0
        %2916 = vmatpush1.msra.mxu0 %v1958
        %2917 = vmatprep.subr.mxu0 0.0
        %2918 = vmatpush1.msra.mxu0 %v1959
        %2919 = vmatprep.subr.mxu0 0.0
        %2920 = vmatpush1.msra.mxu0 %v1960
        %2921 = vmatprep.subr.mxu0 0.0
        %2922 = vmatpush1.msra.mxu0 %v1961
        %2923 = vmatprep.subr.mxu0 0.0
        %2924 = vmatpush1.msra.mxu0 %v1962
        %2925 = vmatprep.subr.mxu0 0.0
        %2926 = vmatpush1.msra.mxu0 %v1963
        %2927 = vmatprep.subr.mxu0 0.0
        %2928 = vmatpush1.msra.mxu0 %v1964
        %2929 = vmatprep.subr.mxu0 0.0
        %2930 = vmatpush1.msra.mxu0 %v1965
        %2931 = vmatprep.subr.mxu0 0.0
        %2932 = vmatpush1.msra.mxu0 %v1966
        %2933 = vmatprep.subr.mxu0 0.0
        %2934 = vmatpush1.msra.mxu0 %v1967
        %2935 = vmatprep.subr.mxu0 0.0
        %2936 = vmatpush1.msra.mxu0 %v1968
        %2937 = vmatprep.subr.mxu0 0.0
        %2938 = vmatpush1.msra.mxu0 %v1969
        %2939 = vmatprep.subr.mxu0 0.0
        %2940 = vmatpush1.msra.mxu0 %v1970
        %2941 = vmatprep.subr.mxu0 0.0
        %2942 = vmatpush1.msra.mxu0 %v1971
        %2943 = vmatprep.subr.mxu0 0.0
        %2944 = vmatpush1.msra.mxu0 %v1972
        %2945 = vmatprep.subr.mxu0 0.0
        %2946 = vmatpush1.msra.mxu0 %v1973
        %2947 = vmatprep.subr.mxu0 0.0
        %2948 = vmatpush1.msra.mxu0 %v1974
        %2949 = vmatprep.subr.mxu0 0.0
        %2950 = vmatpush1.msra.mxu0 %v1975
        %2951 = vmatprep.subr.mxu0 0.0
        %2952 = vmatpush1.msra.mxu0 %v1976
        %2953 = vmatprep.subr.mxu0 0.0
        %2954 = vmatpush1.msra.mxu0 %v1977
        %2955 = vmatprep.subr.mxu0 0.0
        %2956 = vmatpush1.msra.mxu0 %v1978
        %2957 = vmatprep.subr.mxu0 0.0
        %2958 = vmatpush1.msra.mxu0 %v1979
        %2959 = vmatprep.subr.mxu0 0.0
        %2960 = vmatpush1.msra.mxu0 %v1980
        %2961 = vmatprep.subr.mxu0 0.0
        %2962 = vmatpush1.msra.mxu0 %v1981
        %2963 = vmatprep.subr.mxu0 0.0
        %2964 = vmatpush1.msra.mxu0 %v1982
        %2965 = vmatprep.subr.mxu0 0.0
        %2966 = vmatpush1.msra.mxu0 %v1983
        %2967 = vmatprep.subr.mxu0 0.0
        %2968 = vmatpush1.msra.mxu0 %v1984
        %2969 = vmatprep.subr.mxu0 0.0
        %2970 = vmatpush1.msra.mxu0 %v1985
        %2971 = vmatprep.subr.mxu0 0.0
        %2972 = vmatpush1.msra.mxu0 %v1986
        %2973 = vmatprep.mubr.f32.mxu0 %v2096
        %2974 = vmatmul.mubr.f32.gmra.mrb[0].mxu0 %v2066
        %v2975 = vpop.f32.mrb[0].mxu0
        %v2976 = vadd.f32 %v2751, %v2975
        %v2977 = vpop.f32.mrb[0].mxu0
        %2978 = vmatprep.mubr.f32.mxu0 %v2097
        %2979 = vmatmul.mubr.f32.gmra.mrb[0].mxu0 %v2067
        %v2980 = vpop.f32.mrb[0].mxu0
        %v2981 = vadd.f32 %v2756, %v2980
        %v2982 = vpop.f32.mrb[0].mxu0
        %2983 = vmatprep.mubr.f32.mxu0 %v2098
        %2984 = vmatmul.mubr.f32.gmra.mrb[0].mxu0 %v2068
        %v2985 = vpop.f32.mrb[0].mxu0
        %v2986 = vadd.f32 %v2761, %v2985
        %v2987 = vpop.f32.mrb[0].mxu0
        %2988 = vmatprep.mubr.f32.mxu0 %v2099
        %2989 = vmatmul.mubr.f32.gmra.mrb[0].mxu0 %v2069
        %v2990 = vpop.f32.mrb[0].mxu0
        %v2991 = vadd.f32 %v2766, %v2990
        %v2992 = vpop.f32.mrb[0].mxu0
        %2993 = vmatprep.mubr.f32.mxu0 %v2100
        %2994 = vmatmul.mubr.f32.gmra.mrb[0].mxu0 %v2070
        %v2995 = vpop.f32.mrb[0].mxu0
        %v2996 = vadd.f32 %v2771, %v2995
        %v2997 = vpop.f32.mrb[0].mxu0
        %2998 = vmatprep.mubr.f32.mxu0 %v2101
        %2999 = vmatmul.mubr.f32.gmra.mrb[0].mxu0 %v2071
        %v3000 = vpop.f32.mrb[0].mxu0
        %v3001 = vadd.f32 %v2776, %v3000
        %v3002 = vpop.f32.mrb[0].mxu0
        %3003 = vmatprep.mubr.f32.mxu0 %v2102
        %3004 = vmatmul.mubr.f32.gmra.mrb[0].mxu0 %v2072
        %v3005 = vpop.f32.mrb[0].mxu0
        %v3006 = vadd.f32 %v2781, %v3005
        %v3007 = vpop.f32.mrb[0].mxu0
        %3008 = vmatprep.mubr.f32.mxu0 %v2103
        %3009 = vmatmul.mubr.f32.gmra.mrb[0].mxu0 %v2073
        %v3010 = vpop.f32.mrb[0].mxu0
        %v3011 = vadd.f32 %v2786, %v3010
        %v3012 = vpop.f32.mrb[0].mxu0
        %3013 = vmatprep.mubr.f32.mxu0 %v2104
        %3014 = vmatmul.mubr.f32.gmra.mrb[0].mxu0 %v2074
        %v3015 = vpop.f32.mrb[0].mxu0
        %v3016 = vadd.f32 %v2791, %v3015
        %v3017 = vpop.f32.mrb[0].mxu0
        %3018 = vmatprep.mubr.f32.mxu0 %v2105
        %3019 = vmatmul.mubr.f32.gmra.mrb[0].mxu0 %v2075
        %v3020 = vpop.f32.mrb[0].mxu0
        %v3021 = vadd.f32 %v2796, %v3020
        %v3022 = vpop.f32.mrb[0].mxu0
        %3023 = vmatprep.mubr.f32.mxu0 %v2106
        %3024 = vmatmul.mubr.f32.gmra.mrb[0].mxu0 %v2076
        %v3025 = vpop.f32.mrb[0].mxu0
        %v3026 = vadd.f32 %v2801, %v3025
        %v3027 = vpop.f32.mrb[0].mxu0
        %3028 = vmatprep.mubr.f32.mxu0 %v2107
        %3029 = vmatmul.mubr.f32.gmra.mrb[0].mxu0 %v2077
        %v3030 = vpop.f32.mrb[0].mxu0
        %v3031 = vadd.f32 %v2806, %v3030
        %v3032 = vpop.f32.mrb[0].mxu0
        %3033 = vmatprep.mubr.f32.mxu0 %v2108
        %3034 = vmatmul.mubr.f32.gmra.mrb[0].mxu0 %v2078
        %v3035 = vpop.f32.mrb[0].mxu0
        %v3036 = vadd.f32 %v2811, %v3035
        %v3037 = vpop.f32.mrb[0].mxu0
        %3038 = vmatprep.mubr.f32.mxu0 %v2109
        %3039 = vmatmul.mubr.f32.gmra.mrb[0].mxu0 %v2079
        %v3040 = vpop.f32.mrb[0].mxu0
        %v3041 = vadd.f32 %v2816, %v3040
        %v3042 = vpop.f32.mrb[0].mxu0
        %3043 = vmatprep.mubr.f32.mxu0 %v2110
        %3044 = vmatmul.mubr.f32.gmra.mrb[0].mxu0 %v2080
        %v3045 = vpop.f32.mrb[0].mxu0
        %v3046 = vadd.f32 %v2821, %v3045
        %v3047 = vpop.f32.mrb[0].mxu0
        %3048 = vmatprep.mubr.f32.mxu0 %v2111
        %3049 = vmatmul.mubr.f32.gmra.mrb[0].mxu0 %v2081
        %v3050 = vpop.f32.mrb[0].mxu0
        %v3051 = vadd.f32 %v2826, %v3050
        %v3052 = vpop.f32.mrb[0].mxu0
        %3053 = vmatprep.mubr.f32.mxu0 %v2112
        %3054 = vmatmul.mubr.f32.gmra.mrb[0].mxu0 %v2082
        %v3055 = vpop.f32.mrb[0].mxu0
        %v3056 = vadd.f32 %v2831, %v3055
        %v3057 = vpop.f32.mrb[0].mxu0
        %3058 = vmatprep.mubr.f32.mxu0 %v2113
        %3059 = vmatmul.mubr.f32.gmra.mrb[0].mxu0 %v2083
        %v3060 = vpop.f32.mrb[0].mxu0
        %v3061 = vadd.f32 %v2836, %v3060
        %v3062 = vpop.f32.mrb[0].mxu0
        %3063 = vmatprep.mubr.f32.mxu0 %v2114
        %3064 = vmatmul.mubr.f32.gmra.mrb[0].mxu0 %v2084
        %v3065 = vpop.f32.mrb[0].mxu0
        %v3066 = vadd.f32 %v2841, %v3065
        %v3067 = vpop.f32.mrb[0].mxu0
        %3068 = vmatprep.mubr.f32.mxu0 %v2115
        %3069 = vmatmul.mubr.f32.gmra.mrb[0].mxu0 %v2085
        %v3070 = vpop.f32.mrb[0].mxu0
        %v3071 = vadd.f32 %v2846, %v3070
        %v3072 = vpop.f32.mrb[0].mxu0
        %3073 = vmatprep.mubr.f32.mxu0 %v2116
        %3074 = vmatmul.mubr.f32.gmra.mrb[0].mxu0 %v2086
        %v3075 = vpop.f32.mrb[0].mxu0
        %v3076 = vadd.f32 %v2851, %v3075
        %v3077 = vpop.f32.mrb[0].mxu0
        %3078 = vmatprep.mubr.f32.mxu0 %v2117
        %3079 = vmatmul.mubr.f32.gmra.mrb[0].mxu0 %v2087
        %v3080 = vpop.f32.mrb[0].mxu0
        %v3081 = vadd.f32 %v2856, %v3080
        %v3082 = vpop.f32.mrb[0].mxu0
        %3083 = vmatprep.mubr.f32.mxu0 %v2118
        %3084 = vmatmul.mubr.f32.gmra.mrb[0].mxu0 %v2088
        %v3085 = vpop.f32.mrb[0].mxu0
        %v3086 = vadd.f32 %v2861, %v3085
        %v3087 = vpop.f32.mrb[0].mxu0
        %3088 = vmatprep.mubr.f32.mxu0 %v2119
        %3089 = vmatmul.mubr.f32.gmra.mrb[0].mxu0 %v2089
        %v3090 = vpop.f32.mrb[0].mxu0
        %v3091 = vadd.f32 %v2866, %v3090
        %v3092 = vpop.f32.mrb[0].mxu0
        %3093 = vmatprep.mubr.f32.mxu0 %v2120
        %3094 = vmatmul.mubr.f32.gmra.mrb[0].mxu0 %v2090
        %v3095 = vpop.f32.mrb[0].mxu0
        %v3096 = vadd.f32 %v2871, %v3095
        %v3097 = vpop.f32.mrb[0].mxu0
        %3098 = vmatprep.mubr.f32.mxu0 %v2121
        %3099 = vmatmul.mubr.f32.gmra.mrb[0].mxu0 %v2091
        %v3100 = vpop.f32.mrb[0].mxu0
        %v3101 = vadd.f32 %v2876, %v3100
        %v3102 = vpop.f32.mrb[0].mxu0
        %3103 = vmatprep.mubr.f32.mxu0 %v2122
        %3104 = vmatmul.mubr.f32.gmra.mrb[0].mxu0 %v2092
        %v3105 = vpop.f32.mrb[0].mxu0
        %v3106 = vadd.f32 %v2881, %v3105
        %v3107 = vpop.f32.mrb[0].mxu0
        %3108 = vmatprep.mubr.f32.mxu0 %v2123
        %3109 = vmatmul.mubr.f32.gmra.mrb[0].mxu0 %v2093
        %v3110 = vpop.f32.mrb[0].mxu0
        %v3111 = vadd.f32 %v2886, %v3110
        %v3112 = vpop.f32.mrb[0].mxu0
        %3113 = vmatprep.mubr.f32.mxu0 %v2220
        %3114 = vmatmul.mubr.f32.gmra.mrb[0].mxu0 %v2218
        %v3115 = vpop.f32.mrb[0].mxu0
        %v3116 = vadd.f32 %v2891, %v3115
        %v3117 = vpop.f32.mrb[0].mxu0
        %3118 = vmatprep.mubr.f32.mxu0 %v2221
        %3119 = vmatmul.mubr.f32.gmra.mrb[0].mxu0 %v2219
        %v3120 = vpop.f32.mrb[0].mxu0
        %v3121 = vadd.f32 %v2896, %v3120
        %v3122 = vpop.f32.mrb[0].mxu0
        %3123 = vmatprep.mubr.f32.mxu0 0.0
        %3124 = vmatmul.mubr.f32.gmra.mrb[0].mxu0 0.0
        %v3125 = vpop.f32.mrb[0].mxu0
        %v3126 = vadd.f32 %v2901, %v3125
        %v3127 = vpop.f32.mrb[0].mxu0
        %3128 = vmatprep.mubr.f32.mxu0 0.0
        %3129 = vmatmul.mubr.f32.gmra.mrb[0].mxu0 0.0
        %v3130 = vpop.f32.mrb[0].mxu0
        %v3131 = vadd.f32 %v2906, %v3130
        %v3132 = vpop.f32.mrb[0].mxu0
        %3133 = vdwg.mxu0
        %3134 = vmatprep.subr.mxu0 0.0
        %3135 = vmatpush1.msra.mxu0 %v1987
        %3136 = vmatprep.subr.mxu0 0.0
        %3137 = vmatpush1.msra.mxu0 %v1988
        %3138 = vmatprep.subr.mxu0 0.0
        %3139 = vmatpush1.msra.mxu0 %v1989
        %3140 = vmatprep.subr.mxu0 0.0
        %3141 = vmatpush1.msra.mxu0 %v1990
        %3142 = vmatprep.subr.mxu0 0.0
        %3143 = vmatpush1.msra.mxu0 %v1991
        %3144 = vmatprep.subr.mxu0 0.0
        %3145 = vmatpush1.msra.mxu0 %v1992
        %3146 = vmatprep.subr.mxu0 0.0
        %3147 = vmatpush1.msra.mxu0 %v1993
        %3148 = vmatprep.subr.mxu0 0.0
        %3149 = vmatpush1.msra.mxu0 %v1994
        %3150 = vmatprep.subr.mxu0 0.0
        %3151 = vmatpush1.msra.mxu0 %v1995
        %3152 = vmatprep.subr.mxu0 0.0
        %3153 = vmatpush1.msra.mxu0 %v1996
        %3154 = vmatprep.subr.mxu0 0.0
        %3155 = vmatpush1.msra.mxu0 %v1997
        %3156 = vmatprep.subr.mxu0 0.0
        %3157 = vmatpush1.msra.mxu0 %v1998
        %3158 = vmatprep.subr.mxu0 0.0
        %3159 = vmatpush1.msra.mxu0 %v1999
        %3160 = vmatprep.subr.mxu0 0.0
        %3161 = vmatpush1.msra.mxu0 %v2000
        %3162 = vmatprep.subr.mxu0 0.0
        %3163 = vmatpush1.msra.mxu0 %v2001
        %3164 = vmatprep.subr.mxu0 0.0
        %3165 = vmatpush1.msra.mxu0 %v2002
        %3166 = vmatprep.subr.mxu0 0.0
        %3167 = vmatpush1.msra.mxu0 0.0
        %3168 = vmatprep.subr.mxu0 0.0
        %3169 = vmatpush1.msra.mxu0 0.0
        %3170 = vmatprep.subr.mxu0 0.0
        %3171 = vmatpush1.msra.mxu0 0.0
        %3172 = vmatprep.subr.mxu0 0.0
        %3173 = vmatpush1.msra.mxu0 0.0
        %3174 = vmatprep.subr.mxu0 0.0
        %3175 = vmatpush1.msra.mxu0 0.0
        %3176 = vmatprep.subr.mxu0 0.0
        %3177 = vmatpush1.msra.mxu0 0.0
        %3178 = vmatprep.subr.mxu0 0.0
        %3179 = vmatpush1.msra.mxu0 0.0
        %3180 = vmatprep.subr.mxu0 0.0
        %3181 = vmatpush1.msra.mxu0 0.0
        %3182 = vmatprep.subr.mxu0 0.0
        %3183 = vmatpush1.msra.mxu0 0.0
        %3184 = vmatprep.subr.mxu0 0.0
        %3185 = vmatpush1.msra.mxu0 0.0
        %3186 = vmatprep.subr.mxu0 0.0
        %3187 = vmatpush1.msra.mxu0 0.0
        %3188 = vmatprep.subr.mxu0 0.0
        %3189 = vmatpush1.msra.mxu0 0.0
        %3190 = vmatprep.subr.mxu0 0.0
        %3191 = vmatpush1.msra.mxu0 0.0
        %3192 = vmatprep.subr.mxu0 0.0
        %3193 = vmatpush1.msra.mxu0 0.0
        %3194 = vmatprep.subr.mxu0 0.0
        %3195 = vmatpush1.msra.mxu0 0.0
        %3196 = vmatprep.subr.mxu0 0.0
        %3197 = vmatpush1.msra.mxu0 0.0
        %3198 = vmatprep.mubr.f32.mxu0 0.0
        %3199 = vmatmul.mubr.f32.gmra.mrb[0].mxu0 %v2187
        %v3200 = vpop.f32.mrb[0].mxu0
        %v3201 = vadd.f32 %v2976, %v3200
        %v3202 = vpop.f32.mrb[0].mxu0
        %3203 = vmatprep.mubr.f32.mxu0 0.0
        %3204 = vmatmul.mubr.f32.gmra.mrb[0].mxu0 %v2188
        %v3205 = vpop.f32.mrb[0].mxu0
        %v3206 = vadd.f32 %v2981, %v3205
        %v3207 = vpop.f32.mrb[0].mxu0
        %3208 = vmatprep.mubr.f32.mxu0 0.0
        %3209 = vmatmul.mubr.f32.gmra.mrb[0].mxu0 %v2189
        %v3210 = vpop.f32.mrb[0].mxu0
        %v3211 = vadd.f32 %v2986, %v3210
        %v3212 = vpop.f32.mrb[0].mxu0
        %3213 = vmatprep.mubr.f32.mxu0 0.0
        %3214 = vmatmul.mubr.f32.gmra.mrb[0].mxu0 %v2190
        %v3215 = vpop.f32.mrb[0].mxu0
        %v3216 = vadd.f32 %v2991, %v3215
        %v3217 = vpop.f32.mrb[0].mxu0
        %3218 = vmatprep.mubr.f32.mxu0 0.0
        %3219 = vmatmul.mubr.f32.gmra.mrb[0].mxu0 %v2191
        %v3220 = vpop.f32.mrb[0].mxu0
        %v3221 = vadd.f32 %v2996, %v3220
        %v3222 = vpop.f32.mrb[0].mxu0
        %3223 = vmatprep.mubr.f32.mxu0 0.0
        %3224 = vmatmul.mubr.f32.gmra.mrb[0].mxu0 %v2192
        %v3225 = vpop.f32.mrb[0].mxu0
        %v3226 = vadd.f32 %v3001, %v3225
        %v3227 = vpop.f32.mrb[0].mxu0
        %3228 = vmatprep.mubr.f32.mxu0 0.0
        %3229 = vmatmul.mubr.f32.gmra.mrb[0].mxu0 %v2193
        %v3230 = vpop.f32.mrb[0].mxu0
        %v3231 = vadd.f32 %v3006, %v3230
        %v3232 = vpop.f32.mrb[0].mxu0
        %3233 = vmatprep.mubr.f32.mxu0 0.0
        %3234 = vmatmul.mubr.f32.gmra.mrb[0].mxu0 %v2194
        %v3235 = vpop.f32.mrb[0].mxu0
        %v3236 = vadd.f32 %v3011, %v3235
        %v3237 = vpop.f32.mrb[0].mxu0
        %3238 = vmatprep.mubr.f32.mxu0 0.0
        %3239 = vmatmul.mubr.f32.gmra.mrb[0].mxu0 %v2195
        %v3240 = vpop.f32.mrb[0].mxu0
        %v3241 = vadd.f32 %v3016, %v3240
        %v3242 = vpop.f32.mrb[0].mxu0
        %3243 = vmatprep.mubr.f32.mxu0 0.0
        %3244 = vmatmul.mubr.f32.gmra.mrb[0].mxu0 %v2196
        %v3245 = vpop.f32.mrb[0].mxu0
        %v3246 = vadd.f32 %v3021, %v3245
        %v3247 = vpop.f32.mrb[0].mxu0
        %3248 = vmatprep.mubr.f32.mxu0 0.0
        %3249 = vmatmul.mubr.f32.gmra.mrb[0].mxu0 %v2197
        %v3250 = vpop.f32.mrb[0].mxu0
        %v3251 = vadd.f32 %v3026, %v3250
        %v3252 = vpop.f32.mrb[0].mxu0
        %3253 = vmatprep.mubr.f32.mxu0 0.0
        %3254 = vmatmul.mubr.f32.gmra.mrb[0].mxu0 %v2198
        %v3255 = vpop.f32.mrb[0].mxu0
        %v3256 = vadd.f32 %v3031, %v3255
        %v3257 = vpop.f32.mrb[0].mxu0
        %3258 = vmatprep.mubr.f32.mxu0 0.0
        %3259 = vmatmul.mubr.f32.gmra.mrb[0].mxu0 %v2199
        %v3260 = vpop.f32.mrb[0].mxu0
        %v3261 = vadd.f32 %v3036, %v3260
        %v3262 = vpop.f32.mrb[0].mxu0
        %3263 = vmatprep.mubr.f32.mxu0 0.0
        %3264 = vmatmul.mubr.f32.gmra.mrb[0].mxu0 %v2200
        %v3265 = vpop.f32.mrb[0].mxu0
        %v3266 = vadd.f32 %v3041, %v3265
        %v3267 = vpop.f32.mrb[0].mxu0
        %3268 = vmatprep.mubr.f32.mxu0 0.0
        %3269 = vmatmul.mubr.f32.gmra.mrb[0].mxu0 %v2201
        %v3270 = vpop.f32.mrb[0].mxu0
        %v3271 = vadd.f32 %v3046, %v3270
        %v3272 = vpop.f32.mrb[0].mxu0
        %3273 = vmatprep.mubr.f32.mxu0 0.0
        %3274 = vmatmul.mubr.f32.gmra.mrb[0].mxu0 %v2202
        %v3275 = vpop.f32.mrb[0].mxu0
        %v3276 = vadd.f32 %v3051, %v3275
        %v3277 = vpop.f32.mrb[0].mxu0
        %3278 = vmatprep.mubr.f32.mxu0 0.0
        %3279 = vmatmul.mubr.f32.gmra.mrb[0].mxu0 %v2203
        %v3280 = vpop.f32.mrb[0].mxu0
        %v3281 = vadd.f32 %v3056, %v3280
        %v3282 = vpop.f32.mrb[0].mxu0
        %3283 = vmatprep.mubr.f32.mxu0 0.0
        %3284 = vmatmul.mubr.f32.gmra.mrb[0].mxu0 %v2204
        %v3285 = vpop.f32.mrb[0].mxu0
        %v3286 = vadd.f32 %v3061, %v3285
        %v3287 = vpop.f32.mrb[0].mxu0
        %3288 = vmatprep.mubr.f32.mxu0 0.0
        %3289 = vmatmul.mubr.f32.gmra.mrb[0].mxu0 %v2205
        %v3290 = vpop.f32.mrb[0].mxu0
        %v3291 = vadd.f32 %v3066, %v3290
        %v3292 = vpop.f32.mrb[0].mxu0
        %3293 = vmatprep.mubr.f32.mxu0 0.0
        %3294 = vmatmul.mubr.f32.gmra.mrb[0].mxu0 %v2206
        %v3295 = vpop.f32.mrb[0].mxu0
        %v3296 = vadd.f32 %v3071, %v3295
        %v3297 = vpop.f32.mrb[0].mxu0
        %3298 = vmatprep.mubr.f32.mxu0 0.0
        %3299 = vmatmul.mubr.f32.gmra.mrb[0].mxu0 %v2207
        %v3300 = vpop.f32.mrb[0].mxu0
        %v3301 = vadd.f32 %v3076, %v3300
        %v3302 = vpop.f32.mrb[0].mxu0
        %3303 = vmatprep.mubr.f32.mxu0 0.0
        %3304 = vmatmul.mubr.f32.gmra.mrb[0].mxu0 %v2208
        %v3305 = vpop.f32.mrb[0].mxu0
        %v3306 = vadd.f32 %v3081, %v3305
        %v3307 = vpop.f32.mrb[0].mxu0
        %3308 = vmatprep.mubr.f32.mxu0 0.0
        %3309 = vmatmul.mubr.f32.gmra.mrb[0].mxu0 %v2209
        %v3310 = vpop.f32.mrb[0].mxu0
        %v3311 = vadd.f32 %v3086, %v3310
        %v3312 = vpop.f32.mrb[0].mxu0
        %3313 = vmatprep.mubr.f32.mxu0 0.0
        %3314 = vmatmul.mubr.f32.gmra.mrb[0].mxu0 %v2210
        %v3315 = vpop.f32.mrb[0].mxu0
        %v3316 = vadd.f32 %v3091, %v3315
        %v3317 = vpop.f32.mrb[0].mxu0
        %3318 = vmatprep.mubr.f32.mxu0 0.0
        %3319 = vmatmul.mubr.f32.gmra.mrb[0].mxu0 %v2211
        %v3320 = vpop.f32.mrb[0].mxu0
        %v3321 = vadd.f32 %v3096, %v3320
        %v3322 = vpop.f32.mrb[0].mxu0
        %3323 = vmatprep.mubr.f32.mxu0 0.0
        %3324 = vmatmul.mubr.f32.gmra.mrb[0].mxu0 %v2212
        %v3325 = vpop.f32.mrb[0].mxu0
        %v3326 = vadd.f32 %v3101, %v3325
        %v3327 = vpop.f32.mrb[0].mxu0
        %3328 = vmatprep.mubr.f32.mxu0 0.0
        %3329 = vmatmul.mubr.f32.gmra.mrb[0].mxu0 %v2213
        %v3330 = vpop.f32.mrb[0].mxu0
        %v3331 = vadd.f32 %v3106, %v3330
        %v3332 = vpop.f32.mrb[0].mxu0
        %3333 = vmatprep.mubr.f32.mxu0 0.0
        %3334 = vmatmul.mubr.f32.gmra.mrb[0].mxu0 %v2214
        %v3335 = vpop.f32.mrb[0].mxu0
        %v3336 = vadd.f32 %v3111, %v3335
        %v3337 = vpop.f32.mrb[0].mxu0
        %3338 = vmatprep.mubr.f32.mxu0 0.0
        %3339 = vmatmul.mubr.f32.gmra.mrb[0].mxu0 %v2225
        %v3340 = vpop.f32.mrb[0].mxu0
        %v3341 = vadd.f32 %v3116, %v3340
        %v3342 = vpop.f32.mrb[0].mxu0
        %3343 = vmatprep.mubr.f32.mxu0 0.0
        %3344 = vmatmul.mubr.f32.gmra.mrb[0].mxu0 %v2226
        %v3345 = vpop.f32.mrb[0].mxu0
        %v3346 = vadd.f32 %v3121, %v3345
        %v3347 = vpop.f32.mrb[0].mxu0
        %3348 = vmatprep.mubr.f32.mxu0 0.0
        %3349 = vmatmul.mubr.f32.gmra.mrb[0].mxu0 0.0
        %v3350 = vpop.f32.mrb[0].mxu0
        %v3351 = vadd.f32 %v3126, %v3350
        %v3352 = vpop.f32.mrb[0].mxu0
        %3353 = vmatprep.mubr.f32.mxu0 0.0
        %3354 = vmatmul.mubr.f32.gmra.mrb[0].mxu0 0.0
        %v3355 = vpop.f32.mrb[0].mxu0
        %v3356 = vadd.f32 %v3131, %v3355
        %v3357 = vpop.f32.mrb[0].mxu0
        %3358 = vdwg.mxu0
        %v3359 = vmax.f32 %v3201, 0.0
        %v3360 = vmax.f32 %v3206, 0.0
        %v3361 = vmax.f32 %v3211, 0.0
        %v3362 = vmax.f32 %v3216, 0.0
        %v3363 = vmax.f32 %v3221, 0.0
        %v3364 = vmax.f32 %v3226, 0.0
        %v3365 = vmax.f32 %v3231, 0.0
        %v3366 = vmax.f32 %v3236, 0.0
        %v3367 = vmax.f32 %v3241, 0.0
        %v3368 = vmax.f32 %v3246, 0.0
        %v3369 = vmax.f32 %v3251, 0.0
        %v3370 = vmax.f32 %v3256, 0.0
        %v3371 = vmax.f32 %v3261, 0.0
        %v3372 = vmax.f32 %v3266, 0.0
        %v3373 = vmax.f32 %v3271, 0.0
        %v3374 = vmax.f32 %v3276, 0.0
        %v3375 = vmax.f32 %v3281, 0.0
        %v3376 = vmax.f32 %v3286, 0.0
        %v3377 = vmax.f32 %v3291, 0.0
        %v3378 = vmax.f32 %v3296, 0.0
        %v3379 = vmax.f32 %v3301, 0.0
        %v3380 = vmax.f32 %v3306, 0.0
        %v3381 = vmax.f32 %v3311, 0.0
        %v3382 = vmax.f32 %v3316, 0.0
        %v3383 = vmax.f32 %v3321, 0.0
        %v3384 = vmax.f32 %v3326, 0.0
        %v3385 = vmax.f32 %v3331, 0.0
        %v3386 = vmax.f32 %v3336, 0.0
        %v3387 = vmax.f32 %v3341, 0.0
        %v3388 = vmax.f32 %v3346, 0.0
        %v3389 = vmax.f32 %v3351, 0.0
        %v3390 = vmax.f32 %v3356, 0.0
        %3391 = vst [vmem:[%s271] sm:$0xff] %v3359
        %3392 = vst [vmem:[%s271 + $0x8] sm:$0xff] %v3360
        %3393 = vst [vmem:[%s271 + $0x10] sm:$0xff] %v3361
        %3394 = vst [vmem:[%s271 + $0x18] sm:$0xff] %v3362
        %3395 = vst [vmem:[%s271 + $0x20] sm:$0xff] %v3363
        %3396 = vst [vmem:[%s271 + $0x28] sm:$0xff] %v3364
        %3397 = vst [vmem:[%s271 + $0x30] sm:$0xff] %v3365
        %3398 = vst [vmem:[%s271 + $0x38] sm:$0xff] %v3366
        %3399 = vst [vmem:[%s271 + $0x40] sm:$0xff] %v3367
        %3400 = vst [vmem:[%s271 + $0x48] sm:$0xff] %v3368
        %3401 = vst [vmem:[%s271 + $0x50] sm:$0xff] %v3369
        %3402 = vst [vmem:[%s271 + $0x58] sm:$0xff] %v3370
        %3403 = vst [vmem:[%s271 + $0x60] sm:$0xff] %v3371
        %3404 = vst [vmem:[%s271 + $0x68] sm:$0xff] %v3372
        %3405 = vst [vmem:[%s271 + $0x70] sm:$0xff] %v3373
        %3406 = vst [vmem:[%s271 + $0x78] sm:$0xff] %v3374
        %3407 = vst [vmem:[%s271 + $0x80] sm:$0xff] %v3375
        %3408 = vst [vmem:[%s271 + $0x88] sm:$0xff] %v3376
        %3409 = vst [vmem:[%s271 + $0x90] sm:$0xff] %v3377
        %3410 = vst [vmem:[%s271 + $0x98] sm:$0xff] %v3378
        %3411 = vst [vmem:[%s271 + $0xa0] sm:$0xff] %v3379
        %3412 = vst [vmem:[%s271 + $0xa8] sm:$0xff] %v3380
        %3413 = vst [vmem:[%s271 + $0xb0] sm:$0xff] %v3381
        %3414 = vst [vmem:[%s271 + $0xb8] sm:$0xff] %v3382
        %3415 = vst [vmem:[%s271 + $0xc0] sm:$0xff] %v3383
        %3416 = vst [vmem:[%s271 + $0xc8] sm:$0xff] %v3384
        %3417 = vst [vmem:[%s271 + $0xd0] sm:$0xff] %v3385
        %3418 = vst [vmem:[%s271 + $0xd8] sm:$0xff] %v3386
        %3419 = vst [vmem:[%s271 + $0xe0] sm:$0xff] %v3387
        %3420 = vst [vmem:[%s271 + $0xe8] sm:$0xff] %v3388
        %3421 = vst [vmem:[%s271 + $0xf0] sm:$0xff] %v3389
        %3422 = vst [vmem:[%s271 + $0xf8] sm:$0xff] %v3390
        %s3423 = sand.u32 %s141, 1
        %s3424 = scalar_lea.sflag [#allocation4], %s3423
        %s3425 = sand.u32 %s141, 1
        %s3426 = smul.addr %s3425, 256
        %s3427 = scalar_lea.vmem [#allocation8], %s3426
        // Predicated region
        $region53: #{tpu_custom_call.1} parent=39 // pred_check
          %p3428 = pneg %p151
        $region54: #{tpu_custom_call.1} parent=39 // pred_check_branch
          %3430 = sbr.rel (%p3428) target = $region56
        $region55: #{tpu_custom_call.1} parent=39 // pred_region
          %s3432 = ssub.s32 4096, 4096
          %3433 = vsyncadd %s3424, %s3432
          %s3434 = smul.addr %s23, 32
          %s3435 = smul.addr %s3434, 128
          %s3436 = scalar_lea.hbm %s5, %s3435
          %s3437 = sshll.u32 %s3427, 4
          %s3438 = int_to_ptr.vmem [resolvable:$true] %s3437
          %3443 = dma.vmem_to_hbm [thread:$0]  %s3438, 4096, %s3436, %s3424, 128, 128, 8
        $region56: #{tpu_custom_call.1} parent=39 // pred_fallthru
          _
      $region40: #{tpu_custom_call.1} parent=5 // pred_fallthru
        _
      %p3444 = scmp.le.s32.totalorder 2, %s18
      // Predicated region
      $region57: #{tpu_custom_call.1} parent=5 // pred_check
        %p3445 = pneg %p3444
      $region58: #{tpu_custom_call.1} parent=5 // pred_check_branch
        %3447 = sbr.rel (%p3445) target = $region60
      $region59: #{tpu_custom_call.1} parent=5 // pred_region
        %s3448 = ssub.s32 %s18, 2
        // Predicated region
        $region61: #{tpu_custom_call.1} parent=59 // pred_check
          %p3449 = pneg %p157
        $region62: #{tpu_custom_call.1} parent=59 // pred_check_branch
          %3451 = sbr.rel (%p3449) target = $region64
        $region63: #{tpu_custom_call.1} parent=59 // pred_region
          %s3452 = sand.u32 %s142, 1
          %s3453 = scalar_lea.sflag [#allocation4], %s3452
          %s3454 = sand.u32 %s142, 1
          %s3455 = smul.addr %s3454, 256
          %s3456 = scalar_lea.vmem [#allocation8], %s3455
          %3457 = dma.done %s3453, 4096
        $region64: #{tpu_custom_call.1} parent=59 // pred_fallthru
          _
      $region60: #{tpu_custom_call.1} parent=5 // pred_fallthru
        _
    $region6: #{tpu_custom_call.1} parent=1 // loop_footer
      %s22 = sadd.s32 1, %s18
    $region7: #{tpu_custom_call.1} parent=1 // loop_footer_branch
      %17 = sbr.rel target = $region3
    $region8: #{tpu_custom_call.1} parent=1 // loop_exit
      _
    %3458 = vsyncpa [#allocation3], 1
    %s3459 = scalar_lea.sflag [#allocation3], 1
    %3460 = vsyncpa %s3459, 1
    %3461 = vsyncpa [#allocation6], 1
    %3462 = vsyncpa [#allocation4], 1
    %s3463 = scalar_lea.sflag [#allocation4], 1
    %3464 = vsyncpa %s3463, 1

</llo_original>
